<compile_context>
chip_gen: v7x
topology: tpu7x:2x2x1
jax: 0.10.0
libtpu: 0.0.40
codegen_flags: <defaults>
</compile_context>

<pallas_src>
import functools
import math

import jax
import jax.numpy as jnp
from jax import lax
from jax.experimental import pallas as pl
from jax.experimental.pallas import tpu as pltpu

# ----- model config (hard-coded in the PyTorch module's ViTConfig) -----
HIDDEN = 256
LAYERS = 7
HEADS = 4
HEAD_DIM = HIDDEN // HEADS
INTERMEDIATE = 512
LN_EPS = 1e-12


# --------------------------- fused Pallas kernel ---------------------------

def _encoder_stack_kernel(
    xp_ref, base_ref, patch_w_ref,
    ln1_ref, qkv_w_ref, qkv_b_ref, o_w_ref, o_b_ref,
    ln2_ref, fc1_w_ref, fc1_b_ref, fc2_w_ref, fc2_b_ref,
    lnf_ref, pool_w_ref, pool_b_ref,
    out_ref, h_scratch,
    *, batch, s_pad, s_valid):
  """grid=(LAYERS,).  h_scratch (B*s_pad, HIDDEN) f32 persists across layers."""
  layer = pl.program_id(0)

  def layer_norm(x, gamma, beta):
    m = jnp.mean(x, axis=-1, keepdims=True)
    v = jnp.mean(jnp.square(x - m), axis=-1, keepdims=True)
    return (x - m) * lax.rsqrt(v + LN_EPS) * gamma + beta

  # ---- prologue (layer 0): patch projection + cls/pos into the scratch ----
  # base already contains: row0 = cls + pos0, rows 1..N = pos + patch_bias,
  # pad rows = 0; xp is zero on the cls/pad rows, so h0 = base + xp @ W_patch.
  @pl.when(layer == 0)
  def _():
    emb = jnp.dot(xp_ref[...].astype(jnp.bfloat16), patch_w_ref[...],
                  preferred_element_type=jnp.float32)
    h_scratch[...] = base_ref[...] + emb
    # TODO(synk): hidden_dropout_prob=0.1 is identity in eval mode; not modeled.

  h = h_scratch[...]                                   # (B*s_pad, H) f32

  # ------------------------- attention block -------------------------
  ln1 = ln1_ref[0]                                     # (2, H): gamma, beta
  x1 = layer_norm(h, ln1[0:1, :], ln1[1:2, :]).astype(jnp.bfloat16)
  qkv = jnp.dot(x1, qkv_w_ref[0],
                preferred_element_type=jnp.float32) + qkv_b_ref[0]  # (R, 3H) f32
  q = qkv[:, 0:HIDDEN]
  k = qkv[:, HIDDEN:2 * HIDDEN]
  v = qkv[:, 2 * HIDDEN:3 * HIDDEN]

  scale = 1.0 / math.sqrt(HEAD_DIM)
  # mask padded key positions (columns >= s_valid)
  kmask = lax.broadcasted_iota(jnp.int32, (s_pad, s_pad), 1) < s_valid

  ctx_rows = []
  for b in range(batch):                               # static, tiny (B=2)
    r0 = b * s_pad
    qb = q[r0:r0 + s_pad] * scale
    kb = k[r0:r0 + s_pad]
    vb = v[r0:r0 + s_pad]
    heads = []
    for hh in range(HEADS):                            # static, 4 lane-slices
      c0 = hh * HEAD_DIM
      qh = qb[:, c0:c0 + HEAD_DIM].astype(jnp.bfloat16)
      kh = kb[:, c0:c0 + HEAD_DIM].astype(jnp.bfloat16)
      vh = vb[:, c0:c0 + HEAD_DIM].astype(jnp.bfloat16)
      s = lax.dot_general(qh, kh, (((1,), (1,)), ((), ())),
                          preferred_element_type=jnp.float32)       # (Sp, Sp)
      s = jnp.where(kmask, s, -1e30)
      s = s - jnp.max(s, axis=-1, keepdims=True)
      p = jnp.exp(s)
      p = p * pl.reciprocal(jnp.sum(p, axis=-1, keepdims=True), approx=True)
      heads.append(jnp.dot(p.astype(jnp.bfloat16), vh,
                           preferred_element_type=jnp.float32))     # (Sp, Dh)
    ctx_rows.append(jnp.concatenate(heads, axis=-1))                # (Sp, H)
  ctx = jnp.concatenate(ctx_rows, axis=0).astype(jnp.bfloat16)      # (R, H)

  attn = jnp.dot(ctx, o_w_ref[0],
                 preferred_element_type=jnp.float32) + o_b_ref[0]
  h = h + attn                                          # residual 1

  # ----------------------------- MLP block -----------------------------
  ln2 = ln2_ref[0]
  x2 = layer_norm(h, ln2[0:1, :], ln2[1:2, :]).astype(jnp.bfloat16)
  m1 = jnp.dot(x2, fc1_w_ref[0],
               preferred_element_type=jnp.float32) + fc1_b_ref[0]
  m1 = 0.5 * m1 * (1.0 + lax.erf(m1 * (1.0 / math.sqrt(2.0))))      # exact GELU
  m2 = jnp.dot(m1.astype(jnp.bfloat16), fc2_w_ref[0],
               preferred_element_type=jnp.float32) + fc2_b_ref[0]
  h = h + m2                                            # residual 2

  h_scratch[...] = h

  # ---- epilogue (last layer): final LayerNorm + pooler dense + tanh ----
  @pl.when(layer == LAYERS - 1)
  def _():
    hf = layer_norm(h, lnf_ref[0:1, :], lnf_ref[1:2, :]).astype(jnp.bfloat16)
    pooled = jnp.dot(hf, pool_w_ref[...],
                     preferred_element_type=jnp.float32) + pool_b_ref[...]
    out_ref[...] = jnp.tanh(pooled).astype(out_ref.dtype)


# --------------------------- wrapper (JAX glue) ---------------------------

def encoder_forward(x, params, patch_size, n_pr_patches):
  """x: (B, C, H, W) NCHW.  Returns (B, 1 + n_pr_patches, HIDDEN) float32."""
  B, C, H_img, W_img = x.shape
  P = patch_size
  Hp, Wp = H_img // P, W_img // P
  N = Hp * Wp
  S = N + 1                                   # real tokens (CLS + patches)
  SP = max(8, ((S + 7) // 8) * 8)             # sublane-aligned padded seq len
  CPP = C * P * P
  R = B * SP

  # patch "conv" (kernel == stride == P) == unfold; matmul happens in-kernel.
  # NOTE: patch_w must equal the PyTorch Conv2d weight (H, C, P, P)
  # .reshape(H, C*P*P).T with the same (C, P, P) flatten order used here.
  xp = (x.reshape(B, C, Hp, P, Wp, P)
         .transpose(0, 2, 4, 1, 3, 5)
         .reshape(B, N, CPP))
  xp_pad = jnp.zeros((B, SP, CPP), jnp.float32).at[:, 1:1 + N, :].set(xp)
  xp_pad = xp_pad.reshape(R, CPP)

  # base rows: CLS row = cls + pos[0]; patch rows = pos[t] + patch_bias;
  # pad rows = 0.  (patch pixels for CLS/pad rows are zero, so the in-kernel
  # patch matmul contributes nothing there.)
  base = jnp.zeros((B, SP, HIDDEN), jnp.float32)
  base = base.at[:, 0, :].set(params["cls"] + params["pos"][0])
  base = base.at[:, 1:1 + N, :].set(params["pos"][1:1 + N] + params["patch_b"])
  base = base.reshape(R, HIDDEN)

  kernel = functools.partial(_encoder_stack_kernel,
                             batch=B, s_pad=SP, s_valid=S)

  pooled = pl.pallas_call(
      kernel,
      out_shape=jax.ShapeDtypeStruct((R, HIDDEN), jnp.float32),
      grid=(LAYERS,),
      in_specs=[
          pl.BlockSpec((R, CPP), lambda l: (0, 0)),                    # xp_pad
          pl.BlockSpec((R, HIDDEN), lambda l: (0, 0)),                 # base
          pl.BlockSpec((CPP, HIDDEN), lambda l: (0, 0)),               # patch_w
          pl.BlockSpec((1, 2, HIDDEN), lambda l: (l, 0, 0)),           # ln1
          pl.BlockSpec((1, HIDDEN, 3 * HIDDEN), lambda l: (l, 0, 0)),  # qkv_w
          pl.BlockSpec((1, 1, 3 * HIDDEN), lambda l: (l, 0, 0)),       # qkv_b
          pl.BlockSpec((1, HIDDEN, HIDDEN), lambda l: (l, 0, 0)),      # o_w
          pl.BlockSpec((1, 1, HIDDEN), lambda l: (l, 0, 0)),           # o_b
          pl.BlockSpec((1, 2, HIDDEN), lambda l: (l, 0, 0)),           # ln2
          pl.BlockSpec((1, HIDDEN, INTERMEDIATE), lambda l: (l, 0, 0)),# fc1_w
          pl.BlockSpec((1, 1, INTERMEDIATE), lambda l: (l, 0, 0)),     # fc1_b
          pl.BlockSpec((1, INTERMEDIATE, HIDDEN), lambda l: (l, 0, 0)),# fc2_w
          pl.BlockSpec((1, 1, HIDDEN), lambda l: (l, 0, 0)),           # fc2_b
          pl.BlockSpec((2, HIDDEN), lambda l: (0, 0)),                 # lnf
          pl.BlockSpec((HIDDEN, HIDDEN), lambda l: (0, 0)),            # pool_w
          pl.BlockSpec((1, HIDDEN), lambda l: (0, 0)),                 # pool_b
      ],
      out_specs=pl.BlockSpec((R, HIDDEN), lambda l: (0, 0)),
      scratch_shapes=[pltpu.VMEM((R, HIDDEN), jnp.float32)],
      compiler_params=pltpu.CompilerParams(
          dimension_semantics=("arbitrary",),   # layers are sequential
          vmem_limit_bytes=32 * 1024 * 1024),
      # TODO(synk): on v7x a second "parallel" batch axis could use the 2nd
      # TensorCore, at the cost of re-streaming layer weights per batch.
  )(xp_pad, base, params["patch_w"],
    params["ln1"], params["qkv_w"], params["qkv_b"],
    params["o_w"], params["o_b"],
    params["ln2"], params["fc1_w"], params["fc1_b"],
    params["fc2_w"], params["fc2_b"],
    params["lnf"], params["pool_w"], params["pool_b"])

  n_out = n_pr_patches + 1
  assert n_out <= S, (n_out, S)
  return pooled.reshape(B, SP, HIDDEN)[:, :n_out, :]


# --------------------------- parameter init ---------------------------

def init_params(key, num_channels, patch_size, num_patches):
  std = 0.02
  cpp = num_channels * patch_size * patch_size
  keys = jax.random.split(key, 10)

  def norm(k, shape):
    return std * jax.random.normal(k, shape, jnp.float32)

  ln_pair = jnp.stack([jnp.ones((HIDDEN,), jnp.float32),
                       jnp.zeros((HIDDEN,), jnp.float32)])        # (2, H)
  ln_stack = jnp.tile(ln_pair[None], (LAYERS, 1, 1))              # (L, 2, H)

  qkv_w = jnp.concatenate([norm(keys[3], (LAYERS, HIDDEN, HIDDEN)),
                           norm(keys[4], (LAYERS, HIDDEN, HIDDEN)),
                           norm(keys[5], (LAYERS, HIDDEN, HIDDEN))], axis=-1)

  return {
      # matmul weights stored bf16 (halves weight DMA; f32 accumulation).
      "patch_w": norm(keys[0], (cpp, HIDDEN)).astype(jnp.bfloat16),
      "patch_b": jnp.zeros((HIDDEN,), jnp.float32),
      "cls":     norm(keys[1], (HIDDEN,)),
      "pos":     norm(keys[2], (num_patches + 1, HIDDEN)),
      "ln1":     ln_stack,
      "ln2":     ln_stack,
      "qkv_w":   qkv_w.astype(jnp.bfloat16),                      # (L, H, 3H)
      "qkv_b":   jnp.zeros((LAYERS, 1, 3 * HIDDEN), jnp.float32),
      "o_w":     norm(keys[6], (LAYERS, HIDDEN, HIDDEN)).astype(jnp.bfloat16),
      "o_b":     jnp.zeros((LAYERS, 1, HIDDEN), jnp.float32),
      "fc1_w":   norm(keys[7], (LAYERS, HIDDEN, INTERMEDIATE)).astype(jnp.bfloat16),
      "fc1_b":   jnp.zeros((LAYERS, 1, INTERMEDIATE), jnp.float32),
      "fc2_w":   norm(keys[8], (LAYERS, INTERMEDIATE, HIDDEN)).astype(jnp.bfloat16),
      "fc2_b":   jnp.zeros((LAYERS, 1, HIDDEN), jnp.float32),
      "lnf":     ln_pair,
      "pool_w":  norm(keys[9], (HIDDEN, HIDDEN)).astype(jnp.bfloat16),
      "pool_b":  jnp.zeros((1, HIDDEN), jnp.float32),
  }


# --------------------------- main ---------------------------

if __name__ == "__main__":
  # args: pr_img_size=16, patch_size=8, num_channels=4, n_pr_patches=4
  B, C, IMG, PATCH = 2, 4, 16, 8
  NUM_PATCHES = (IMG // PATCH) ** 2            # 4
  N_PR_PATCHES = NUM_PATCHES                   # args.n_pr_patches

  key = jax.random.PRNGKey(0)
  kx, kp = jax.random.split(key)
  x = jax.random.normal(kx, (B, C, IMG, IMG), jnp.float32)
  params = init_params(kp, C, PATCH, NUM_PATCHES)

  fwd = jax.jit(functools.partial(encoder_forward,
                                  patch_size=PATCH,
                                  n_pr_patches=N_PR_PATCHES))
  out = jax.block_until_ready(fwd(x, params))

  assert out.shape == (B, N_PR_PATCHES + 1, HIDDEN), out.shape
  assert bool(jnp.all(jnp.isfinite(out)))
  print("KERNEL_OK")
</pallas_src>

<mosaic_0001>
module attributes {stable_mosaic.version = 11 : i64} {
  func.func @_encoder_stack_kernel(%arg0: i32, %arg1: memref<16x256xf32, #tpu.memory_space<vmem>>, %arg2: memref<16x256xf32, #tpu.memory_space<vmem>>, %arg3: memref<256x256xbf16, #tpu.memory_space<vmem>>, %arg4: memref<1x2x256xf32, #tpu.memory_space<vmem>>, %arg5: memref<1x256x768xbf16, #tpu.memory_space<vmem>>, %arg6: memref<1x1x768xf32, #tpu.memory_space<vmem>>, %arg7: memref<1x256x256xbf16, #tpu.memory_space<vmem>>, %arg8: memref<1x1x256xf32, #tpu.memory_space<vmem>>, %arg9: memref<1x2x256xf32, #tpu.memory_space<vmem>>, %arg10: memref<1x256x512xbf16, #tpu.memory_space<vmem>>, %arg11: memref<1x1x512xf32, #tpu.memory_space<vmem>>, %arg12: memref<1x512x256xbf16, #tpu.memory_space<vmem>>, %arg13: memref<1x1x256xf32, #tpu.memory_space<vmem>>, %arg14: memref<2x256xf32, #tpu.memory_space<vmem>>, %arg15: memref<256x256xbf16, #tpu.memory_space<vmem>>, %arg16: memref<1x256xf32, #tpu.memory_space<vmem>>, %arg17: memref<16x256xf32, #tpu.memory_space<vmem>>, %arg18: memref<16x256xf32, #tpu.memory_space<vmem>>) attributes {dimension_semantics = [#tpu.dimension_semantics<arbitrary>], iteration_bounds = array<i64: 7>, scalar_prefetch = 0 : i64, scratch_operands = 1 : i64, tpu.core_type = #tpu.core_type<tc>, window_params = [{pipeline_mode = #tpu.pipeline_mode<synchronous>, transform_indices = @transform_0, window_bounds = array<i64: 16, 256>}, {pipeline_mode = #tpu.pipeline_mode<synchronous>, transform_indices = @transform_1, window_bounds = array<i64: 16, 256>}, {pipeline_mode = #tpu.pipeline_mode<synchronous>, transform_indices = @transform_2, window_bounds = array<i64: 256, 256>}, {transform_indices = @transform_3, window_bounds = array<i64: 1, 2, 256>}, {transform_indices = @transform_4, window_bounds = array<i64: 1, 256, 768>}, {transform_indices = @transform_5, window_bounds = array<i64: 1, 1, 768>}, {transform_indices = @transform_6, window_bounds = array<i64: 1, 256, 256>}, {transform_indices = @transform_7, window_bounds = array<i64: 1, 1, 256>}, {transform_indices = @transform_8, window_bounds = array<i64: 1, 2, 256>}, {transform_indices = @transform_9, window_bounds = array<i64: 1, 256, 512>}, {transform_indices = @transform_10, window_bounds = array<i64: 1, 1, 512>}, {transform_indices = @transform_11, window_bounds = array<i64: 1, 512, 256>}, {transform_indices = @transform_12, window_bounds = array<i64: 1, 1, 256>}, {pipeline_mode = #tpu.pipeline_mode<synchronous>, transform_indices = @transform_13, window_bounds = array<i64: 2, 256>}, {pipeline_mode = #tpu.pipeline_mode<synchronous>, transform_indices = @transform_14, window_bounds = array<i64: 256, 256>}, {pipeline_mode = #tpu.pipeline_mode<synchronous>, transform_indices = @transform_15, window_bounds = array<i64: 1, 256>}, {pipeline_mode = #tpu.pipeline_mode<synchronous>, transform_indices = @transform_16, window_bounds = array<i64: 16, 256>}]} {
    %c0_i32 = arith.constant 0 : i32
    %0 = arith.cmpi eq, %arg0, %c0_i32 : i32
    %1 = arith.extui %0 : i1 to i32
    %c0_i32_0 = arith.constant 0 : i32
    %2 = arith.cmpi ne, %1, %c0_i32_0 : i32
    scf.if %2 {
      %c0_93 = arith.constant 0 : index
      %c0_94 = arith.constant 0 : index
      %289 = vector.load %arg1[%c0_93, %c0_94] : memref<16x256xf32, #tpu.memory_space<vmem>>, vector<16x256xf32>
      %290 = arith.truncf %289 : vector<16x256xf32> to vector<16x256xbf16>
      %c0_95 = arith.constant 0 : index
      %c0_96 = arith.constant 0 : index
      %291 = vector.load %arg3[%c0_95, %c0_96] : memref<256x256xbf16, #tpu.memory_space<vmem>>, vector<256x256xbf16>
      %cst_97 = arith.constant dense<0.000000e+00> : vector<16x256xf32>
      %292 = tpu.matmul %290, %291, %cst_97 {dimension_numbers = #tpu.dot_dimension_numbers<[1], [0], [0], [1], [0, 0, 1, 1], [], []>} : vector<16x256xbf16>, vector<256x256xbf16>, vector<16x256xf32> -> vector<16x256xf32>
      %c0_98 = arith.constant 0 : index
      %c0_99 = arith.constant 0 : index
      %293 = vector.load %arg2[%c0_98, %c0_99] : memref<16x256xf32, #tpu.memory_space<vmem>>, vector<16x256xf32>
      %294 = arith.addf %293, %292 : vector<16x256xf32>
      %c0_100 = arith.constant 0 : index
      %c0_101 = arith.constant 0 : index
      %295 = vector.load %arg18[%c0_100, %c0_101] : memref<16x256xf32, #tpu.memory_space<vmem>>, vector<16x256xf32>
      tpu.vector_store %arg18[%c0_100, %c0_101], %294 {strides = array<i32>} : memref<16x256xf32, #tpu.memory_space<vmem>>, vector<16x256xf32>,
    } else {
    }
    %c0 = arith.constant 0 : index
    %c0_1 = arith.constant 0 : index
    %3 = vector.load %arg18[%c0, %c0_1] : memref<16x256xf32, #tpu.memory_space<vmem>>, vector<16x256xf32>
    %c0_2 = arith.constant 0 : index
    %c0_3 = arith.constant 0 : index
    %c0_4 = arith.constant 0 : index
    %4 = vector.load %arg4[%c0_2, %c0_3, %c0_4] : memref<1x2x256xf32, #tpu.memory_space<vmem>>, vector<1x2x256xf32>
    %5 = vector.shape_cast %4 : vector<1x2x256xf32> to vector<2x256xf32>
    %6 = vector.extract_strided_slice %5 {offsets = [0, 0], sizes = [1, 256], strides = [1, 1]} : vector<2x256xf32> to vector<1x256xf32>
    %7 = vector.extract_strided_slice %5 {offsets = [1, 0], sizes = [1, 256], strides = [1, 1]} : vector<2x256xf32> to vector<1x256xf32>
    %cst = arith.constant dense<0.000000e+00> : vector<16xf32>
    %8 = vector.multi_reduction <add>, %3, %cst [1] : vector<16x256xf32> to vector<16xf32>
    %9 = vector.shape_cast %8 : vector<16xf32> to vector<16x1xf32>
    %cst_5 = arith.constant 2.560000e+02 : f32
    %10 = vector.broadcast %cst_5 : f32 to vector<16x1xf32>
    %11 = arith.divf %9, %10 : vector<16x1xf32>
    %12 = vector.broadcast %11 : vector<16x1xf32> to vector<16x256xf32>
    %13 = arith.subf %3, %12 : vector<16x256xf32>
    %14 = arith.mulf %13, %13 : vector<16x256xf32>
    %cst_6 = arith.constant dense<0.000000e+00> : vector<16xf32>
    %15 = vector.multi_reduction <add>, %14, %cst_6 [1] : vector<16x256xf32> to vector<16xf32>
    %16 = vector.shape_cast %15 : vector<16xf32> to vector<16x1xf32>
    %cst_7 = arith.constant 2.560000e+02 : f32
    %17 = vector.broadcast %cst_7 : f32 to vector<16x1xf32>
    %18 = arith.divf %16, %17 : vector<16x1xf32>
    %19 = vector.broadcast %11 : vector<16x1xf32> to vector<16x256xf32>
    %20 = arith.subf %3, %19 : vector<16x256xf32>
    %cst_8 = arith.constant 9.99999996E-13 : f32
    %21 = vector.broadcast %cst_8 : f32 to vector<16x1xf32>
    %22 = arith.addf %18, %21 : vector<16x1xf32>
    %23 = math.rsqrt %22 : vector<16x1xf32>
    %24 = vector.broadcast %23 : vector<16x1xf32> to vector<16x256xf32>
    %25 = arith.mulf %20, %24 : vector<16x256xf32>
    %26 = vector.broadcast %6 : vector<1x256xf32> to vector<16x256xf32>
    %27 = arith.mulf %25, %26 : vector<16x256xf32>
    %28 = vector.broadcast %7 : vector<1x256xf32> to vector<16x256xf32>
    %29 = arith.addf %27, %28 : vector<16x256xf32>
    %30 = arith.truncf %29 : vector<16x256xf32> to vector<16x256xbf16>
    %c0_9 = arith.constant 0 : index
    %c0_10 = arith.constant 0 : index
    %c0_11 = arith.constant 0 : index
    %31 = vector.load %arg5[%c0_9, %c0_10, %c0_11] : memref<1x256x768xbf16, #tpu.memory_space<vmem>>, vector<1x256x768xbf16>
    %32 = vector.shape_cast %31 : vector<1x256x768xbf16> to vector<256x768xbf16>
    %cst_12 = arith.constant dense<0.000000e+00> : vector<16x768xf32>
    %33 = tpu.matmul %30, %32, %cst_12 {dimension_numbers = #tpu.dot_dimension_numbers<[1], [0], [0], [1], [0, 0, 1, 1], [], []>} : vector<16x256xbf16>, vector<256x768xbf16>, vector<16x768xf32> -> vector<16x768xf32>
    %c0_13 = arith.constant 0 : index
    %c0_14 = arith.constant 0 : index
    %c0_15 = arith.constant 0 : index
    %34 = vector.load %arg6[%c0_13, %c0_14, %c0_15] : memref<1x1x768xf32, #tpu.memory_space<vmem>>, vector<1x1x768xf32>
    %35 = vector.shape_cast %34 : vector<1x1x768xf32> to vector<1x768xf32>
    %36 = vector.broadcast %35 : vector<1x768xf32> to vector<16x768xf32>
    %37 = arith.addf %33, %36 : vector<16x768xf32>
    %38 = vector.extract_strided_slice %37 {offsets = [0, 0], sizes = [16, 256], strides = [1, 1]} : vector<16x768xf32> to vector<16x256xf32>
    %39 = vector.extract_strided_slice %37 {offsets = [0, 256], sizes = [16, 256], strides = [1, 1]} : vector<16x768xf32> to vector<16x256xf32>
    %40 = vector.extract_strided_slice %37 {offsets = [0, 512], sizes = [16, 256], strides = [1, 1]} : vector<16x768xf32> to vector<16x256xf32>
    %41 = tpu.iota {dimensions = array<i32: 1>} : vector<8x8xi32>
    %c5_i32 = arith.constant 5 : i32
    %42 = vector.broadcast %c5_i32 : i32 to vector<8x8xi32>
    %43 = arith.cmpi slt, %41, %42 : vector<8x8xi32>
    %44 = vector.extract_strided_slice %38 {offsets = [0, 0], sizes = [8, 256], strides = [1, 1]} : vector<16x256xf32> to vector<8x256xf32>
    %cst_16 = arith.constant 1.250000e-01 : f32
    %45 = vector.broadcast %cst_16 : f32 to vector<8x256xf32>
    %46 = arith.mulf %44, %45 : vector<8x256xf32>
    %47 = vector.extract_strided_slice %39 {offsets = [0, 0], sizes = [8, 256], strides = [1, 1]} : vector<16x256xf32> to vector<8x256xf32>
    %48 = vector.extract_strided_slice %40 {offsets = [0, 0], sizes = [8, 256], strides = [1, 1]} : vector<16x256xf32> to vector<8x256xf32>
    %49 = vector.extract_strided_slice %46 {offsets = [0, 0], sizes = [8, 64], strides = [1, 1]} : vector<8x256xf32> to vector<8x64xf32>
    %50 = arith.truncf %49 : vector<8x64xf32> to vector<8x64xbf16>
    %51 = vector.extract_strided_slice %47 {offsets = [0, 0], sizes = [8, 64], strides = [1, 1]} : vector<8x256xf32> to vector<8x64xf32>
    %52 = arith.truncf %51 : vector<8x64xf32> to vector<8x64xbf16>
    %53 = vector.extract_strided_slice %48 {offsets = [0, 0], sizes = [8, 64], strides = [1, 1]} : vector<8x256xf32> to vector<8x64xf32>
    %54 = arith.truncf %53 : vector<8x64xf32> to vector<8x64xbf16>
    %cst_17 = arith.constant dense<0.000000e+00> : vector<8x8xf32>
    %55 = tpu.matmul %50, %52, %cst_17 {dimension_numbers = #tpu.dot_dimension_numbers<[1], [1], [0], [0], [0, 0, 1, 0], [], []>} : vector<8x64xbf16>, vector<8x64xbf16>, vector<8x8xf32> -> vector<8x8xf32>
    %cst_18 = arith.constant -1.000000e+30 : f32
    %56 = vector.broadcast %cst_18 : f32 to vector<8x8xf32>
    %57 = arith.select %43, %55, %56 : vector<8x8xi1>, vector<8x8xf32>
    %cst_19 = arith.constant dense<0xFF800000> : vector<8xf32>
    %58 = vector.multi_reduction <maximumf>, %57, %cst_19 [1] : vector<8x8xf32> to vector<8xf32>
    %59 = vector.shape_cast %58 : vector<8xf32> to vector<8x1xf32>
    %60 = vector.broadcast %59 : vector<8x1xf32> to vector<8x8xf32>
    %61 = arith.subf %57, %60 : vector<8x8xf32>
    %62 = math.exp %61 : vector<8x8xf32>
    %cst_20 = arith.constant dense<0.000000e+00> : vector<8xf32>
    %63 = vector.multi_reduction <add>, %62, %cst_20 [1] : vector<8x8xf32> to vector<8xf32>
    %64 = vector.shape_cast %63 : vector<8xf32> to vector<8x1xf32>
    %65 = tpu.reciprocal %64 {approx = true} : vector<8x1xf32> -> vector<8x1xf32>
    %66 = vector.broadcast %65 : vector<8x1xf32> to vector<8x8xf32>
    %67 = arith.mulf %62, %66 : vector<8x8xf32>
    %68 = arith.truncf %67 : vector<8x8xf32> to vector<8x8xbf16>
    %cst_21 = arith.constant dense<0.000000e+00> : vector<8x64xf32>
    %69 = tpu.matmul %68, %54, %cst_21 {dimension_numbers = #tpu.dot_dimension_numbers<[1], [0], [0], [1], [0, 0, 1, 1], [], []>} : vector<8x8xbf16>, vector<8x64xbf16>, vector<8x64xf32> -> vector<8x64xf32>
    %70 = vector.extract_strided_slice %46 {offsets = [0, 64], sizes = [8, 64], strides = [1, 1]} : vector<8x256xf32> to vector<8x64xf32>
    %71 = arith.truncf %70 : vector<8x64xf32> to vector<8x64xbf16>
    %72 = vector.extract_strided_slice %47 {offsets = [0, 64], sizes = [8, 64], strides = [1, 1]} : vector<8x256xf32> to vector<8x64xf32>
    %73 = arith.truncf %72 : vector<8x64xf32> to vector<8x64xbf16>
    %74 = vector.extract_strided_slice %48 {offsets = [0, 64], sizes = [8, 64], strides = [1, 1]} : vector<8x256xf32> to vector<8x64xf32>
    %75 = arith.truncf %74 : vector<8x64xf32> to vector<8x64xbf16>
    %cst_22 = arith.constant dense<0.000000e+00> : vector<8x8xf32>
    %76 = tpu.matmul %71, %73, %cst_22 {dimension_numbers = #tpu.dot_dimension_numbers<[1], [1], [0], [0], [0, 0, 1, 0], [], []>} : vector<8x64xbf16>, vector<8x64xbf16>, vector<8x8xf32> -> vector<8x8xf32>
    %cst_23 = arith.constant -1.000000e+30 : f32
    %77 = vector.broadcast %cst_23 : f32 to vector<8x8xf32>
    %78 = arith.select %43, %76, %77 : vector<8x8xi1>, vector<8x8xf32>
    %cst_24 = arith.constant dense<0xFF800000> : vector<8xf32>
    %79 = vector.multi_reduction <maximumf>, %78, %cst_24 [1] : vector<8x8xf32> to vector<8xf32>
    %80 = vector.shape_cast %79 : vector<8xf32> to vector<8x1xf32>
    %81 = vector.broadcast %80 : vector<8x1xf32> to vector<8x8xf32>
    %82 = arith.subf %78, %81 : vector<8x8xf32>
    %83 = math.exp %82 : vector<8x8xf32>
    %cst_25 = arith.constant dense<0.000000e+00> : vector<8xf32>
    %84 = vector.multi_reduction <add>, %83, %cst_25 [1] : vector<8x8xf32> to vector<8xf32>
    %85 = vector.shape_cast %84 : vector<8xf32> to vector<8x1xf32>
    %86 = tpu.reciprocal %85 {approx = true} : vector<8x1xf32> -> vector<8x1xf32>
    %87 = vector.broadcast %86 : vector<8x1xf32> to vector<8x8xf32>
    %88 = arith.mulf %83, %87 : vector<8x8xf32>
    %89 = arith.truncf %88 : vector<8x8xf32> to vector<8x8xbf16>
    %cst_26 = arith.constant dense<0.000000e+00> : vector<8x64xf32>
    %90 = tpu.matmul %89, %75, %cst_26 {dimension_numbers = #tpu.dot_dimension_numbers<[1], [0], [0], [1], [0, 0, 1, 1], [], []>} : vector<8x8xbf16>, vector<8x64xbf16>, vector<8x64xf32> -> vector<8x64xf32>
    %91 = vector.extract_strided_slice %46 {offsets = [0, 128], sizes = [8, 64], strides = [1, 1]} : vector<8x256xf32> to vector<8x64xf32>
    %92 = arith.truncf %91 : vector<8x64xf32> to vector<8x64xbf16>
    %93 = vector.extract_strided_slice %47 {offsets = [0, 128], sizes = [8, 64], strides = [1, 1]} : vector<8x256xf32> to vector<8x64xf32>
    %94 = arith.truncf %93 : vector<8x64xf32> to vector<8x64xbf16>
    %95 = vector.extract_strided_slice %48 {offsets = [0, 128], sizes = [8, 64], strides = [1, 1]} : vector<8x256xf32> to vector<8x64xf32>
    %96 = arith.truncf %95 : vector<8x64xf32> to vector<8x64xbf16>
    %cst_27 = arith.constant dense<0.000000e+00> : vector<8x8xf32>
    %97 = tpu.matmul %92, %94, %cst_27 {dimension_numbers = #tpu.dot_dimension_numbers<[1], [1], [0], [0], [0, 0, 1, 0], [], []>} : vector<8x64xbf16>, vector<8x64xbf16>, vector<8x8xf32> -> vector<8x8xf32>
    %cst_28 = arith.constant -1.000000e+30 : f32
    %98 = vector.broadcast %cst_28 : f32 to vector<8x8xf32>
    %99 = arith.select %43, %97, %98 : vector<8x8xi1>, vector<8x8xf32>
    %cst_29 = arith.constant dense<0xFF800000> : vector<8xf32>
    %100 = vector.multi_reduction <maximumf>, %99, %cst_29 [1] : vector<8x8xf32> to vector<8xf32>
    %101 = vector.shape_cast %100 : vector<8xf32> to vector<8x1xf32>
    %102 = vector.broadcast %101 : vector<8x1xf32> to vector<8x8xf32>
    %103 = arith.subf %99, %102 : vector<8x8xf32>
    %104 = math.exp %103 : vector<8x8xf32>
    %cst_30 = arith.constant dense<0.000000e+00> : vector<8xf32>
    %105 = vector.multi_reduction <add>, %104, %cst_30 [1] : vector<8x8xf32> to vector<8xf32>
    %106 = vector.shape_cast %105 : vector<8xf32> to vector<8x1xf32>
    %107 = tpu.reciprocal %106 {approx = true} : vector<8x1xf32> -> vector<8x1xf32>
    %108 = vector.broadcast %107 : vector<8x1xf32> to vector<8x8xf32>
    %109 = arith.mulf %104, %108 : vector<8x8xf32>
    %110 = arith.truncf %109 : vector<8x8xf32> to vector<8x8xbf16>
    %cst_31 = arith.constant dense<0.000000e+00> : vector<8x64xf32>
    %111 = tpu.matmul %110, %96, %cst_31 {dimension_numbers = #tpu.dot_dimension_numbers<[1], [0], [0], [1], [0, 0, 1, 1], [], []>} : vector<8x8xbf16>, vector<8x64xbf16>, vector<8x64xf32> -> vector<8x64xf32>
    %112 = vector.extract_strided_slice %46 {offsets = [0, 192], sizes = [8, 64], strides = [1, 1]} : vector<8x256xf32> to vector<8x64xf32>
    %113 = arith.truncf %112 : vector<8x64xf32> to vector<8x64xbf16>
    %114 = vector.extract_strided_slice %47 {offsets = [0, 192], sizes = [8, 64], strides = [1, 1]} : vector<8x256xf32> to vector<8x64xf32>
    %115 = arith.truncf %114 : vector<8x64xf32> to vector<8x64xbf16>
    %116 = vector.extract_strided_slice %48 {offsets = [0, 192], sizes = [8, 64], strides = [1, 1]} : vector<8x256xf32> to vector<8x64xf32>
    %117 = arith.truncf %116 : vector<8x64xf32> to vector<8x64xbf16>
    %cst_32 = arith.constant dense<0.000000e+00> : vector<8x8xf32>
    %118 = tpu.matmul %113, %115, %cst_32 {dimension_numbers = #tpu.dot_dimension_numbers<[1], [1], [0], [0], [0, 0, 1, 0], [], []>} : vector<8x64xbf16>, vector<8x64xbf16>, vector<8x8xf32> -> vector<8x8xf32>
    %cst_33 = arith.constant -1.000000e+30 : f32
    %119 = vector.broadcast %cst_33 : f32 to vector<8x8xf32>
    %120 = arith.select %43, %118, %119 : vector<8x8xi1>, vector<8x8xf32>
    %cst_34 = arith.constant dense<0xFF800000> : vector<8xf32>
    %121 = vector.multi_reduction <maximumf>, %120, %cst_34 [1] : vector<8x8xf32> to vector<8xf32>
    %122 = vector.shape_cast %121 : vector<8xf32> to vector<8x1xf32>
    %123 = vector.broadcast %122 : vector<8x1xf32> to vector<8x8xf32>
    %124 = arith.subf %120, %123 : vector<8x8xf32>
    %125 = math.exp %124 : vector<8x8xf32>
    %cst_35 = arith.constant dense<0.000000e+00> : vector<8xf32>
    %126 = vector.multi_reduction <add>, %125, %cst_35 [1] : vector<8x8xf32> to vector<8xf32>
    %127 = vector.shape_cast %126 : vector<8xf32> to vector<8x1xf32>
    %128 = tpu.reciprocal %127 {approx = true} : vector<8x1xf32> -> vector<8x1xf32>
    %129 = vector.broadcast %128 : vector<8x1xf32> to vector<8x8xf32>
    %130 = arith.mulf %125, %129 : vector<8x8xf32>
    %131 = arith.truncf %130 : vector<8x8xf32> to vector<8x8xbf16>
    %cst_36 = arith.constant dense<0.000000e+00> : vector<8x64xf32>
    %132 = tpu.matmul %131, %117, %cst_36 {dimension_numbers = #tpu.dot_dimension_numbers<[1], [0], [0], [1], [0, 0, 1, 1], [], []>} : vector<8x8xbf16>, vector<8x64xbf16>, vector<8x64xf32> -> vector<8x64xf32>
    %133 = tpu.concatenate %69, %90, %111, %132 in 1 : vector<8x64xf32>, vector<8x64xf32>, vector<8x64xf32>, vector<8x64xf32> -> vector<8x256xf32>
    %134 = vector.extract_strided_slice %38 {offsets = [8, 0], sizes = [8, 256], strides = [1, 1]} : vector<16x256xf32> to vector<8x256xf32>
    %cst_37 = arith.constant 1.250000e-01 : f32
    %135 = vector.broadcast %cst_37 : f32 to vector<8x256xf32>
    %136 = arith.mulf %134, %135 : vector<8x256xf32>
    %137 = vector.extract_strided_slice %39 {offsets = [8, 0], sizes = [8, 256], strides = [1, 1]} : vector<16x256xf32> to vector<8x256xf32>
    %138 = vector.extract_strided_slice %40 {offsets = [8, 0], sizes = [8, 256], strides = [1, 1]} : vector<16x256xf32> to vector<8x256xf32>
    %139 = vector.extract_strided_slice %136 {offsets = [0, 0], sizes = [8, 64], strides = [1, 1]} : vector<8x256xf32> to vector<8x64xf32>
    %140 = arith.truncf %139 : vector<8x64xf32> to vector<8x64xbf16>
    %141 = vector.extract_strided_slice %137 {offsets = [0, 0], sizes = [8, 64], strides = [1, 1]} : vector<8x256xf32> to vector<8x64xf32>
    %142 = arith.truncf %141 : vector<8x64xf32> to vector<8x64xbf16>
    %143 = vector.extract_strided_slice %138 {offsets = [0, 0], sizes = [8, 64], strides = [1, 1]} : vector<8x256xf32> to vector<8x64xf32>
    %144 = arith.truncf %143 : vector<8x64xf32> to vector<8x64xbf16>
    %cst_38 = arith.constant dense<0.000000e+00> : vector<8x8xf32>
    %145 = tpu.matmul %140, %142, %cst_38 {dimension_numbers = #tpu.dot_dimension_numbers<[1], [1], [0], [0], [0, 0, 1, 0], [], []>} : vector<8x64xbf16>, vector<8x64xbf16>, vector<8x8xf32> -> vector<8x8xf32>
    %cst_39 = arith.constant -1.000000e+30 : f32
    %146 = vector.broadcast %cst_39 : f32 to vector<8x8xf32>
    %147 = arith.select %43, %145, %146 : vector<8x8xi1>, vector<8x8xf32>
    %cst_40 = arith.constant dense<0xFF800000> : vector<8xf32>
    %148 = vector.multi_reduction <maximumf>, %147, %cst_40 [1] : vector<8x8xf32> to vector<8xf32>
    %149 = vector.shape_cast %148 : vector<8xf32> to vector<8x1xf32>
    %150 = vector.broadcast %149 : vector<8x1xf32> to vector<8x8xf32>
    %151 = arith.subf %147, %150 : vector<8x8xf32>
    %152 = math.exp %151 : vector<8x8xf32>
    %cst_41 = arith.constant dense<0.000000e+00> : vector<8xf32>
    %153 = vector.multi_reduction <add>, %152, %cst_41 [1] : vector<8x8xf32> to vector<8xf32>
    %154 = vector.shape_cast %153 : vector<8xf32> to vector<8x1xf32>
    %155 = tpu.reciprocal %154 {approx = true} : vector<8x1xf32> -> vector<8x1xf32>
    %156 = vector.broadcast %155 : vector<8x1xf32> to vector<8x8xf32>
    %157 = arith.mulf %152, %156 : vector<8x8xf32>
    %158 = arith.truncf %157 : vector<8x8xf32> to vector<8x8xbf16>
    %cst_42 = arith.constant dense<0.000000e+00> : vector<8x64xf32>
    %159 = tpu.matmul %158, %144, %cst_42 {dimension_numbers = #tpu.dot_dimension_numbers<[1], [0], [0], [1], [0, 0, 1, 1], [], []>} : vector<8x8xbf16>, vector<8x64xbf16>, vector<8x64xf32> -> vector<8x64xf32>
    %160 = vector.extract_strided_slice %136 {offsets = [0, 64], sizes = [8, 64], strides = [1, 1]} : vector<8x256xf32> to vector<8x64xf32>
    %161 = arith.truncf %160 : vector<8x64xf32> to vector<8x64xbf16>
    %162 = vector.extract_strided_slice %137 {offsets = [0, 64], sizes = [8, 64], strides = [1, 1]} : vector<8x256xf32> to vector<8x64xf32>
    %163 = arith.truncf %162 : vector<8x64xf32> to vector<8x64xbf16>
    %164 = vector.extract_strided_slice %138 {offsets = [0, 64], sizes = [8, 64], strides = [1, 1]} : vector<8x256xf32> to vector<8x64xf32>
    %165 = arith.truncf %164 : vector<8x64xf32> to vector<8x64xbf16>
    %cst_43 = arith.constant dense<0.000000e+00> : vector<8x8xf32>
    %166 = tpu.matmul %161, %163, %cst_43 {dimension_numbers = #tpu.dot_dimension_numbers<[1], [1], [0], [0], [0, 0, 1, 0], [], []>} : vector<8x64xbf16>, vector<8x64xbf16>, vector<8x8xf32> -> vector<8x8xf32>
    %cst_44 = arith.constant -1.000000e+30 : f32
    %167 = vector.broadcast %cst_44 : f32 to vector<8x8xf32>
    %168 = arith.select %43, %166, %167 : vector<8x8xi1>, vector<8x8xf32>
    %cst_45 = arith.constant dense<0xFF800000> : vector<8xf32>
    %169 = vector.multi_reduction <maximumf>, %168, %cst_45 [1] : vector<8x8xf32> to vector<8xf32>
    %170 = vector.shape_cast %169 : vector<8xf32> to vector<8x1xf32>
    %171 = vector.broadcast %170 : vector<8x1xf32> to vector<8x8xf32>
    %172 = arith.subf %168, %171 : vector<8x8xf32>
    %173 = math.exp %172 : vector<8x8xf32>
    %cst_46 = arith.constant dense<0.000000e+00> : vector<8xf32>
    %174 = vector.multi_reduction <add>, %173, %cst_46 [1] : vector<8x8xf32> to vector<8xf32>
    %175 = vector.shape_cast %174 : vector<8xf32> to vector<8x1xf32>
    %176 = tpu.reciprocal %175 {approx = true} : vector<8x1xf32> -> vector<8x1xf32>
    %177 = vector.broadcast %176 : vector<8x1xf32> to vector<8x8xf32>
    %178 = arith.mulf %173, %177 : vector<8x8xf32>
    %179 = arith.truncf %178 : vector<8x8xf32> to vector<8x8xbf16>
    %cst_47 = arith.constant dense<0.000000e+00> : vector<8x64xf32>
    %180 = tpu.matmul %179, %165, %cst_47 {dimension_numbers = #tpu.dot_dimension_numbers<[1], [0], [0], [1], [0, 0, 1, 1], [], []>} : vector<8x8xbf16>, vector<8x64xbf16>, vector<8x64xf32> -> vector<8x64xf32>
    %181 = vector.extract_strided_slice %136 {offsets = [0, 128], sizes = [8, 64], strides = [1, 1]} : vector<8x256xf32> to vector<8x64xf32>
    %182 = arith.truncf %181 : vector<8x64xf32> to vector<8x64xbf16>
    %183 = vector.extract_strided_slice %137 {offsets = [0, 128], sizes = [8, 64], strides = [1, 1]} : vector<8x256xf32> to vector<8x64xf32>
    %184 = arith.truncf %183 : vector<8x64xf32> to vector<8x64xbf16>
    %185 = vector.extract_strided_slice %138 {offsets = [0, 128], sizes = [8, 64], strides = [1, 1]} : vector<8x256xf32> to vector<8x64xf32>
    %186 = arith.truncf %185 : vector<8x64xf32> to vector<8x64xbf16>
    %cst_48 = arith.constant dense<0.000000e+00> : vector<8x8xf32>
    %187 = tpu.matmul %182, %184, %cst_48 {dimension_numbers = #tpu.dot_dimension_numbers<[1], [1], [0], [0], [0, 0, 1, 0], [], []>} : vector<8x64xbf16>, vector<8x64xbf16>, vector<8x8xf32> -> vector<8x8xf32>
    %cst_49 = arith.constant -1.000000e+30 : f32
    %188 = vector.broadcast %cst_49 : f32 to vector<8x8xf32>
    %189 = arith.select %43, %187, %188 : vector<8x8xi1>, vector<8x8xf32>
    %cst_50 = arith.constant dense<0xFF800000> : vector<8xf32>
    %190 = vector.multi_reduction <maximumf>, %189, %cst_50 [1] : vector<8x8xf32> to vector<8xf32>
    %191 = vector.shape_cast %190 : vector<8xf32> to vector<8x1xf32>
    %192 = vector.broadcast %191 : vector<8x1xf32> to vector<8x8xf32>
    %193 = arith.subf %189, %192 : vector<8x8xf32>
    %194 = math.exp %193 : vector<8x8xf32>
    %cst_51 = arith.constant dense<0.000000e+00> : vector<8xf32>
    %195 = vector.multi_reduction <add>, %194, %cst_51 [1] : vector<8x8xf32> to vector<8xf32>
    %196 = vector.shape_cast %195 : vector<8xf32> to vector<8x1xf32>
    %197 = tpu.reciprocal %196 {approx = true} : vector<8x1xf32> -> vector<8x1xf32>
    %198 = vector.broadcast %197 : vector<8x1xf32> to vector<8x8xf32>
    %199 = arith.mulf %194, %198 : vector<8x8xf32>
    %200 = arith.truncf %199 : vector<8x8xf32> to vector<8x8xbf16>
    %cst_52 = arith.constant dense<0.000000e+00> : vector<8x64xf32>
    %201 = tpu.matmul %200, %186, %cst_52 {dimension_numbers = #tpu.dot_dimension_numbers<[1], [0], [0], [1], [0, 0, 1, 1], [], []>} : vector<8x8xbf16>, vector<8x64xbf16>, vector<8x64xf32> -> vector<8x64xf32>
    %202 = vector.extract_strided_slice %136 {offsets = [0, 192], sizes = [8, 64], strides = [1, 1]} : vector<8x256xf32> to vector<8x64xf32>
    %203 = arith.truncf %202 : vector<8x64xf32> to vector<8x64xbf16>
    %204 = vector.extract_strided_slice %137 {offsets = [0, 192], sizes = [8, 64], strides = [1, 1]} : vector<8x256xf32> to vector<8x64xf32>
    %205 = arith.truncf %204 : vector<8x64xf32> to vector<8x64xbf16>
    %206 = vector.extract_strided_slice %138 {offsets = [0, 192], sizes = [8, 64], strides = [1, 1]} : vector<8x256xf32> to vector<8x64xf32>
    %207 = arith.truncf %206 : vector<8x64xf32> to vector<8x64xbf16>
    %cst_53 = arith.constant dense<0.000000e+00> : vector<8x8xf32>
    %208 = tpu.matmul %203, %205, %cst_53 {dimension_numbers = #tpu.dot_dimension_numbers<[1], [1], [0], [0], [0, 0, 1, 0], [], []>} : vector<8x64xbf16>, vector<8x64xbf16>, vector<8x8xf32> -> vector<8x8xf32>
    %cst_54 = arith.constant -1.000000e+30 : f32
    %209 = vector.broadcast %cst_54 : f32 to vector<8x8xf32>
    %210 = arith.select %43, %208, %209 : vector<8x8xi1>, vector<8x8xf32>
    %cst_55 = arith.constant dense<0xFF800000> : vector<8xf32>
    %211 = vector.multi_reduction <maximumf>, %210, %cst_55 [1] : vector<8x8xf32> to vector<8xf32>
    %212 = vector.shape_cast %211 : vector<8xf32> to vector<8x1xf32>
    %213 = vector.broadcast %212 : vector<8x1xf32> to vector<8x8xf32>
    %214 = arith.subf %210, %213 : vector<8x8xf32>
    %215 = math.exp %214 : vector<8x8xf32>
    %cst_56 = arith.constant dense<0.000000e+00> : vector<8xf32>
    %216 = vector.multi_reduction <add>, %215, %cst_56 [1] : vector<8x8xf32> to vector<8xf32>
    %217 = vector.shape_cast %216 : vector<8xf32> to vector<8x1xf32>
    %218 = tpu.reciprocal %217 {approx = true} : vector<8x1xf32> -> vector<8x1xf32>
    %219 = vector.broadcast %218 : vector<8x1xf32> to vector<8x8xf32>
    %220 = arith.mulf %215, %219 : vector<8x8xf32>
    %221 = arith.truncf %220 : vector<8x8xf32> to vector<8x8xbf16>
    %cst_57 = arith.constant dense<0.000000e+00> : vector<8x64xf32>
    %222 = tpu.matmul %221, %207, %cst_57 {dimension_numbers = #tpu.dot_dimension_numbers<[1], [0], [0], [1], [0, 0, 1, 1], [], []>} : vector<8x8xbf16>, vector<8x64xbf16>, vector<8x64xf32> -> vector<8x64xf32>
    %223 = tpu.concatenate %159, %180, %201, %222 in 1 : vector<8x64xf32>, vector<8x64xf32>, vector<8x64xf32>, vector<8x64xf32> -> vector<8x256xf32>
    %224 = tpu.concatenate %133, %223 in 0 : vector<8x256xf32>, vector<8x256xf32> -> vector<16x256xf32>
    %225 = arith.truncf %224 : vector<16x256xf32> to vector<16x256xbf16>
    %c0_58 = arith.constant 0 : index
    %c0_59 = arith.constant 0 : index
    %c0_60 = arith.constant 0 : index
    %226 = vector.load %arg7[%c0_58, %c0_59, %c0_60] : memref<1x256x256xbf16, #tpu.memory_space<vmem>>, vector<1x256x256xbf16>
    %227 = vector.shape_cast %226 : vector<1x256x256xbf16> to vector<256x256xbf16>
    %cst_61 = arith.constant dense<0.000000e+00> : vector<16x256xf32>
    %228 = tpu.matmul %225, %227, %cst_61 {dimension_numbers = #tpu.dot_dimension_numbers<[1], [0], [0], [1], [0, 0, 1, 1], [], []>} : vector<16x256xbf16>, vector<256x256xbf16>, vector<16x256xf32> -> vector<16x256xf32>
    %c0_62 = arith.constant 0 : index
    %c0_63 = arith.constant 0 : index
    %c0_64 = arith.constant 0 : index
    %229 = vector.load %arg8[%c0_62, %c0_63, %c0_64] : memref<1x1x256xf32, #tpu.memory_space<vmem>>, vector<1x1x256xf32>
    %230 = vector.shape_cast %229 : vector<1x1x256xf32> to vector<1x256xf32>
    %231 = vector.broadcast %230 : vector<1x256xf32> to vector<16x256xf32>
    %232 = arith.addf %228, %231 : vector<16x256xf32>
    %233 = arith.addf %3, %232 : vector<16x256xf32>
    %c0_65 = arith.constant 0 : index
    %c0_66 = arith.constant 0 : index
    %c0_67 = arith.constant 0 : index
    %234 = vector.load %arg9[%c0_65, %c0_66, %c0_67] : memref<1x2x256xf32, #tpu.memory_space<vmem>>, vector<1x2x256xf32>
    %235 = vector.shape_cast %234 : vector<1x2x256xf32> to vector<2x256xf32>
    %236 = vector.extract_strided_slice %235 {offsets = [0, 0], sizes = [1, 256], strides = [1, 1]} : vector<2x256xf32> to vector<1x256xf32>
    %237 = vector.extract_strided_slice %235 {offsets = [1, 0], sizes = [1, 256], strides = [1, 1]} : vector<2x256xf32> to vector<1x256xf32>
    %cst_68 = arith.constant dense<0.000000e+00> : vector<16xf32>
    %238 = vector.multi_reduction <add>, %233, %cst_68 [1] : vector<16x256xf32> to vector<16xf32>
    %239 = vector.shape_cast %238 : vector<16xf32> to vector<16x1xf32>
    %cst_69 = arith.constant 2.560000e+02 : f32
    %240 = vector.broadcast %cst_69 : f32 to vector<16x1xf32>
    %241 = arith.divf %239, %240 : vector<16x1xf32>
    %242 = vector.broadcast %241 : vector<16x1xf32> to vector<16x256xf32>
    %243 = arith.subf %233, %242 : vector<16x256xf32>
    %244 = arith.mulf %243, %243 : vector<16x256xf32>
    %cst_70 = arith.constant dense<0.000000e+00> : vector<16xf32>
    %245 = vector.multi_reduction <add>, %244, %cst_70 [1] : vector<16x256xf32> to vector<16xf32>
    %246 = vector.shape_cast %245 : vector<16xf32> to vector<16x1xf32>
    %cst_71 = arith.constant 2.560000e+02 : f32
    %247 = vector.broadcast %cst_71 : f32 to vector<16x1xf32>
    %248 = arith.divf %246, %247 : vector<16x1xf32>
    %249 = vector.broadcast %241 : vector<16x1xf32> to vector<16x256xf32>
    %250 = arith.subf %233, %249 : vector<16x256xf32>
    %cst_72 = arith.constant 9.99999996E-13 : f32
    %251 = vector.broadcast %cst_72 : f32 to vector<16x1xf32>
    %252 = arith.addf %248, %251 : vector<16x1xf32>
    %253 = math.rsqrt %252 : vector<16x1xf32>
    %254 = vector.broadcast %253 : vector<16x1xf32> to vector<16x256xf32>
    %255 = arith.mulf %250, %254 : vector<16x256xf32>
    %256 = vector.broadcast %236 : vector<1x256xf32> to vector<16x256xf32>
    %257 = arith.mulf %255, %256 : vector<16x256xf32>
    %258 = vector.broadcast %237 : vector<1x256xf32> to vector<16x256xf32>
    %259 = arith.addf %257, %258 : vector<16x256xf32>
    %260 = arith.truncf %259 : vector<16x256xf32> to vector<16x256xbf16>
    %c0_73 = arith.constant 0 : index
    %c0_74 = arith.constant 0 : index
    %c0_75 = arith.constant 0 : index
    %261 = vector.load %arg10[%c0_73, %c0_74, %c0_75] : memref<1x256x512xbf16, #tpu.memory_space<vmem>>, vector<1x256x512xbf16>
    %262 = vector.shape_cast %261 : vector<1x256x512xbf16> to vector<256x512xbf16>
    %cst_76 = arith.constant dense<0.000000e+00> : vector<16x512xf32>
    %263 = tpu.matmul %260, %262, %cst_76 {dimension_numbers = #tpu.dot_dimension_numbers<[1], [0], [0], [1], [0, 0, 1, 1], [], []>} : vector<16x256xbf16>, vector<256x512xbf16>, vector<16x512xf32> -> vector<16x512xf32>
    %c0_77 = arith.constant 0 : index
    %c0_78 = arith.constant 0 : index
    %c0_79 = arith.constant 0 : index
    %264 = vector.load %arg11[%c0_77, %c0_78, %c0_79] : memref<1x1x512xf32, #tpu.memory_space<vmem>>, vector<1x1x512xf32>
    %265 = vector.shape_cast %264 : vector<1x1x512xf32> to vector<1x512xf32>
    %266 = vector.broadcast %265 : vector<1x512xf32> to vector<16x512xf32>
    %267 = arith.addf %263, %266 : vector<16x512xf32>
    %cst_80 = arith.constant 5.000000e-01 : f32
    %268 = vector.broadcast %cst_80 : f32 to vector<16x512xf32>
    %269 = arith.mulf %268, %267 : vector<16x512xf32>
    %cst_81 = arith.constant 0.707106769 : f32
    %270 = vector.broadcast %cst_81 : f32 to vector<16x512xf32>
    %271 = arith.mulf %267, %270 : vector<16x512xf32>
    %272 = math.erf %271 : vector<16x512xf32>
    %cst_82 = arith.constant 1.000000e+00 : f32
    %273 = vector.broadcast %cst_82 : f32 to vector<16x512xf32>
    %274 = arith.addf %273, %272 : vector<16x512xf32>
    %275 = arith.mulf %269, %274 : vector<16x512xf32>
    %276 = arith.truncf %275 : vector<16x512xf32> to vector<16x512xbf16>
    %c0_83 = arith.constant 0 : index
    %c0_84 = arith.constant 0 : index
    %c0_85 = arith.constant 0 : index
    %277 = vector.load %arg12[%c0_83, %c0_84, %c0_85] : memref<1x512x256xbf16, #tpu.memory_space<vmem>>, vector<1x512x256xbf16>
    %278 = vector.shape_cast %277 : vector<1x512x256xbf16> to vector<512x256xbf16>
    %cst_86 = arith.constant dense<0.000000e+00> : vector<16x256xf32>
    %279 = tpu.matmul %276, %278, %cst_86 {dimension_numbers = #tpu.dot_dimension_numbers<[1], [0], [0], [1], [0, 0, 1, 1], [], []>} : vector<16x512xbf16>, vector<512x256xbf16>, vector<16x256xf32> -> vector<16x256xf32>
    %c0_87 = arith.constant 0 : index
    %c0_88 = arith.constant 0 : index
    %c0_89 = arith.constant 0 : index
    %280 = vector.load %arg13[%c0_87, %c0_88, %c0_89] : memref<1x1x256xf32, #tpu.memory_space<vmem>>, vector<1x1x256xf32>
    %281 = vector.shape_cast %280 : vector<1x1x256xf32> to vector<1x256xf32>
    %282 = vector.broadcast %281 : vector<1x256xf32> to vector<16x256xf32>
    %283 = arith.addf %279, %282 : vector<16x256xf32>
    %284 = arith.addf %233, %283 : vector<16x256xf32>
    %c0_90 = arith.constant 0 : index
    %c0_91 = arith.constant 0 : index
    %285 = vector.load %arg18[%c0_90, %c0_91] : memref<16x256xf32, #tpu.memory_space<vmem>>, vector<16x256xf32>
    tpu.vector_store %arg18[%c0_90, %c0_91], %284 {strides = array<i32>} : memref<16x256xf32, #tpu.memory_space<vmem>>, vector<16x256xf32>,
    %c6_i32 = arith.constant 6 : i32
    %286 = arith.cmpi eq, %arg0, %c6_i32 : i32
    %287 = arith.extui %286 : i1 to i32
    %c0_i32_92 = arith.constant 0 : i32
    %288 = arith.cmpi ne, %287, %c0_i32_92 : i32
    scf.if %288 {
      %c0_93 = arith.constant 0 : index
      %c0_94 = arith.constant 0 : index
      %289 = vector.load %arg14[%c0_93, %c0_94] : memref<2x256xf32, #tpu.memory_space<vmem>>, vector<1x256xf32>
      %c1 = arith.constant 1 : index
      %c0_95 = arith.constant 0 : index
      %290 = vector.load %arg14[%c1, %c0_95] : memref<2x256xf32, #tpu.memory_space<vmem>>, vector<1x256xf32>
      %cst_96 = arith.constant dense<0.000000e+00> : vector<16xf32>
      %291 = vector.multi_reduction <add>, %284, %cst_96 [1] : vector<16x256xf32> to vector<16xf32>
      %292 = vector.shape_cast %291 : vector<16xf32> to vector<16x1xf32>
      %cst_97 = arith.constant 2.560000e+02 : f32
      %293 = vector.broadcast %cst_97 : f32 to vector<16x1xf32>
      %294 = arith.divf %292, %293 : vector<16x1xf32>
      %295 = vector.broadcast %294 : vector<16x1xf32> to vector<16x256xf32>
      %296 = arith.subf %284, %295 : vector<16x256xf32>
      %297 = arith.mulf %296, %296 : vector<16x256xf32>
      %cst_98 = arith.constant dense<0.000000e+00> : vector<16xf32>
      %298 = vector.multi_reduction <add>, %297, %cst_98 [1] : vector<16x256xf32> to vector<16xf32>
      %299 = vector.shape_cast %298 : vector<16xf32> to vector<16x1xf32>
      %cst_99 = arith.constant 2.560000e+02 : f32
      %300 = vector.broadcast %cst_99 : f32 to vector<16x1xf32>
      %301 = arith.divf %299, %300 : vector<16x1xf32>
      %302 = vector.broadcast %294 : vector<16x1xf32> to vector<16x256xf32>
      %303 = arith.subf %284, %302 : vector<16x256xf32>
      %cst_100 = arith.constant 9.99999996E-13 : f32
      %304 = vector.broadcast %cst_100 : f32 to vector<16x1xf32>
      %305 = arith.addf %301, %304 : vector<16x1xf32>
      %306 = math.rsqrt %305 : vector<16x1xf32>
      %307 = vector.broadcast %306 : vector<16x1xf32> to vector<16x256xf32>
      %308 = arith.mulf %303, %307 : vector<16x256xf32>
      %309 = vector.broadcast %289 : vector<1x256xf32> to vector<16x256xf32>
      %310 = arith.mulf %308, %309 : vector<16x256xf32>
      %311 = vector.broadcast %290 : vector<1x256xf32> to vector<16x256xf32>
      %312 = arith.addf %310, %311 : vector<16x256xf32>
      %313 = arith.truncf %312 : vector<16x256xf32> to vector<16x256xbf16>
      %c0_101 = arith.constant 0 : index
      %c0_102 = arith.constant 0 : index
      %314 = vector.load %arg15[%c0_101, %c0_102] : memref<256x256xbf16, #tpu.memory_space<vmem>>, vector<256x256xbf16>
      %cst_103 = arith.constant dense<0.000000e+00> : vector<16x256xf32>
      %315 = tpu.matmul %313, %314, %cst_103 {dimension_numbers = #tpu.dot_dimension_numbers<[1], [0], [0], [1], [0, 0, 1, 1], [], []>} : vector<16x256xbf16>, vector<256x256xbf16>, vector<16x256xf32> -> vector<16x256xf32>
      %c0_104 = arith.constant 0 : index
      %c0_105 = arith.constant 0 : index
      %316 = vector.load %arg16[%c0_104, %c0_105] : memref<1x256xf32, #tpu.memory_space<vmem>>, vector<1x256xf32>
      %317 = vector.broadcast %316 : vector<1x256xf32> to vector<16x256xf32>
      %318 = arith.addf %315, %317 : vector<16x256xf32>
      %319 = math.tanh %318 : vector<16x256xf32>
      %c0_106 = arith.constant 0 : index
      %c0_107 = arith.constant 0 : index
      %320 = vector.load %arg17[%c0_106, %c0_107] : memref<16x256xf32, #tpu.memory_space<vmem>>, vector<16x256xf32>
      tpu.vector_store %arg17[%c0_106, %c0_107], %319 {strides = array<i32>} : memref<16x256xf32, #tpu.memory_space<vmem>>, vector<16x256xf32>,
    } else {
    }
    return
  }
  func.func @transform_0(%arg0: i32) -> (i32, i32) {
    %c0_i32 = arith.constant 0 : i32
    %c0_i32_0 = arith.constant 0 : i32
    %c0_i32_1 = arith.constant 0 : i32
    return %c0_i32, %c0_i32_0 : i32, i32
  }
  func.func @transform_1(%arg0: i32) -> (i32, i32) {
    %c0_i32 = arith.constant 0 : i32
    %c0_i32_0 = arith.constant 0 : i32
    %c0_i32_1 = arith.constant 0 : i32
    return %c0_i32, %c0_i32_0 : i32, i32
  }
  func.func @transform_2(%arg0: i32) -> (i32, i32) {
    %c0_i32 = arith.constant 0 : i32
    %c0_i32_0 = arith.constant 0 : i32
    %c0_i32_1 = arith.constant 0 : i32
    return %c0_i32, %c0_i32_0 : i32, i32
  }
  func.func @transform_3(%arg0: i32) -> (i32, i32, i32) {
    %c0_i32 = arith.constant 0 : i32
    %c0_i32_0 = arith.constant 0 : i32
    %c0_i32_1 = arith.constant 0 : i32
    return %arg0, %c0_i32, %c0_i32_0 : i32, i32, i32
  }
  func.func @transform_4(%arg0: i32) -> (i32, i32, i32) {
    %c0_i32 = arith.constant 0 : i32
    %c0_i32_0 = arith.constant 0 : i32
    %c0_i32_1 = arith.constant 0 : i32
    return %arg0, %c0_i32, %c0_i32_0 : i32, i32, i32
  }
  func.func @transform_5(%arg0: i32) -> (i32, i32, i32) {
    %c0_i32 = arith.constant 0 : i32
    %c0_i32_0 = arith.constant 0 : i32
    %c0_i32_1 = arith.constant 0 : i32
    return %arg0, %c0_i32, %c0_i32_0 : i32, i32, i32
  }
  func.func @transform_6(%arg0: i32) -> (i32, i32, i32) {
    %c0_i32 = arith.constant 0 : i32
    %c0_i32_0 = arith.constant 0 : i32
    %c0_i32_1 = arith.constant 0 : i32
    return %arg0, %c0_i32, %c0_i32_0 : i32, i32, i32
  }
  func.func @transform_7(%arg0: i32) -> (i32, i32, i32) {
    %c0_i32 = arith.constant 0 : i32
    %c0_i32_0 = arith.constant 0 : i32
    %c0_i32_1 = arith.constant 0 : i32
    return %arg0, %c0_i32, %c0_i32_0 : i32, i32, i32
  }
  func.func @transform_8(%arg0: i32) -> (i32, i32, i32) {
    %c0_i32 = arith.constant 0 : i32
    %c0_i32_0 = arith.constant 0 : i32
    %c0_i32_1 = arith.constant 0 : i32
    return %arg0, %c0_i32, %c0_i32_0 : i32, i32, i32
  }
  func.func @transform_9(%arg0: i32) -> (i32, i32, i32) {
    %c0_i32 = arith.constant 0 : i32
    %c0_i32_0 = arith.constant 0 : i32
    %c0_i32_1 = arith.constant 0 : i32
    return %arg0, %c0_i32, %c0_i32_0 : i32, i32, i32
  }
  func.func @transform_10(%arg0: i32) -> (i32, i32, i32) {
    %c0_i32 = arith.constant 0 : i32
    %c0_i32_0 = arith.constant 0 : i32
    %c0_i32_1 = arith.constant 0 : i32
    return %arg0, %c0_i32, %c0_i32_0 : i32, i32, i32
  }
  func.func @transform_11(%arg0: i32) -> (i32, i32, i32) {
    %c0_i32 = arith.constant 0 : i32
    %c0_i32_0 = arith.constant 0 : i32
    %c0_i32_1 = arith.constant 0 : i32
    return %arg0, %c0_i32, %c0_i32_0 : i32, i32, i32
  }
  func.func @transform_12(%arg0: i32) -> (i32, i32, i32) {
    %c0_i32 = arith.constant 0 : i32
    %c0_i32_0 = arith.constant 0 : i32
    %c0_i32_1 = arith.constant 0 : i32
    return %arg0, %c0_i32, %c0_i32_0 : i32, i32, i32
  }
  func.func @transform_13(%arg0: i32) -> (i32, i32) {
    %c0_i32 = arith.constant 0 : i32
    %c0_i32_0 = arith.constant 0 : i32
    %c0_i32_1 = arith.constant 0 : i32
    return %c0_i32, %c0_i32_0 : i32, i32
  }
  func.func @transform_14(%arg0: i32) -> (i32, i32) {
    %c0_i32 = arith.constant 0 : i32
    %c0_i32_0 = arith.constant 0 : i32
    %c0_i32_1 = arith.constant 0 : i32
    return %c0_i32, %c0_i32_0 : i32, i32
  }
  func.func @transform_15(%arg0: i32) -> (i32, i32) {
    %c0_i32 = arith.constant 0 : i32
    %c0_i32_0 = arith.constant 0 : i32
    %c0_i32_1 = arith.constant 0 : i32
    return %c0_i32, %c0_i32_0 : i32, i32
  }
  func.func @transform_16(%arg0: i32) -> (i32, i32) {
    %c0_i32 = arith.constant 0 : i32
    %c0_i32_0 = arith.constant 0 : i32
    %c0_i32_1 = arith.constant 0 : i32
    return %c0_i32, %c0_i32_0 : i32, i32
  }
}

</mosaic_0001>

<llo_original>
// kernel: encoder_forward.1
$region0: #{encoder_forward.1}
  #allocation0 [shape = 'u32[]', space=smem, size = 0x4, offset = 0x4, fixed_abs, tag = 'smem constant byte address 0x4 - core index']
  #allocation1 [shape = 'u32[144,128]{1,0:T(1,128)}', space=vmem, size = 0x12000, scoped, tag = 'internal scratch']
  #allocation2 [shape = 'f32[16,256]{1,0:T(8,128)}', space=vmem, size = 0x4000, scoped, tag = 'scratch operand']
  %s0 = inlined_call_operand.vmem [shape: f32[16,256], index: 0, kind: input, shape index: {}]
  %s1 = inlined_call_operand.vmem [shape: f32[16,256], index: 1, kind: input, shape index: {}]
  %s2 = inlined_call_operand.hbm [shape: bf16[256,256], index: 2, kind: input, shape index: {}]
  %s3 = inlined_call_operand.hbm [shape: f32[7,2,256], index: 3, kind: input, shape index: {}]
  %s4 = inlined_call_operand.hbm [shape: bf16[7,256,768], index: 4, kind: input, shape index: {}]
  %s5 = inlined_call_operand.hbm [shape: f32[7,1,768], index: 5, kind: input, shape index: {}]
  %s6 = inlined_call_operand.hbm [shape: bf16[7,256,256], index: 6, kind: input, shape index: {}]
  %s7 = inlined_call_operand.hbm [shape: f32[7,1,256], index: 7, kind: input, shape index: {}]
  %s8 = inlined_call_operand.hbm [shape: f32[7,2,256], index: 8, kind: input, shape index: {}]
  %s9 = inlined_call_operand.hbm [shape: bf16[7,256,512], index: 9, kind: input, shape index: {}]
  %s10 = inlined_call_operand.hbm [shape: f32[7,1,512], index: 10, kind: input, shape index: {}]
  %s11 = inlined_call_operand.hbm [shape: bf16[7,512,256], index: 11, kind: input, shape index: {}]
  %s12 = inlined_call_operand.hbm [shape: f32[7,1,256], index: 12, kind: input, shape index: {}]
  %s13 = inlined_call_operand.hbm [shape: f32[2,256], index: 13, kind: input, shape index: {}]
  %s14 = inlined_call_operand.hbm [shape: bf16[256,256], index: 14, kind: input, shape index: {}]
  %s15 = inlined_call_operand.hbm [shape: f32[1,256], index: 15, kind: input, shape index: {}]
  %s16 = inlined_call_operand.vmem [shape: f32[16,256], index: 16, kind: output, shape index: {}]
  %s17 = sld [smem:[#allocation0]]
  $region161: #{encoder_forward.1} parent=0
    _
  %s19 = ssub.s32 1, %s17
  %s20 = scalar_select 0, %s19, %s17
  $region1: #{encoder_forward.1} parent=0
    #allocation3 [shape = 'u8[131072]{0}', space=vmem, size = 0x20000, scoped, tag = 'input window, operand 2, single buffered']
    #allocation4 [shape = 's32[2]{0}', space=sflag, size = 0x8, scoped, tag = 'scoped memory for encoder_forward.1']
    #allocation5 [shape = 'u8[4096]{0}', space=vmem, size = 0x1000, scoped, tag = 'input window, operand 3']
    #allocation6 [shape = 's32[2]{0}', space=sflag, size = 0x8, scoped, tag = 'scoped memory for encoder_forward.1']
    #allocation7 [shape = 'u8[786432]{0}', space=vmem, size = 0xc0000, scoped, tag = 'input window, operand 4']
    #allocation8 [shape = 'u8[6144]{0}', space=vmem, size = 0x1800, scoped, tag = 'input window, operand 5']
    #allocation9 [shape = 's32[2]{0}', space=sflag, size = 0x8, scoped, tag = 'scoped memory for encoder_forward.1']
    #allocation10 [shape = 'u8[262144]{0}', space=vmem, size = 0x40000, scoped, tag = 'input window, operand 6']
    #allocation11 [shape = 'u8[2048]{0}', space=vmem, size = 0x800, scoped, tag = 'input window, operand 7']
    #allocation12 [shape = 's32[2]{0}', space=sflag, size = 0x8, scoped, tag = 'scoped memory for encoder_forward.1']
    #allocation13 [shape = 'u8[4096]{0}', space=vmem, size = 0x1000, scoped, tag = 'input window, operand 8']
    #allocation14 [shape = 'u8[524288]{0}', space=vmem, size = 0x80000, scoped, tag = 'input window, operand 9']
    #allocation15 [shape = 's32[2]{0}', space=sflag, size = 0x8, scoped, tag = 'scoped memory for encoder_forward.1']
    #allocation16 [shape = 'u8[4096]{0}', space=vmem, size = 0x1000, scoped, tag = 'input window, operand 10']
    #allocation17 [shape = 'u8[524288]{0}', space=vmem, size = 0x80000, scoped, tag = 'input window, operand 11']
    #allocation18 [shape = 's32[2]{0}', space=sflag, size = 0x8, scoped, tag = 'scoped memory for encoder_forward.1']
    #allocation19 [shape = 'u8[2048]{0}', space=vmem, size = 0x800, scoped, tag = 'input window, operand 12']
    #allocation20 [shape = 'u8[2048]{0}', space=vmem, size = 0x800, scoped, tag = 'input window, operand 13, single buffered']
    #allocation21 [shape = 's32[1]{0}', space=sflag, size = 0x4, scoped, tag = 'scoped memory for encoder_forward.1']
    #allocation22 [shape = 'u8[131072]{0}', space=vmem, size = 0x20000, scoped, tag = 'input window, operand 14, single buffered']
    #allocation23 [shape = 'u8[1024]{0}', space=vmem, size = 0x400, scoped, tag = 'input window, operand 15, single buffered']
    #allocation24 [shape = 's32[1]{0}', space=sflag, size = 0x4, scoped, tag = 'scoped memory for encoder_forward.1']
    %21 = vsyncpa [#allocation4], 0
    %22 = vsyncpa [#allocation6], 0
    %s23 = scalar_lea.sflag [#allocation6], 1
    %24 = vsyncpa %s23, 0
    %25 = vsyncpa [#allocation9], 0
    %s26 = scalar_lea.sflag [#allocation9], 1
    %27 = vsyncpa %s26, 0
    %28 = vsyncpa [#allocation12], 0
    %s29 = scalar_lea.sflag [#allocation12], 1
    %30 = vsyncpa %s29, 0
    %31 = vsyncpa [#allocation15], 0
    %s32 = scalar_lea.sflag [#allocation15], 1
    %33 = vsyncpa %s32, 0
    %34 = vsyncpa [#allocation18], 0
    %s35 = scalar_lea.sflag [#allocation18], 1
    %36 = vsyncpa %s35, 0
    %37 = vsyncpa [#allocation21], 0
    %38 = vsyncpa [#allocation24], 0
    loop: start=0, step=1, limit=9
    $region2: #{encoder_forward.1} parent=1 // loop_pre_header
      _
    $region3: #{encoder_forward.1} parent=1 // loop_header
      %s40 = sphi 0, %s44
      %p41 = scmp.ge.s32.totalorder %s40, 9
      %s48 = sphi 0, %s48
      %s50 = sphi 0, %s48
      %s51 = sphi 0, %s50
      %s65 = sphi 0, %s51
      %s69 = sphi 0, %s69
      %s71 = sphi 0, %s69
      %s72 = sphi 0, %s71
      %s86 = sphi 0, %s72
      %s90 = sphi 0, %s90
      %s92 = sphi 0, %s90
      %s93 = sphi 0, %s92
      %s107 = sphi 0, %s93
      %s113 = sphi 0, %s115
      %s116 = sphi 0, %s113
      %s117 = sphi 0, %s116
      %s133 = sphi 0, %s117
      %s139 = sphi 0, %s141
      %s142 = sphi 0, %s139
      %s143 = sphi 0, %s142
      %s159 = sphi 0, %s143
      %s165 = sphi 0, %s167
      %s168 = sphi 0, %s165
      %s169 = sphi 0, %s168
      %s185 = sphi 0, %s169
      %s191 = sphi 0, %s193
      %s194 = sphi 0, %s191
      %s195 = sphi 0, %s194
      %s211 = sphi 0, %s195
      %s217 = sphi 0, %s219
      %s220 = sphi 0, %s217
      %s221 = sphi 0, %s220
      %s237 = sphi 0, %s221
      %s243 = sphi 0, %s245
      %s246 = sphi 0, %s243
      %s247 = sphi 0, %s246
      %s263 = sphi 0, %s247
      %s269 = sphi 0, %s271
      %s272 = sphi 0, %s269
      %s273 = sphi 0, %s272
      %s289 = sphi 0, %s273
      %s295 = sphi 0, %s297
      %s298 = sphi 0, %s295
      %s299 = sphi 0, %s298
      %s315 = sphi 0, %s299
      %s321 = sphi 0, %s323
      %s324 = sphi 0, %s321
      %s325 = sphi 0, %s324
      %s341 = sphi 0, %s325
      %s347 = sphi 0, %s349
      %s350 = sphi 0, %s347
      %s351 = sphi 0, %s350
      %s367 = sphi 0, %s351
      %s371 = sphi 0, %s371
      %s373 = sphi 0, %s371
      %s374 = sphi 0, %s373
      %s388 = sphi 0, %s374
      %s392 = sphi 0, %s392
      %s394 = sphi 0, %s392
      %s395 = sphi 0, %s394
      %s409 = sphi 0, %s395
      %s413 = sphi 0, %s413
      %s415 = sphi 0, %s413
      %s416 = sphi 0, %s415
      %s430 = sphi 0, %s416
      %s434 = sphi 0, %s434
      %s436 = sphi 0, %s434
      %s437 = sphi 0, %s436
      %s451 = sphi 0, %s437
    $region4: #{encoder_forward.1} parent=1 // loop_header_branch
      %43 = sbr.rel (%p41) target = $region8
    $region5: #{encoder_forward.1} parent=1 // loop_body
      %s45 = ssub.s32 %s40, 1
      %s46 = ssub.s32 %s40, 2
      %s47 = sadd.s32 %s40, 1
      %s49 = sadd.s32 %s48, 1
      %p52 = scmp.eq.s32.totalorder %s40, 6
      %p53 = scmp.ne.s32.totalorder %s48, %s50
      %p54 = scmp.eq.s32.totalorder %s40, 0
      %p55 = por %p53, %p54
      %p56 = scmp.ne.s32.totalorder %s48, %s50
      %p57 = scmp.eq.s32.totalorder %s45, 6
      %p58 = por %p56, %p57
      %p59 = scmp.ne.s32.totalorder %s50, %s51
      %p60 = scmp.eq.s32.totalorder %s45, 0
      %p61 = por %p59, %p60
      %p62 = scmp.ne.s32.totalorder %s50, %s51
      %p63 = scmp.eq.s32.totalorder %s46, 6
      %p64 = por %p62, %p63
      %p66 = scmp.ne.s32.totalorder %s51, %s65
      %p67 = scmp.eq.s32.totalorder %s46, 0
      %p68 = por %p66, %p67
      %s70 = sadd.s32 %s69, 1
      %p73 = scmp.eq.s32.totalorder %s40, 6
      %p74 = scmp.ne.s32.totalorder %s69, %s71
      %p75 = scmp.eq.s32.totalorder %s40, 0
      %p76 = por %p74, %p75
      %p77 = scmp.ne.s32.totalorder %s69, %s71
      %p78 = scmp.eq.s32.totalorder %s45, 6
      %p79 = por %p77, %p78
      %p80 = scmp.ne.s32.totalorder %s71, %s72
      %p81 = scmp.eq.s32.totalorder %s45, 0
      %p82 = por %p80, %p81
      %p83 = scmp.ne.s32.totalorder %s71, %s72
      %p84 = scmp.eq.s32.totalorder %s46, 6
      %p85 = por %p83, %p84
      %p87 = scmp.ne.s32.totalorder %s72, %s86
      %p88 = scmp.eq.s32.totalorder %s46, 0
      %p89 = por %p87, %p88
      %s91 = sadd.s32 %s90, 1
      %p94 = scmp.eq.s32.totalorder %s40, 6
      %p95 = scmp.ne.s32.totalorder %s90, %s92
      %p96 = scmp.eq.s32.totalorder %s40, 0
      %p97 = por %p95, %p96
      %p98 = scmp.ne.s32.totalorder %s90, %s92
      %p99 = scmp.eq.s32.totalorder %s45, 6
      %p100 = por %p98, %p99
      %p101 = scmp.ne.s32.totalorder %s92, %s93
      %p102 = scmp.eq.s32.totalorder %s45, 0
      %p103 = por %p101, %p102
      %p104 = scmp.ne.s32.totalorder %s92, %s93
      %p105 = scmp.eq.s32.totalorder %s46, 6
      %p106 = por %p104, %p105
      %p108 = scmp.ne.s32.totalorder %s93, %s107
      %p109 = scmp.eq.s32.totalorder %s46, 0
      %p110 = por %p108, %p109
      %s111 = ssub.s32 %s40, %s47
      %p112 = scmp.eq.s32.totalorder %s111, 0
      %s114 = sadd.s32 %s113, 1
      %s115 = scalar_select %p112, %s113, %s114
      %p118 = pneg %p112
      %p119 = scmp.eq.s32.totalorder %s40, 6
      %p120 = por %p118, %p119
      %p121 = scmp.ne.s32.totalorder %s113, %s116
      %p122 = scmp.eq.s32.totalorder %s40, 0
      %p123 = por %p121, %p122
      %p124 = scmp.ne.s32.totalorder %s113, %s116
      %p125 = scmp.eq.s32.totalorder %s45, 6
      %p126 = por %p124, %p125
      %p127 = scmp.ne.s32.totalorder %s116, %s117
      %p128 = scmp.eq.s32.totalorder %s45, 0
      %p129 = por %p127, %p128
      %p130 = scmp.ne.s32.totalorder %s116, %s117
      %p131 = scmp.eq.s32.totalorder %s46, 6
      %p132 = por %p130, %p131
      %p134 = scmp.ne.s32.totalorder %s117, %s133
      %p135 = scmp.eq.s32.totalorder %s46, 0
      %p136 = por %p134, %p135
      %s137 = ssub.s32 %s40, %s47
      %p138 = scmp.eq.s32.totalorder %s137, 0
      %s140 = sadd.s32 %s139, 1
      %s141 = scalar_select %p138, %s139, %s140
      %p144 = pneg %p138
      %p145 = scmp.eq.s32.totalorder %s40, 6
      %p146 = por %p144, %p145
      %p147 = scmp.ne.s32.totalorder %s139, %s142
      %p148 = scmp.eq.s32.totalorder %s40, 0
      %p149 = por %p147, %p148
      %p150 = scmp.ne.s32.totalorder %s139, %s142
      %p151 = scmp.eq.s32.totalorder %s45, 6
      %p152 = por %p150, %p151
      %p153 = scmp.ne.s32.totalorder %s142, %s143
      %p154 = scmp.eq.s32.totalorder %s45, 0
      %p155 = por %p153, %p154
      %p156 = scmp.ne.s32.totalorder %s142, %s143
      %p157 = scmp.eq.s32.totalorder %s46, 6
      %p158 = por %p156, %p157
      %p160 = scmp.ne.s32.totalorder %s143, %s159
      %p161 = scmp.eq.s32.totalorder %s46, 0
      %p162 = por %p160, %p161
      %s163 = ssub.s32 %s40, %s47
      %p164 = scmp.eq.s32.totalorder %s163, 0
      %s166 = sadd.s32 %s165, 1
      %s167 = scalar_select %p164, %s165, %s166
      %p170 = pneg %p164
      %p171 = scmp.eq.s32.totalorder %s40, 6
      %p172 = por %p170, %p171
      %p173 = scmp.ne.s32.totalorder %s165, %s168
      %p174 = scmp.eq.s32.totalorder %s40, 0
      %p175 = por %p173, %p174
      %p176 = scmp.ne.s32.totalorder %s165, %s168
      %p177 = scmp.eq.s32.totalorder %s45, 6
      %p178 = por %p176, %p177
      %p179 = scmp.ne.s32.totalorder %s168, %s169
      %p180 = scmp.eq.s32.totalorder %s45, 0
      %p181 = por %p179, %p180
      %p182 = scmp.ne.s32.totalorder %s168, %s169
      %p183 = scmp.eq.s32.totalorder %s46, 6
      %p184 = por %p182, %p183
      %p186 = scmp.ne.s32.totalorder %s169, %s185
      %p187 = scmp.eq.s32.totalorder %s46, 0
      %p188 = por %p186, %p187
      %s189 = ssub.s32 %s40, %s47
      %p190 = scmp.eq.s32.totalorder %s189, 0
      %s192 = sadd.s32 %s191, 1
      %s193 = scalar_select %p190, %s191, %s192
      %p196 = pneg %p190
      %p197 = scmp.eq.s32.totalorder %s40, 6
      %p198 = por %p196, %p197
      %p199 = scmp.ne.s32.totalorder %s191, %s194
      %p200 = scmp.eq.s32.totalorder %s40, 0
      %p201 = por %p199, %p200
      %p202 = scmp.ne.s32.totalorder %s191, %s194
      %p203 = scmp.eq.s32.totalorder %s45, 6
      %p204 = por %p202, %p203
      %p205 = scmp.ne.s32.totalorder %s194, %s195
      %p206 = scmp.eq.s32.totalorder %s45, 0
      %p207 = por %p205, %p206
      %p208 = scmp.ne.s32.totalorder %s194, %s195
      %p209 = scmp.eq.s32.totalorder %s46, 6
      %p210 = por %p208, %p209
      %p212 = scmp.ne.s32.totalorder %s195, %s211
      %p213 = scmp.eq.s32.totalorder %s46, 0
      %p214 = por %p212, %p213
      %s215 = ssub.s32 %s40, %s47
      %p216 = scmp.eq.s32.totalorder %s215, 0
      %s218 = sadd.s32 %s217, 1
      %s219 = scalar_select %p216, %s217, %s218
      %p222 = pneg %p216
      %p223 = scmp.eq.s32.totalorder %s40, 6
      %p224 = por %p222, %p223
      %p225 = scmp.ne.s32.totalorder %s217, %s220
      %p226 = scmp.eq.s32.totalorder %s40, 0
      %p227 = por %p225, %p226
      %p228 = scmp.ne.s32.totalorder %s217, %s220
      %p229 = scmp.eq.s32.totalorder %s45, 6
      %p230 = por %p228, %p229
      %p231 = scmp.ne.s32.totalorder %s220, %s221
      %p232 = scmp.eq.s32.totalorder %s45, 0
      %p233 = por %p231, %p232
      %p234 = scmp.ne.s32.totalorder %s220, %s221
      %p235 = scmp.eq.s32.totalorder %s46, 6
      %p236 = por %p234, %p235
      %p238 = scmp.ne.s32.totalorder %s221, %s237
      %p239 = scmp.eq.s32.totalorder %s46, 0
      %p240 = por %p238, %p239
      %s241 = ssub.s32 %s40, %s47
      %p242 = scmp.eq.s32.totalorder %s241, 0
      %s244 = sadd.s32 %s243, 1
      %s245 = scalar_select %p242, %s243, %s244
      %p248 = pneg %p242
      %p249 = scmp.eq.s32.totalorder %s40, 6
      %p250 = por %p248, %p249
      %p251 = scmp.ne.s32.totalorder %s243, %s246
      %p252 = scmp.eq.s32.totalorder %s40, 0
      %p253 = por %p251, %p252
      %p254 = scmp.ne.s32.totalorder %s243, %s246
      %p255 = scmp.eq.s32.totalorder %s45, 6
      %p256 = por %p254, %p255
      %p257 = scmp.ne.s32.totalorder %s246, %s247
      %p258 = scmp.eq.s32.totalorder %s45, 0
      %p259 = por %p257, %p258
      %p260 = scmp.ne.s32.totalorder %s246, %s247
      %p261 = scmp.eq.s32.totalorder %s46, 6
      %p262 = por %p260, %p261
      %p264 = scmp.ne.s32.totalorder %s247, %s263
      %p265 = scmp.eq.s32.totalorder %s46, 0
      %p266 = por %p264, %p265
      %s267 = ssub.s32 %s40, %s47
      %p268 = scmp.eq.s32.totalorder %s267, 0
      %s270 = sadd.s32 %s269, 1
      %s271 = scalar_select %p268, %s269, %s270
      %p274 = pneg %p268
      %p275 = scmp.eq.s32.totalorder %s40, 6
      %p276 = por %p274, %p275
      %p277 = scmp.ne.s32.totalorder %s269, %s272
      %p278 = scmp.eq.s32.totalorder %s40, 0
      %p279 = por %p277, %p278
      %p280 = scmp.ne.s32.totalorder %s269, %s272
      %p281 = scmp.eq.s32.totalorder %s45, 6
      %p282 = por %p280, %p281
      %p283 = scmp.ne.s32.totalorder %s272, %s273
      %p284 = scmp.eq.s32.totalorder %s45, 0
      %p285 = por %p283, %p284
      %p286 = scmp.ne.s32.totalorder %s272, %s273
      %p287 = scmp.eq.s32.totalorder %s46, 6
      %p288 = por %p286, %p287
      %p290 = scmp.ne.s32.totalorder %s273, %s289
      %p291 = scmp.eq.s32.totalorder %s46, 0
      %p292 = por %p290, %p291
      %s293 = ssub.s32 %s40, %s47
      %p294 = scmp.eq.s32.totalorder %s293, 0
      %s296 = sadd.s32 %s295, 1
      %s297 = scalar_select %p294, %s295, %s296
      %p300 = pneg %p294
      %p301 = scmp.eq.s32.totalorder %s40, 6
      %p302 = por %p300, %p301
      %p303 = scmp.ne.s32.totalorder %s295, %s298
      %p304 = scmp.eq.s32.totalorder %s40, 0
      %p305 = por %p303, %p304
      %p306 = scmp.ne.s32.totalorder %s295, %s298
      %p307 = scmp.eq.s32.totalorder %s45, 6
      %p308 = por %p306, %p307
      %p309 = scmp.ne.s32.totalorder %s298, %s299
      %p310 = scmp.eq.s32.totalorder %s45, 0
      %p311 = por %p309, %p310
      %p312 = scmp.ne.s32.totalorder %s298, %s299
      %p313 = scmp.eq.s32.totalorder %s46, 6
      %p314 = por %p312, %p313
      %p316 = scmp.ne.s32.totalorder %s299, %s315
      %p317 = scmp.eq.s32.totalorder %s46, 0
      %p318 = por %p316, %p317
      %s319 = ssub.s32 %s40, %s47
      %p320 = scmp.eq.s32.totalorder %s319, 0
      %s322 = sadd.s32 %s321, 1
      %s323 = scalar_select %p320, %s321, %s322
      %p326 = pneg %p320
      %p327 = scmp.eq.s32.totalorder %s40, 6
      %p328 = por %p326, %p327
      %p329 = scmp.ne.s32.totalorder %s321, %s324
      %p330 = scmp.eq.s32.totalorder %s40, 0
      %p331 = por %p329, %p330
      %p332 = scmp.ne.s32.totalorder %s321, %s324
      %p333 = scmp.eq.s32.totalorder %s45, 6
      %p334 = por %p332, %p333
      %p335 = scmp.ne.s32.totalorder %s324, %s325
      %p336 = scmp.eq.s32.totalorder %s45, 0
      %p337 = por %p335, %p336
      %p338 = scmp.ne.s32.totalorder %s324, %s325
      %p339 = scmp.eq.s32.totalorder %s46, 6
      %p340 = por %p338, %p339
      %p342 = scmp.ne.s32.totalorder %s325, %s341
      %p343 = scmp.eq.s32.totalorder %s46, 0
      %p344 = por %p342, %p343
      %s345 = ssub.s32 %s40, %s47
      %p346 = scmp.eq.s32.totalorder %s345, 0
      %s348 = sadd.s32 %s347, 1
      %s349 = scalar_select %p346, %s347, %s348
      %p352 = pneg %p346
      %p353 = scmp.eq.s32.totalorder %s40, 6
      %p354 = por %p352, %p353
      %p355 = scmp.ne.s32.totalorder %s347, %s350
      %p356 = scmp.eq.s32.totalorder %s40, 0
      %p357 = por %p355, %p356
      %p358 = scmp.ne.s32.totalorder %s347, %s350
      %p359 = scmp.eq.s32.totalorder %s45, 6
      %p360 = por %p358, %p359
      %p361 = scmp.ne.s32.totalorder %s350, %s351
      %p362 = scmp.eq.s32.totalorder %s45, 0
      %p363 = por %p361, %p362
      %p364 = scmp.ne.s32.totalorder %s350, %s351
      %p365 = scmp.eq.s32.totalorder %s46, 6
      %p366 = por %p364, %p365
      %p368 = scmp.ne.s32.totalorder %s351, %s367
      %p369 = scmp.eq.s32.totalorder %s46, 0
      %p370 = por %p368, %p369
      %s372 = sadd.s32 %s371, 1
      %p375 = scmp.eq.s32.totalorder %s40, 6
      %p376 = scmp.ne.s32.totalorder %s371, %s373
      %p377 = scmp.eq.s32.totalorder %s40, 0
      %p378 = por %p376, %p377
      %p379 = scmp.ne.s32.totalorder %s371, %s373
      %p380 = scmp.eq.s32.totalorder %s45, 6
      %p381 = por %p379, %p380
      %p382 = scmp.ne.s32.totalorder %s373, %s374
      %p383 = scmp.eq.s32.totalorder %s45, 0
      %p384 = por %p382, %p383
      %p385 = scmp.ne.s32.totalorder %s373, %s374
      %p386 = scmp.eq.s32.totalorder %s46, 6
      %p387 = por %p385, %p386
      %p389 = scmp.ne.s32.totalorder %s374, %s388
      %p390 = scmp.eq.s32.totalorder %s46, 0
      %p391 = por %p389, %p390
      %s393 = sadd.s32 %s392, 1
      %p396 = scmp.eq.s32.totalorder %s40, 6
      %p397 = scmp.ne.s32.totalorder %s392, %s394
      %p398 = scmp.eq.s32.totalorder %s40, 0
      %p399 = por %p397, %p398
      %p400 = scmp.ne.s32.totalorder %s392, %s394
      %p401 = scmp.eq.s32.totalorder %s45, 6
      %p402 = por %p400, %p401
      %p403 = scmp.ne.s32.totalorder %s394, %s395
      %p404 = scmp.eq.s32.totalorder %s45, 0
      %p405 = por %p403, %p404
      %p406 = scmp.ne.s32.totalorder %s394, %s395
      %p407 = scmp.eq.s32.totalorder %s46, 6
      %p408 = por %p406, %p407
      %p410 = scmp.ne.s32.totalorder %s395, %s409
      %p411 = scmp.eq.s32.totalorder %s46, 0
      %p412 = por %p410, %p411
      %s414 = sadd.s32 %s413, 1
      %p417 = scmp.eq.s32.totalorder %s40, 6
      %p418 = scmp.ne.s32.totalorder %s413, %s415
      %p419 = scmp.eq.s32.totalorder %s40, 0
      %p420 = por %p418, %p419
      %p421 = scmp.ne.s32.totalorder %s413, %s415
      %p422 = scmp.eq.s32.totalorder %s45, 6
      %p423 = por %p421, %p422
      %p424 = scmp.ne.s32.totalorder %s415, %s416
      %p425 = scmp.eq.s32.totalorder %s45, 0
      %p426 = por %p424, %p425
      %p427 = scmp.ne.s32.totalorder %s415, %s416
      %p428 = scmp.eq.s32.totalorder %s46, 6
      %p429 = por %p427, %p428
      %p431 = scmp.ne.s32.totalorder %s416, %s430
      %p432 = scmp.eq.s32.totalorder %s46, 0
      %p433 = por %p431, %p432
      %s435 = sadd.s32 %s434, 1
      %p438 = scmp.eq.s32.totalorder %s40, 6
      %p439 = scmp.ne.s32.totalorder %s434, %s436
      %p440 = scmp.eq.s32.totalorder %s40, 0
      %p441 = por %p439, %p440
      %p442 = scmp.ne.s32.totalorder %s434, %s436
      %p443 = scmp.eq.s32.totalorder %s45, 6
      %p444 = por %p442, %p443
      %p445 = scmp.ne.s32.totalorder %s436, %s437
      %p446 = scmp.eq.s32.totalorder %s45, 0
      %p447 = por %p445, %p446
      %p448 = scmp.ne.s32.totalorder %s436, %s437
      %p449 = scmp.eq.s32.totalorder %s46, 6
      %p450 = por %p448, %p449
      %p452 = scmp.ne.s32.totalorder %s437, %s451
      %p453 = scmp.eq.s32.totalorder %s46, 0
      %p454 = por %p452, %p453
      %p455 = scmp.le.s32.totalorder 1, %s40
      %p456 = scmp.lt.s32.totalorder %s40, 8
      %p457 = pnand %p455, %p456
      %p458 = pneg %p457
      // Predicated region
      $region9: #{encoder_forward.1} parent=5 // pred_check
        _
      $region10: #{encoder_forward.1} parent=5 // pred_check_branch
        %460 = sbr.rel (%p457) target = $region12
      $region11: #{encoder_forward.1} parent=5 // pred_region
        %s461 = ssub.s32 %s40, 1
        // Predicated region
        $region13: #{encoder_forward.1} parent=11 // pred_check
          %p462 = pneg %p61
        $region14: #{encoder_forward.1} parent=11 // pred_check_branch
          %464 = sbr.rel (%p462) target = $region16
        $region15: #{encoder_forward.1} parent=11 // pred_region
          _
        $region16: #{encoder_forward.1} parent=11 // pred_fallthru
          _
        // Predicated region
        $region17: #{encoder_forward.1} parent=11 // pred_check
          %p465 = pneg %p82
        $region18: #{encoder_forward.1} parent=11 // pred_check_branch
          %467 = sbr.rel (%p465) target = $region20
        $region19: #{encoder_forward.1} parent=11 // pred_region
          _
        $region20: #{encoder_forward.1} parent=11 // pred_fallthru
          _
        // Predicated region
        $region21: #{encoder_forward.1} parent=11 // pred_check
          %p468 = pneg %p103
        $region22: #{encoder_forward.1} parent=11 // pred_check_branch
          %470 = sbr.rel (%p468) target = $region24
        $region23: #{encoder_forward.1} parent=11 // pred_region
          %s472 = ssub.s32 4096, 4096
          %473 = vsyncadd [#allocation4], %s472
          %s474 = sshll.u32 [#allocation3], 4
          %s475 = int_to_ptr.vmem [resolvable:$true] %s474
          %480 = dma.hbm_to_vmem [thread:$0]  %s2, 4096, %s475, [#allocation4], 128, 128, 8
        $region24: #{encoder_forward.1} parent=11 // pred_fallthru
          _
        // Predicated region
        $region25: #{encoder_forward.1} parent=11 // pred_check
          %p481 = pneg %p384
        $region26: #{encoder_forward.1} parent=11 // pred_check_branch
          %483 = sbr.rel (%p481) target = $region28
        $region27: #{encoder_forward.1} parent=11 // pred_region
          %s485 = ssub.s32 64, 64
          %486 = vsyncadd [#allocation21], %s485
          %s488 = sshll.u32 [#allocation20], 4
          %s489 = int_to_ptr.vmem [resolvable:$true] %s488
          %491 = dma.hbm_to_vmem [thread:$0]  %s13, 64, %s489, [#allocation21]
        $region28: #{encoder_forward.1} parent=11 // pred_fallthru
          _
        // Predicated region
        $region29: #{encoder_forward.1} parent=11 // pred_check
          %p492 = pneg %p405
        $region30: #{encoder_forward.1} parent=11 // pred_check_branch
          %494 = sbr.rel (%p492) target = $region32
        $region31: #{encoder_forward.1} parent=11 // pred_region
          %s496 = ssub.s32 4096, 4096
          %497 = vsyncadd [#allocation21], %s496
          %s498 = sshll.u32 [#allocation22], 4
          %s499 = int_to_ptr.vmem [resolvable:$true] %s498
          %504 = dma.hbm_to_vmem [thread:$0]  %s14, 4096, %s499, [#allocation21], 128, 128, 8
        $region32: #{encoder_forward.1} parent=11 // pred_fallthru
          _
        // Predicated region
        $region33: #{encoder_forward.1} parent=11 // pred_check
          %p505 = pneg %p426
        $region34: #{encoder_forward.1} parent=11 // pred_check_branch
          %507 = sbr.rel (%p505) target = $region36
        $region35: #{encoder_forward.1} parent=11 // pred_region
          %s509 = ssub.s32 32, 32
          %510 = vsyncadd [#allocation24], %s509
          %s512 = sshll.u32 [#allocation23], 4
          %s513 = int_to_ptr.vmem [resolvable:$true] %s512
          %515 = dma.hbm_to_vmem [thread:$0]  %s15, 32, %s513, [#allocation24]
        $region36: #{encoder_forward.1} parent=11 // pred_fallthru
          _
      $region12: #{encoder_forward.1} parent=5 // pred_fallthru
        _
      %p516 = scmp.lt.s32.totalorder %s40, 7
      // Predicated region
      $region37: #{encoder_forward.1} parent=5 // pred_check
        %p517 = pneg %p516
      $region38: #{encoder_forward.1} parent=5 // pred_check_branch
        %519 = sbr.rel (%p517) target = $region40
      $region39: #{encoder_forward.1} parent=5 // pred_region
        // Predicated region
        $region41: #{encoder_forward.1} parent=39 // pred_check
          %p520 = pneg %p123
        $region42: #{encoder_forward.1} parent=39 // pred_check_branch
          %522 = sbr.rel (%p520) target = $region44
        $region43: #{encoder_forward.1} parent=39 // pred_region
          %s523 = sand.u32 %s40, 1
          %s524 = scalar_lea.sflag [#allocation6], %s523
          %s525 = sand.u32 %s113, 1
          %s526 = smul.addr %s525, 4
          %s527 = scalar_lea.vmem [#allocation5], %s526
          %s529 = ssub.s32 64, 64
          %530 = vsyncadd %s524, %s529
          %s531 = smul.addr %s40, 2
          %s532 = smul.addr %s531, 32
          %s533 = scalar_lea.hbm %s3, %s532
          %s535 = sshll.u32 %s527, 4
          %s536 = int_to_ptr.vmem [resolvable:$true] %s535
          %538 = dma.hbm_to_vmem [thread:$0]  %s533, 64, %s536, %s524
        $region44: #{encoder_forward.1} parent=39 // pred_fallthru
          _
        // Predicated region
        $region45: #{encoder_forward.1} parent=39 // pred_check
          %p539 = pneg %p149
        $region46: #{encoder_forward.1} parent=39 // pred_check_branch
          %541 = sbr.rel (%p539) target = $region48
        $region47: #{encoder_forward.1} parent=39 // pred_region
          %s542 = sand.u32 %s40, 1
          %s543 = scalar_lea.sflag [#allocation6], %s542
          %s544 = sand.u32 %s139, 1
          %s545 = smul.addr %s544, 768
          %s546 = scalar_lea.vmem [#allocation7], %s545
          %s548 = ssub.s32 12288, 12288
          %549 = vsyncadd %s543, %s548
          %s550 = smul.addr %s40, 192
          %s551 = smul.addr %s550, 64
          %s552 = scalar_lea.hbm %s4, %s551
          %s553 = sshll.u32 %s546, 4
          %s554 = int_to_ptr.vmem [resolvable:$true] %s553
          %559 = dma.hbm_to_vmem [thread:$0]  %s552, 12288, %s554, %s543, 384, 384, 24
        $region48: #{encoder_forward.1} parent=39 // pred_fallthru
          _
        // Predicated region
        $region49: #{encoder_forward.1} parent=39 // pred_check
          %p560 = pneg %p175
        $region50: #{encoder_forward.1} parent=39 // pred_check_branch
          %562 = sbr.rel (%p560) target = $region52
        $region51: #{encoder_forward.1} parent=39 // pred_region
          %s563 = sand.u32 %s40, 1
          %s564 = scalar_lea.sflag [#allocation9], %s563
          %s565 = sand.u32 %s165, 1
          %s566 = smul.addr %s565, 6
          %s567 = scalar_lea.vmem [#allocation8], %s566
          %s569 = ssub.s32 96, 96
          %570 = vsyncadd %s564, %s569
          %s571 = smul.addr %s40, 6
          %s572 = smul.addr %s571, 16
          %s573 = scalar_lea.hbm %s5, %s572
          %s575 = sshll.u32 %s567, 4
          %s576 = int_to_ptr.vmem [resolvable:$true] %s575
          %578 = dma.hbm_to_vmem [thread:$0]  %s573, 96, %s576, %s564
        $region52: #{encoder_forward.1} parent=39 // pred_fallthru
          _
        // Predicated region
        $region53: #{encoder_forward.1} parent=39 // pred_check
          %p579 = pneg %p201
        $region54: #{encoder_forward.1} parent=39 // pred_check_branch
          %581 = sbr.rel (%p579) target = $region56
        $region55: #{encoder_forward.1} parent=39 // pred_region
          %s582 = sand.u32 %s40, 1
          %s583 = scalar_lea.sflag [#allocation9], %s582
          %s584 = sand.u32 %s191, 1
          %s585 = smul.addr %s584, 256
          %s586 = scalar_lea.vmem [#allocation10], %s585
          %s588 = ssub.s32 4096, 4096
          %589 = vsyncadd %s583, %s588
          %s590 = smul.addr %s40, 64
          %s591 = smul.addr %s590, 64
          %s592 = scalar_lea.hbm %s6, %s591
          %s593 = sshll.u32 %s586, 4
          %s594 = int_to_ptr.vmem [resolvable:$true] %s593
          %599 = dma.hbm_to_vmem [thread:$0]  %s592, 4096, %s594, %s583, 128, 128, 8
        $region56: #{encoder_forward.1} parent=39 // pred_fallthru
          _
        // Predicated region
        $region57: #{encoder_forward.1} parent=39 // pred_check
          %p600 = pneg %p227
        $region58: #{encoder_forward.1} parent=39 // pred_check_branch
          %602 = sbr.rel (%p600) target = $region60
        $region59: #{encoder_forward.1} parent=39 // pred_region
          %s603 = sand.u32 %s40, 1
          %s604 = scalar_lea.sflag [#allocation12], %s603
          %s605 = sand.u32 %s217, 1
          %s606 = smul.addr %s605, 2
          %s607 = scalar_lea.vmem [#allocation11], %s606
          %s609 = ssub.s32 32, 32
          %610 = vsyncadd %s604, %s609
          %s611 = smul.addr %s40, 2
          %s612 = smul.addr %s611, 16
          %s613 = scalar_lea.hbm %s7, %s612
          %s615 = sshll.u32 %s607, 4
          %s616 = int_to_ptr.vmem [resolvable:$true] %s615
          %618 = dma.hbm_to_vmem [thread:$0]  %s613, 32, %s616, %s604
        $region60: #{encoder_forward.1} parent=39 // pred_fallthru
          _
        // Predicated region
        $region61: #{encoder_forward.1} parent=39 // pred_check
          %p619 = pneg %p253
        $region62: #{encoder_forward.1} parent=39 // pred_check_branch
          %621 = sbr.rel (%p619) target = $region64
        $region63: #{encoder_forward.1} parent=39 // pred_region
          %s622 = sand.u32 %s40, 1
          %s623 = scalar_lea.sflag [#allocation12], %s622
          %s624 = sand.u32 %s243, 1
          %s625 = smul.addr %s624, 4
          %s626 = scalar_lea.vmem [#allocation13], %s625
          %s628 = ssub.s32 64, 64
          %629 = vsyncadd %s623, %s628
          %s630 = smul.addr %s40, 2
          %s631 = smul.addr %s630, 32
          %s632 = scalar_lea.hbm %s8, %s631
          %s634 = sshll.u32 %s626, 4
          %s635 = int_to_ptr.vmem [resolvable:$true] %s634
          %637 = dma.hbm_to_vmem [thread:$0]  %s632, 64, %s635, %s623
        $region64: #{encoder_forward.1} parent=39 // pred_fallthru
          _
        // Predicated region
        $region65: #{encoder_forward.1} parent=39 // pred_check
          %p638 = pneg %p279
        $region66: #{encoder_forward.1} parent=39 // pred_check_branch
          %640 = sbr.rel (%p638) target = $region68
        $region67: #{encoder_forward.1} parent=39 // pred_region
          %s641 = sand.u32 %s40, 1
          %s642 = scalar_lea.sflag [#allocation15], %s641
          %s643 = sand.u32 %s269, 1
          %s644 = smul.addr %s643, 512
          %s645 = scalar_lea.vmem [#allocation14], %s644
          %s647 = ssub.s32 8192, 8192
          %648 = vsyncadd %s642, %s647
          %s649 = smul.addr %s40, 128
          %s650 = smul.addr %s649, 64
          %s651 = scalar_lea.hbm %s9, %s650
          %s652 = sshll.u32 %s645, 4
          %s653 = int_to_ptr.vmem [resolvable:$true] %s652
          %658 = dma.hbm_to_vmem [thread:$0]  %s651, 8192, %s653, %s642, 256, 256, 16
        $region68: #{encoder_forward.1} parent=39 // pred_fallthru
          _
        // Predicated region
        $region69: #{encoder_forward.1} parent=39 // pred_check
          %p659 = pneg %p305
        $region70: #{encoder_forward.1} parent=39 // pred_check_branch
          %661 = sbr.rel (%p659) target = $region72
        $region71: #{encoder_forward.1} parent=39 // pred_region
          %s662 = sand.u32 %s40, 1
          %s663 = scalar_lea.sflag [#allocation15], %s662
          %s664 = sand.u32 %s295, 1
          %s665 = smul.addr %s664, 4
          %s666 = scalar_lea.vmem [#allocation16], %s665
          %s668 = ssub.s32 64, 64
          %669 = vsyncadd %s663, %s668
          %s670 = smul.addr %s40, 4
          %s671 = smul.addr %s670, 16
          %s672 = scalar_lea.hbm %s10, %s671
          %s674 = sshll.u32 %s666, 4
          %s675 = int_to_ptr.vmem [resolvable:$true] %s674
          %677 = dma.hbm_to_vmem [thread:$0]  %s672, 64, %s675, %s663
        $region72: #{encoder_forward.1} parent=39 // pred_fallthru
          _
        // Predicated region
        $region73: #{encoder_forward.1} parent=39 // pred_check
          %p678 = pneg %p331
        $region74: #{encoder_forward.1} parent=39 // pred_check_branch
          %680 = sbr.rel (%p678) target = $region76
        $region75: #{encoder_forward.1} parent=39 // pred_region
          %s681 = sand.u32 %s40, 1
          %s682 = scalar_lea.sflag [#allocation18], %s681
          %s683 = sand.u32 %s321, 1
          %s684 = smul.addr %s683, 512
          %s685 = scalar_lea.vmem [#allocation17], %s684
          %s687 = ssub.s32 8192, 8192
          %688 = vsyncadd %s682, %s687
          %s689 = smul.addr %s40, 128
          %s690 = smul.addr %s689, 64
          %s691 = scalar_lea.hbm %s11, %s690
          %s692 = sshll.u32 %s685, 4
          %s693 = int_to_ptr.vmem [resolvable:$true] %s692
          %698 = dma.hbm_to_vmem [thread:$0]  %s691, 8192, %s693, %s682, 128, 128, 8
        $region76: #{encoder_forward.1} parent=39 // pred_fallthru
          _
        // Predicated region
        $region77: #{encoder_forward.1} parent=39 // pred_check
          %p699 = pneg %p357
        $region78: #{encoder_forward.1} parent=39 // pred_check_branch
          %701 = sbr.rel (%p699) target = $region80
        $region79: #{encoder_forward.1} parent=39 // pred_region
          %s702 = sand.u32 %s40, 1
          %s703 = scalar_lea.sflag [#allocation18], %s702
          %s704 = sand.u32 %s347, 1
          %s705 = smul.addr %s704, 2
          %s706 = scalar_lea.vmem [#allocation19], %s705
          %s708 = ssub.s32 32, 32
          %709 = vsyncadd %s703, %s708
          %s710 = smul.addr %s40, 2
          %s711 = smul.addr %s710, 16
          %s712 = scalar_lea.hbm %s12, %s711
          %s714 = sshll.u32 %s706, 4
          %s715 = int_to_ptr.vmem [resolvable:$true] %s714
          %717 = dma.hbm_to_vmem [thread:$0]  %s712, 32, %s715, %s703
        $region80: #{encoder_forward.1} parent=39 // pred_fallthru
          _
      $region40: #{encoder_forward.1} parent=5 // pred_fallthru
        _
      %p718 = scmp.le.s32.totalorder 1, %s40
      %p719 = scmp.lt.s32.totalorder %s40, 8
      %p720 = pnand %p718, %p719
      %p721 = pneg %p720
      // Predicated region
      $region81: #{encoder_forward.1} parent=5 // pred_check
        _
      $region82: #{encoder_forward.1} parent=5 // pred_check_branch
        %723 = sbr.rel (%p720) target = $region84
      $region83: #{encoder_forward.1} parent=5 // pred_region
        %s724 = ssub.s32 %s40, 1
        // Predicated region
        $region85: #{encoder_forward.1} parent=83 // pred_check
          %p725 = pneg %p103
        $region86: #{encoder_forward.1} parent=83 // pred_check_branch
          %727 = sbr.rel (%p725) target = $region88
        $region87: #{encoder_forward.1} parent=83 // pred_region
          %728 = dma.done [#allocation4], 4096
        $region88: #{encoder_forward.1} parent=83 // pred_fallthru
          _
        %s729 = sand.u32 %s45, 1
        %s730 = scalar_lea.sflag [#allocation6], %s729
        %s731 = sand.u32 %s116, 1
        %s732 = smul.addr %s731, 4
        %s733 = scalar_lea.vmem [#allocation5], %s732
        // Predicated region
        $region89: #{encoder_forward.1} parent=83 // pred_check
          %p734 = pneg %p129
        $region90: #{encoder_forward.1} parent=83 // pred_check_branch
          %736 = sbr.rel (%p734) target = $region92
        $region91: #{encoder_forward.1} parent=83 // pred_region
          %737 = dma.done %s730, 64
        $region92: #{encoder_forward.1} parent=83 // pred_fallthru
          _
        %s738 = sand.u32 %s45, 1
        %s739 = scalar_lea.sflag [#allocation6], %s738
        %s740 = sand.u32 %s142, 1
        %s741 = smul.addr %s740, 768
        %s742 = scalar_lea.vmem [#allocation7], %s741
        // Predicated region
        $region93: #{encoder_forward.1} parent=83 // pred_check
          %p743 = pneg %p155
        $region94: #{encoder_forward.1} parent=83 // pred_check_branch
          %745 = sbr.rel (%p743) target = $region96
        $region95: #{encoder_forward.1} parent=83 // pred_region
          %746 = dma.done %s739, 12288
        $region96: #{encoder_forward.1} parent=83 // pred_fallthru
          _
        %s747 = sand.u32 %s45, 1
        %s748 = scalar_lea.sflag [#allocation9], %s747
        %s749 = sand.u32 %s168, 1
        %s750 = smul.addr %s749, 6
        %s751 = scalar_lea.vmem [#allocation8], %s750
        // Predicated region
        $region97: #{encoder_forward.1} parent=83 // pred_check
          %p752 = pneg %p181
        $region98: #{encoder_forward.1} parent=83 // pred_check_branch
          %754 = sbr.rel (%p752) target = $region100
        $region99: #{encoder_forward.1} parent=83 // pred_region
          %755 = dma.done %s748, 96
        $region100: #{encoder_forward.1} parent=83 // pred_fallthru
          _
        %s756 = sand.u32 %s45, 1
        %s757 = scalar_lea.sflag [#allocation9], %s756
        %s758 = sand.u32 %s194, 1
        %s759 = smul.addr %s758, 256
        %s760 = scalar_lea.vmem [#allocation10], %s759
        // Predicated region
        $region101: #{encoder_forward.1} parent=83 // pred_check
          %p761 = pneg %p207
        $region102: #{encoder_forward.1} parent=83 // pred_check_branch
          %763 = sbr.rel (%p761) target = $region104
        $region103: #{encoder_forward.1} parent=83 // pred_region
          %764 = dma.done %s757, 4096
        $region104: #{encoder_forward.1} parent=83 // pred_fallthru
          _
        %s765 = sand.u32 %s45, 1
        %s766 = scalar_lea.sflag [#allocation12], %s765
        %s767 = sand.u32 %s220, 1
        %s768 = smul.addr %s767, 2
        %s769 = scalar_lea.vmem [#allocation11], %s768
        // Predicated region
        $region105: #{encoder_forward.1} parent=83 // pred_check
          %p770 = pneg %p233
        $region106: #{encoder_forward.1} parent=83 // pred_check_branch
          %772 = sbr.rel (%p770) target = $region108
        $region107: #{encoder_forward.1} parent=83 // pred_region
          %773 = dma.done %s766, 32
        $region108: #{encoder_forward.1} parent=83 // pred_fallthru
          _
        %s774 = sand.u32 %s45, 1
        %s775 = scalar_lea.sflag [#allocation12], %s774
        %s776 = sand.u32 %s246, 1
        %s777 = smul.addr %s776, 4
        %s778 = scalar_lea.vmem [#allocation13], %s777
        // Predicated region
        $region109: #{encoder_forward.1} parent=83 // pred_check
          %p779 = pneg %p259
        $region110: #{encoder_forward.1} parent=83 // pred_check_branch
          %781 = sbr.rel (%p779) target = $region112
        $region111: #{encoder_forward.1} parent=83 // pred_region
          %782 = dma.done %s775, 64
        $region112: #{encoder_forward.1} parent=83 // pred_fallthru
          _
        %s783 = sand.u32 %s45, 1
        %s784 = scalar_lea.sflag [#allocation15], %s783
        %s785 = sand.u32 %s272, 1
        %s786 = smul.addr %s785, 512
        %s787 = scalar_lea.vmem [#allocation14], %s786
        // Predicated region
        $region113: #{encoder_forward.1} parent=83 // pred_check
          %p788 = pneg %p285
        $region114: #{encoder_forward.1} parent=83 // pred_check_branch
          %790 = sbr.rel (%p788) target = $region116
        $region115: #{encoder_forward.1} parent=83 // pred_region
          %791 = dma.done %s784, 8192
        $region116: #{encoder_forward.1} parent=83 // pred_fallthru
          _
        %s792 = sand.u32 %s45, 1
        %s793 = scalar_lea.sflag [#allocation15], %s792
        %s794 = sand.u32 %s298, 1
        %s795 = smul.addr %s794, 4
        %s796 = scalar_lea.vmem [#allocation16], %s795
        // Predicated region
        $region117: #{encoder_forward.1} parent=83 // pred_check
          %p797 = pneg %p311
        $region118: #{encoder_forward.1} parent=83 // pred_check_branch
          %799 = sbr.rel (%p797) target = $region120
        $region119: #{encoder_forward.1} parent=83 // pred_region
          %800 = dma.done %s793, 64
        $region120: #{encoder_forward.1} parent=83 // pred_fallthru
          _
        %s801 = sand.u32 %s45, 1
        %s802 = scalar_lea.sflag [#allocation18], %s801
        %s803 = sand.u32 %s324, 1
        %s804 = smul.addr %s803, 512
        %s805 = scalar_lea.vmem [#allocation17], %s804
        // Predicated region
        $region121: #{encoder_forward.1} parent=83 // pred_check
          %p806 = pneg %p337
        $region122: #{encoder_forward.1} parent=83 // pred_check_branch
          %808 = sbr.rel (%p806) target = $region124
        $region123: #{encoder_forward.1} parent=83 // pred_region
          %809 = dma.done %s802, 8192
        $region124: #{encoder_forward.1} parent=83 // pred_fallthru
          _
        %s810 = sand.u32 %s45, 1
        %s811 = scalar_lea.sflag [#allocation18], %s810
        %s812 = sand.u32 %s350, 1
        %s813 = smul.addr %s812, 2
        %s814 = scalar_lea.vmem [#allocation19], %s813
        // Predicated region
        $region125: #{encoder_forward.1} parent=83 // pred_check
          %p815 = pneg %p363
        $region126: #{encoder_forward.1} parent=83 // pred_check_branch
          %817 = sbr.rel (%p815) target = $region128
        $region127: #{encoder_forward.1} parent=83 // pred_region
          %818 = dma.done %s811, 32
        $region128: #{encoder_forward.1} parent=83 // pred_fallthru
          _
        // Predicated region
        $region129: #{encoder_forward.1} parent=83 // pred_check
          %p819 = pneg %p384
        $region130: #{encoder_forward.1} parent=83 // pred_check_branch
          %821 = sbr.rel (%p819) target = $region132
        $region131: #{encoder_forward.1} parent=83 // pred_region
          %822 = dma.done [#allocation21], 64
        $region132: #{encoder_forward.1} parent=83 // pred_fallthru
          _
        // Predicated region
        $region133: #{encoder_forward.1} parent=83 // pred_check
          %p823 = pneg %p405
        $region134: #{encoder_forward.1} parent=83 // pred_check_branch
          %825 = sbr.rel (%p823) target = $region136
        $region135: #{encoder_forward.1} parent=83 // pred_region
          %826 = dma.done [#allocation21], 4096
        $region136: #{encoder_forward.1} parent=83 // pred_fallthru
          _
        // Predicated region
        $region137: #{encoder_forward.1} parent=83 // pred_check
          %p827 = pneg %p426
        $region138: #{encoder_forward.1} parent=83 // pred_check_branch
          %829 = sbr.rel (%p827) target = $region140
        $region139: #{encoder_forward.1} parent=83 // pred_region
          %830 = dma.done [#allocation24], 32
        $region140: #{encoder_forward.1} parent=83 // pred_fallthru
          _
        %p831 = pneg %p61
        %p832 = pneg %p58
        %p833 = pneg %p82
        %p834 = pneg %p79
        %p835 = pneg %p103
        %p836 = pneg %p100
        %s837 = sand.u32 %s45, 1
        %s838 = scalar_lea.sflag [#allocation6], %s837
        %s839 = sand.u32 %s116, 1
        %s840 = smul.addr %s839, 4
        %s841 = scalar_lea.vmem [#allocation5], %s840
        %p842 = pneg %p129
        %p843 = pneg %p126
        %s844 = sand.u32 %s45, 1
        %s845 = scalar_lea.sflag [#allocation6], %s844
        %s846 = sand.u32 %s142, 1
        %s847 = smul.addr %s846, 768
        %s848 = scalar_lea.vmem [#allocation7], %s847
        %p849 = pneg %p155
        %p850 = pneg %p152
        %s851 = sand.u32 %s45, 1
        %s852 = scalar_lea.sflag [#allocation9], %s851
        %s853 = sand.u32 %s168, 1
        %s854 = smul.addr %s853, 6
        %s855 = scalar_lea.vmem [#allocation8], %s854
        %p856 = pneg %p181
        %p857 = pneg %p178
        %s858 = sand.u32 %s45, 1
        %s859 = scalar_lea.sflag [#allocation9], %s858
        %s860 = sand.u32 %s194, 1
        %s861 = smul.addr %s860, 256
        %s862 = scalar_lea.vmem [#allocation10], %s861
        %p863 = pneg %p207
        %p864 = pneg %p204
        %s865 = sand.u32 %s45, 1
        %s866 = scalar_lea.sflag [#allocation12], %s865
        %s867 = sand.u32 %s220, 1
        %s868 = smul.addr %s867, 2
        %s869 = scalar_lea.vmem [#allocation11], %s868
        %p870 = pneg %p233
        %p871 = pneg %p230
        %s872 = sand.u32 %s45, 1
        %s873 = scalar_lea.sflag [#allocation12], %s872
        %s874 = sand.u32 %s246, 1
        %s875 = smul.addr %s874, 4
        %s876 = scalar_lea.vmem [#allocation13], %s875
        %p877 = pneg %p259
        %p878 = pneg %p256
        %s879 = sand.u32 %s45, 1
        %s880 = scalar_lea.sflag [#allocation15], %s879
        %s881 = sand.u32 %s272, 1
        %s882 = smul.addr %s881, 512
        %s883 = scalar_lea.vmem [#allocation14], %s882
        %p884 = pneg %p285
        %p885 = pneg %p282
        %s886 = sand.u32 %s45, 1
        %s887 = scalar_lea.sflag [#allocation15], %s886
        %s888 = sand.u32 %s298, 1
        %s889 = smul.addr %s888, 4
        %s890 = scalar_lea.vmem [#allocation16], %s889
        %p891 = pneg %p311
        %p892 = pneg %p308
        %s893 = sand.u32 %s45, 1
        %s894 = scalar_lea.sflag [#allocation18], %s893
        %s895 = sand.u32 %s324, 1
        %s896 = smul.addr %s895, 512
        %s897 = scalar_lea.vmem [#allocation17], %s896
        %p898 = pneg %p337
        %p899 = pneg %p334
        %s900 = sand.u32 %s45, 1
        %s901 = scalar_lea.sflag [#allocation18], %s900
        %s902 = sand.u32 %s350, 1
        %s903 = smul.addr %s902, 2
        %s904 = scalar_lea.vmem [#allocation19], %s903
        %p905 = pneg %p363
        %p906 = pneg %p360
        %p907 = pneg %p384
        %p908 = pneg %p381
        %p909 = pneg %p405
        %p910 = pneg %p402
        %p911 = pneg %p426
        %p912 = pneg %p423
        %p913 = pneg %p447
        %p914 = pneg %p444
        %p916 = scmp.eq.s32.totalorder %s45, 0
        // Predicated region
        $region141: #{encoder_forward.1} parent=83 // pred_check
          %p917 = pneg %p916
        $region142: #{encoder_forward.1} parent=83 // pred_check_branch
          %919 = sbr.rel (%p917) target = $region144
        $region143: #{encoder_forward.1} parent=83 // pred_region
          %v920 = vld [vmem:[%s0] sm:$0xff]
          %v921 = vld [vmem:[%s0 + $0x8] sm:$0xff]
          %v922 = vld [vmem:[%s0 + $0x10] sm:$0xff]
          %v923 = vld [vmem:[%s0 + $0x18] sm:$0xff]
          %v924 = vpack.c.bf16 %v922, %v920
          %v925 = vpack.c.bf16 %v923, %v921
          %v926 = vld [vmem:[#allocation3] sm:$0xff]
          %v927 = vld [vmem:[#allocation3 + $0x8] sm:$0xff]
          %v928 = vld [vmem:[#allocation3 + $0x10] sm:$0xff]
          %v929 = vld [vmem:[#allocation3 + $0x18] sm:$0xff]
          %v930 = vld [vmem:[#allocation3 + $0x20] sm:$0xff]
          %v931 = vld [vmem:[#allocation3 + $0x28] sm:$0xff]
          %v932 = vld [vmem:[#allocation3 + $0x30] sm:$0xff]
          %v933 = vld [vmem:[#allocation3 + $0x38] sm:$0xff]
          %v934 = vld [vmem:[#allocation3 + $0x40] sm:$0xff]
          %v935 = vld [vmem:[#allocation3 + $0x48] sm:$0xff]
          %v936 = vld [vmem:[#allocation3 + $0x50] sm:$0xff]
          %v937 = vld [vmem:[#allocation3 + $0x58] sm:$0xff]
          %v938 = vld [vmem:[#allocation3 + $0x60] sm:$0xff]
          %v939 = vld [vmem:[#allocation3 + $0x68] sm:$0xff]
          %v940 = vld [vmem:[#allocation3 + $0x70] sm:$0xff]
          %v941 = vld [vmem:[#allocation3 + $0x78] sm:$0xff]
          %v942 = vld [vmem:[#allocation3 + $0x80] sm:$0xff]
          %v943 = vld [vmem:[#allocation3 + $0x88] sm:$0xff]
          %v944 = vld [vmem:[#allocation3 + $0x90] sm:$0xff]
          %v945 = vld [vmem:[#allocation3 + $0x98] sm:$0xff]
          %v946 = vld [vmem:[#allocation3 + $0xa0] sm:$0xff]
          %v947 = vld [vmem:[#allocation3 + $0xa8] sm:$0xff]
          %v948 = vld [vmem:[#allocation3 + $0xb0] sm:$0xff]
          %v949 = vld [vmem:[#allocation3 + $0xb8] sm:$0xff]
          %v950 = vld [vmem:[#allocation3 + $0xc0] sm:$0xff]
          %v951 = vld [vmem:[#allocation3 + $0xc8] sm:$0xff]
          %v952 = vld [vmem:[#allocation3 + $0xd0] sm:$0xff]
          %v953 = vld [vmem:[#allocation3 + $0xd8] sm:$0xff]
          %v954 = vld [vmem:[#allocation3 + $0xe0] sm:$0xff]
          %v955 = vld [vmem:[#allocation3 + $0xe8] sm:$0xff]
          %v956 = vld [vmem:[#allocation3 + $0xf0] sm:$0xff]
          %v957 = vld [vmem:[#allocation3 + $0xf8] sm:$0xff]
          %v990 = vunpack.c.l.b16 %v926
          %v991 = vunpack.c.h.b16 %v926
          %v992 = vunpack.c.l.b16 %v927
          %v993 = vunpack.c.h.b16 %v927
          %v994 = vunpack.c.l.b16 %v928
          %v995 = vunpack.c.h.b16 %v928
          %v996 = vunpack.c.l.b16 %v929
          %v997 = vunpack.c.h.b16 %v929
          %v998 = vunpack.c.l.b16 %v930
          %v999 = vunpack.c.h.b16 %v930
          %v1000 = vunpack.c.l.b16 %v931
          %v1001 = vunpack.c.h.b16 %v931
          %v1002 = vunpack.c.l.b16 %v932
          %v1003 = vunpack.c.h.b16 %v932
          %v1004 = vunpack.c.l.b16 %v933
          %v1005 = vunpack.c.h.b16 %v933
          %v1006 = vunpack.c.l.b16 %v934
          %v1007 = vunpack.c.h.b16 %v934
          %v1008 = vunpack.c.l.b16 %v935
          %v1009 = vunpack.c.h.b16 %v935
          %v1010 = vunpack.c.l.b16 %v936
          %v1011 = vunpack.c.h.b16 %v936
          %v1012 = vunpack.c.l.b16 %v937
          %v1013 = vunpack.c.h.b16 %v937
          %v1014 = vunpack.c.l.b16 %v938
          %v1015 = vunpack.c.h.b16 %v938
          %v1016 = vunpack.c.l.b16 %v939
          %v1017 = vunpack.c.h.b16 %v939
          %v1018 = vunpack.c.l.b16 %v940
          %v1019 = vunpack.c.h.b16 %v940
          %v1020 = vunpack.c.l.b16 %v941
          %v1021 = vunpack.c.h.b16 %v941
          %v1022 = vunpack.c.l.b16 %v942
          %v1023 = vunpack.c.h.b16 %v942
          %v1024 = vunpack.c.l.b16 %v943
          %v1025 = vunpack.c.h.b16 %v943
          %v1026 = vunpack.c.l.b16 %v944
          %v1027 = vunpack.c.h.b16 %v944
          %v1028 = vunpack.c.l.b16 %v945
          %v1029 = vunpack.c.h.b16 %v945
          %v1030 = vunpack.c.l.b16 %v946
          %v1031 = vunpack.c.h.b16 %v946
          %v1032 = vunpack.c.l.b16 %v947
          %v1033 = vunpack.c.h.b16 %v947
          %v1034 = vunpack.c.l.b16 %v948
          %v1035 = vunpack.c.h.b16 %v948
          %v1036 = vunpack.c.l.b16 %v949
          %v1037 = vunpack.c.h.b16 %v949
          %v1038 = vunpack.c.l.b16 %v950
          %v1039 = vunpack.c.h.b16 %v950
          %v1040 = vunpack.c.l.b16 %v951
          %v1041 = vunpack.c.h.b16 %v951
          %v1042 = vunpack.c.l.b16 %v952
          %v1043 = vunpack.c.h.b16 %v952
          %v1044 = vunpack.c.l.b16 %v953
          %v1045 = vunpack.c.h.b16 %v953
          %v1046 = vunpack.c.l.b16 %v954
          %v1047 = vunpack.c.h.b16 %v954
          %v1048 = vunpack.c.l.b16 %v955
          %v1049 = vunpack.c.h.b16 %v955
          %v1050 = vunpack.c.l.b16 %v956
          %v1051 = vunpack.c.h.b16 %v956
          %v1052 = vunpack.c.l.b16 %v957
          %v1053 = vunpack.c.h.b16 %v957
          %v1054 = vpack.c.b16 %v992, %v990
          %v1055 = vpack.c.b16 %v993, %v991
          %v1056 = vpack.c.b16 %v996, %v994
          %v1057 = vpack.c.b16 %v997, %v995
          %v1058 = vpack.c.b16 %v1000, %v998
          %v1059 = vpack.c.b16 %v1001, %v999
          %v1060 = vpack.c.b16 %v1004, %v1002
          %v1061 = vpack.c.b16 %v1005, %v1003
          %v1062 = vpack.c.b16 %v1008, %v1006
          %v1063 = vpack.c.b16 %v1009, %v1007
          %v1064 = vpack.c.b16 %v1012, %v1010
          %v1065 = vpack.c.b16 %v1013, %v1011
          %v1066 = vpack.c.b16 %v1016, %v1014
          %v1067 = vpack.c.b16 %v1017, %v1015
          %v1068 = vpack.c.b16 %v1020, %v1018
          %v1069 = vpack.c.b16 %v1021, %v1019
          %v1070 = vpack.c.b16 %v1024, %v1022
          %v1071 = vpack.c.b16 %v1025, %v1023
          %v1072 = vpack.c.b16 %v1028, %v1026
          %v1073 = vpack.c.b16 %v1029, %v1027
          %v1074 = vpack.c.b16 %v1032, %v1030
          %v1075 = vpack.c.b16 %v1033, %v1031
          %v1076 = vpack.c.b16 %v1036, %v1034
          %v1077 = vpack.c.b16 %v1037, %v1035
          %v1078 = vpack.c.b16 %v1040, %v1038
          %v1079 = vpack.c.b16 %v1041, %v1039
          %v1080 = vpack.c.b16 %v1044, %v1042
          %v1081 = vpack.c.b16 %v1045, %v1043
          %v1082 = vpack.c.b16 %v1048, %v1046
          %v1083 = vpack.c.b16 %v1049, %v1047
          %v1084 = vpack.c.b16 %v1052, %v1050
          %v1085 = vpack.c.b16 %v1053, %v1051
          %1118 = vmatprep.subr.bf16.mxu0 %v1055
          %1119 = vmatpush1.bf16.msra.mxu0 %v1054
          %1120 = vmatprep.subr.bf16.mxu0 %v1057
          %1121 = vmatpush1.bf16.msra.mxu0 %v1056
          %1122 = vmatprep.subr.bf16.mxu0 %v1059
          %1123 = vmatpush1.bf16.msra.mxu0 %v1058
          %1124 = vmatprep.subr.bf16.mxu0 %v1061
          %1125 = vmatpush1.bf16.msra.mxu0 %v1060
          %1126 = vmatprep.subr.bf16.mxu0 %v1063
          %1127 = vmatpush1.bf16.msra.mxu0 %v1062
          %1128 = vmatprep.subr.bf16.mxu0 %v1065
          %1129 = vmatpush1.bf16.msra.mxu0 %v1064
          %1130 = vmatprep.subr.bf16.mxu0 %v1067
          %1131 = vmatpush1.bf16.msra.mxu0 %v1066
          %1132 = vmatprep.subr.bf16.mxu0 %v1069
          %1133 = vmatpush1.bf16.msra.mxu0 %v1068
          %1134 = vmatprep.subr.bf16.mxu0 %v1071
          %1135 = vmatpush1.bf16.msra.mxu0 %v1070
          %1136 = vmatprep.subr.bf16.mxu0 %v1073
          %1137 = vmatpush1.bf16.msra.mxu0 %v1072
          %1138 = vmatprep.subr.bf16.mxu0 %v1075
          %1139 = vmatpush1.bf16.msra.mxu0 %v1074
          %1140 = vmatprep.subr.bf16.mxu0 %v1077
          %1141 = vmatpush1.bf16.msra.mxu0 %v1076
          %1142 = vmatprep.subr.bf16.mxu0 %v1079
          %1143 = vmatpush1.bf16.msra.mxu0 %v1078
          %1144 = vmatprep.subr.bf16.mxu0 %v1081
          %1145 = vmatpush1.bf16.msra.mxu0 %v1080
          %1146 = vmatprep.subr.bf16.mxu0 %v1083
          %1147 = vmatpush1.bf16.msra.mxu0 %v1082
          %1148 = vmatprep.subr.bf16.mxu0 %v1085
          %1149 = vmatpush1.bf16.msra.mxu0 %v1084
          %1150 = vmatprep.mubr.bf16.mxu0 %v925
          %1151 = vmatmul.mubr.bf16.gmra.mrb[0].mxu0 %v924
          %v1152 = vpop.f32.mrb[0].mxu0
          %v1153 = vadd.f32 0.0, %v1152
          %v1154 = vpop.f32.mrb[0].mxu0
          %v1155 = vadd.f32 0.0, %v1154
          %v1156 = vpop.f32.mrb[0].mxu0
          %v1157 = vadd.f32 0.0, %v1156
          %v1158 = vpop.f32.mrb[0].mxu0
          %v1159 = vadd.f32 0.0, %v1158
          %1160 = vdwg.mxu0
          %v1161 = vld [vmem:[%s1] sm:$0xff]
          %v1162 = vld [vmem:[%s1 + $0x8] sm:$0xff]
          %v1163 = vld [vmem:[%s1 + $0x10] sm:$0xff]
          %v1164 = vld [vmem:[%s1 + $0x18] sm:$0xff]
          %v1165 = vadd.f32 %v1161, %v1153
          %v1166 = vadd.f32 %v1162, %v1155
          %v1167 = vadd.f32 %v1163, %v1157
          %v1168 = vadd.f32 %v1164, %v1159
          %1169 = vst [vmem:[#allocation2] sm:$0xff] %v1165
          %1170 = vst [vmem:[#allocation2 + $0x8] sm:$0xff] %v1166
          %1171 = vst [vmem:[#allocation2 + $0x10] sm:$0xff] %v1167
          %1172 = vst [vmem:[#allocation2 + $0x18] sm:$0xff] %v1168
        $region144: #{encoder_forward.1} parent=83 // pred_fallthru
          _
        %v1173 = vld [vmem:[#allocation2] sm:$0xff]
        %v1174 = vld [vmem:[#allocation2 + $0x8] sm:$0xff]
        %v1175 = vld [vmem:[#allocation2 + $0x10] sm:$0xff]
        %v1176 = vld [vmem:[#allocation2 + $0x18] sm:$0xff]
        %v1177 = vld [vmem:[%s733] sm:$0xf]
        %v1178 = vadd.f32 %v1173, %v1174
        %1179 = vadd.xlane.f32.xlu0 %v1178
        %v1180 = vpop.xlane.xlu0 %1179
        %v1181 = vadd.f32 %v1175, %v1176
        %1182 = vadd.xlane.f32.xlu0 %v1181
        %v1183 = vpop.xlane.xlu0 %1182
        %v1184 = vrcp.pop 256.0
        %v1185 = vmul.f32 %v1180, %v1184
        %v1186 = vmul.f32 %v1183, %v1184
        %v1187 = vsub.f32 %v1173, %v1185
        %v1188 = vsub.f32 %v1174, %v1185
        %v1189 = vsub.f32 %v1175, %v1186
        %v1190 = vsub.f32 %v1176, %v1186
        %v1191 = vmul.f32 %v1187, %v1187
        %v1192 = vmul.f32 %v1188, %v1188
        %v1193 = vmul.f32 %v1189, %v1189
        %v1194 = vmul.f32 %v1190, %v1190
        %v1195 = vadd.f32 %v1191, %v1192
        %1196 = vadd.xlane.f32.xlu0 %v1195
        %v1197 = vpop.xlane.xlu0 %1196
        %v1198 = vadd.f32 %v1193, %v1194
        %1199 = vadd.xlane.f32.xlu0 %v1198
        %v1200 = vpop.xlane.xlu0 %1199
        %v1201 = vmul.f32 %v1197, %v1184
        %v1202 = vmul.f32 %v1200, %v1184
        %v1203 = vadd.f32 %v1201, 1e-12
        %v1204 = vadd.f32 %v1202, 1e-12
        %v1205 = vrsqrt.pop %v1203
        %v1206 = vrsqrt.pop %v1204
        %v1207 = vmul.f32 %v1187, %v1205
        %v1208 = vmul.f32 %v1188, %v1205
        %v1209 = vmul.f32 %v1189, %v1206
        %v1210 = vmul.f32 %v1190, %v1206
        %v1212 = vlaneseq
        %v1213 = vshrl.u32 %v1212, 7
        %v1214 = vsub.s32 0, %v1213
        %v1215 = vrot.slane %v1177, %v1214
        %v1216 = vlaneseq
        %v1217 = vshrl.u32 %v1216, 7
        %v1218 = vsub.s32 2, %v1217
        %v1219 = vrot.slane %v1177, %v1218
        %v1222 = vlaneseq
        %v1223 = vshrl.u32 %v1222, 7
        %v1224 = vsub.s32 0, %v1223
        %v1225 = vrot.slane %v1215, %v1224
        %v1226 = vlaneseq
        %v1227 = vshrl.u32 %v1226, 7
        %v1228 = vsub.s32 0, %v1227
        %v1229 = vrot.slane %v1219, %v1228
        %v1230 = vmul.f32 %v1207, %v1225
        %v1231 = vmul.f32 %v1208, %v1229
        %v1232 = vmul.f32 %v1209, %v1225
        %v1233 = vmul.f32 %v1210, %v1229
        %v1234 = vlaneseq
        %v1235 = vshrl.u32 %v1234, 7
        %v1236 = vsub.s32 1, %v1235
        %v1237 = vrot.slane %v1177, %v1236
        %v1238 = vlaneseq
        %v1239 = vshrl.u32 %v1238, 7
        %v1240 = vsub.s32 3, %v1239
        %v1241 = vrot.slane %v1177, %v1240
        %v1244 = vlaneseq
        %v1245 = vshrl.u32 %v1244, 7
        %v1246 = vsub.s32 1, %v1245
        %v1247 = vrot.slane %v1237, %v1246
        %v1248 = vlaneseq
        %v1249 = vshrl.u32 %v1248, 7
        %v1250 = vsub.s32 1, %v1249
        %v1251 = vrot.slane %v1241, %v1250
        %v1252 = vadd.f32 %v1230, %v1247
        %v1253 = vadd.f32 %v1231, %v1251
        %v1254 = vadd.f32 %v1232, %v1247
        %v1255 = vadd.f32 %v1233, %v1251
        %v1256 = vpack.c.bf16 %v1254, %v1252
        %v1257 = vpack.c.bf16 %v1255, %v1253
        %v1258 = vld [vmem:[%s742] sm:$0xff]
        %v1259 = vld [vmem:[%s742 + $0x8] sm:$0xff]
        %v1260 = vld [vmem:[%s742 + $0x10] sm:$0xff]
        %v1261 = vld [vmem:[%s742 + $0x18] sm:$0xff]
        %v1262 = vld [vmem:[%s742 + $0x20] sm:$0xff]
        %v1263 = vld [vmem:[%s742 + $0x28] sm:$0xff]
        %v1264 = vld [vmem:[%s742 + $0x30] sm:$0xff]
        %v1265 = vld [vmem:[%s742 + $0x38] sm:$0xff]
        %v1266 = vld [vmem:[%s742 + $0x40] sm:$0xff]
        %v1267 = vld [vmem:[%s742 + $0x48] sm:$0xff]
        %v1268 = vld [vmem:[%s742 + $0x50] sm:$0xff]
        %v1269 = vld [vmem:[%s742 + $0x58] sm:$0xff]
        %v1270 = vld [vmem:[%s742 + $0x60] sm:$0xff]
        %v1271 = vld [vmem:[%s742 + $0x68] sm:$0xff]
        %v1272 = vld [vmem:[%s742 + $0x70] sm:$0xff]
        %v1273 = vld [vmem:[%s742 + $0x78] sm:$0xff]
        %v1274 = vld [vmem:[%s742 + $0x80] sm:$0xff]
        %v1275 = vld [vmem:[%s742 + $0x88] sm:$0xff]
        %v1276 = vld [vmem:[%s742 + $0x90] sm:$0xff]
        %v1277 = vld [vmem:[%s742 + $0x98] sm:$0xff]
        %v1278 = vld [vmem:[%s742 + $0xa0] sm:$0xff]
        %v1279 = vld [vmem:[%s742 + $0xa8] sm:$0xff]
        %v1280 = vld [vmem:[%s742 + $0xb0] sm:$0xff]
        %v1281 = vld [vmem:[%s742 + $0xb8] sm:$0xff]
        %v1282 = vld [vmem:[%s742 + $0xc0] sm:$0xff]
        %v1283 = vld [vmem:[%s742 + $0xc8] sm:$0xff]
        %v1284 = vld [vmem:[%s742 + $0xd0] sm:$0xff]
        %v1285 = vld [vmem:[%s742 + $0xd8] sm:$0xff]
        %v1286 = vld [vmem:[%s742 + $0xe0] sm:$0xff]
        %v1287 = vld [vmem:[%s742 + $0xe8] sm:$0xff]
        %v1288 = vld [vmem:[%s742 + $0xf0] sm:$0xff]
        %v1289 = vld [vmem:[%s742 + $0xf8] sm:$0xff]
        %v1290 = vld [vmem:[%s742 + $0x100] sm:$0xff]
        %v1291 = vld [vmem:[%s742 + $0x108] sm:$0xff]
        %v1292 = vld [vmem:[%s742 + $0x110] sm:$0xff]
        %v1293 = vld [vmem:[%s742 + $0x118] sm:$0xff]
        %v1294 = vld [vmem:[%s742 + $0x120] sm:$0xff]
        %v1295 = vld [vmem:[%s742 + $0x128] sm:$0xff]
        %v1296 = vld [vmem:[%s742 + $0x130] sm:$0xff]
        %v1297 = vld [vmem:[%s742 + $0x138] sm:$0xff]
        %v1298 = vld [vmem:[%s742 + $0x140] sm:$0xff]
        %v1299 = vld [vmem:[%s742 + $0x148] sm:$0xff]
        %v1300 = vld [vmem:[%s742 + $0x150] sm:$0xff]
        %v1301 = vld [vmem:[%s742 + $0x158] sm:$0xff]
        %v1302 = vld [vmem:[%s742 + $0x160] sm:$0xff]
        %v1303 = vld [vmem:[%s742 + $0x168] sm:$0xff]
        %v1304 = vld [vmem:[%s742 + $0x170] sm:$0xff]
        %v1305 = vld [vmem:[%s742 + $0x178] sm:$0xff]
        %v1306 = vld [vmem:[%s742 + $0x180] sm:$0xff]
        %v1307 = vld [vmem:[%s742 + $0x188] sm:$0xff]
        %v1308 = vld [vmem:[%s742 + $0x190] sm:$0xff]
        %v1309 = vld [vmem:[%s742 + $0x198] sm:$0xff]
        %v1310 = vld [vmem:[%s742 + $0x1a0] sm:$0xff]
        %v1311 = vld [vmem:[%s742 + $0x1a8] sm:$0xff]
        %v1312 = vld [vmem:[%s742 + $0x1b0] sm:$0xff]
        %v1313 = vld [vmem:[%s742 + $0x1b8] sm:$0xff]
        %v1314 = vld [vmem:[%s742 + $0x1c0] sm:$0xff]
        %v1315 = vld [vmem:[%s742 + $0x1c8] sm:$0xff]
        %v1316 = vld [vmem:[%s742 + $0x1d0] sm:$0xff]
        %v1317 = vld [vmem:[%s742 + $0x1d8] sm:$0xff]
        %v1318 = vld [vmem:[%s742 + $0x1e0] sm:$0xff]
        %v1319 = vld [vmem:[%s742 + $0x1e8] sm:$0xff]
        %v1320 = vld [vmem:[%s742 + $0x1f0] sm:$0xff]
        %v1321 = vld [vmem:[%s742 + $0x1f8] sm:$0xff]
        %v1322 = vld [vmem:[%s742 + $0x200] sm:$0xff]
        %v1323 = vld [vmem:[%s742 + $0x208] sm:$0xff]
        %v1324 = vld [vmem:[%s742 + $0x210] sm:$0xff]
        %v1325 = vld [vmem:[%s742 + $0x218] sm:$0xff]
        %v1326 = vld [vmem:[%s742 + $0x220] sm:$0xff]
        %v1327 = vld [vmem:[%s742 + $0x228] sm:$0xff]
        %v1328 = vld [vmem:[%s742 + $0x230] sm:$0xff]
        %v1329 = vld [vmem:[%s742 + $0x238] sm:$0xff]
        %v1330 = vld [vmem:[%s742 + $0x240] sm:$0xff]
        %v1331 = vld [vmem:[%s742 + $0x248] sm:$0xff]
        %v1332 = vld [vmem:[%s742 + $0x250] sm:$0xff]
        %v1333 = vld [vmem:[%s742 + $0x258] sm:$0xff]
        %v1334 = vld [vmem:[%s742 + $0x260] sm:$0xff]
        %v1335 = vld [vmem:[%s742 + $0x268] sm:$0xff]
        %v1336 = vld [vmem:[%s742 + $0x270] sm:$0xff]
        %v1337 = vld [vmem:[%s742 + $0x278] sm:$0xff]
        %v1338 = vld [vmem:[%s742 + $0x280] sm:$0xff]
        %v1339 = vld [vmem:[%s742 + $0x288] sm:$0xff]
        %v1340 = vld [vmem:[%s742 + $0x290] sm:$0xff]
        %v1341 = vld [vmem:[%s742 + $0x298] sm:$0xff]
        %v1342 = vld [vmem:[%s742 + $0x2a0] sm:$0xff]
        %v1343 = vld [vmem:[%s742 + $0x2a8] sm:$0xff]
        %v1344 = vld [vmem:[%s742 + $0x2b0] sm:$0xff]
        %v1345 = vld [vmem:[%s742 + $0x2b8] sm:$0xff]
        %v1346 = vld [vmem:[%s742 + $0x2c0] sm:$0xff]
        %v1347 = vld [vmem:[%s742 + $0x2c8] sm:$0xff]
        %v1348 = vld [vmem:[%s742 + $0x2d0] sm:$0xff]
        %v1349 = vld [vmem:[%s742 + $0x2d8] sm:$0xff]
        %v1350 = vld [vmem:[%s742 + $0x2e0] sm:$0xff]
        %v1351 = vld [vmem:[%s742 + $0x2e8] sm:$0xff]
        %v1352 = vld [vmem:[%s742 + $0x2f0] sm:$0xff]
        %v1353 = vld [vmem:[%s742 + $0x2f8] sm:$0xff]
        %v1354 = vld [vmem:[%s751] sm:$0x3f]
        %v1356 = vlaneseq
        %v1357 = vshrl.u32 %v1356, 7
        %v1358 = vsub.s32 0, %v1357
        %v1359 = vrot.slane %v1354, %v1358
        %v1360 = vlaneseq
        %v1361 = vshrl.u32 %v1360, 7
        %v1362 = vsub.s32 1, %v1361
        %v1363 = vrot.slane %v1354, %v1362
        %v1364 = vlaneseq
        %v1365 = vshrl.u32 %v1364, 7
        %v1366 = vsub.s32 2, %v1365
        %v1367 = vrot.slane %v1354, %v1366
        %v1368 = vlaneseq
        %v1369 = vshrl.u32 %v1368, 7
        %v1370 = vsub.s32 3, %v1369
        %v1371 = vrot.slane %v1354, %v1370
        %v1372 = vlaneseq
        %v1373 = vshrl.u32 %v1372, 7
        %v1374 = vsub.s32 4, %v1373
        %v1375 = vrot.slane %v1354, %v1374
        %v1376 = vlaneseq
        %v1377 = vshrl.u32 %v1376, 7
        %v1378 = vsub.s32 5, %v1377
        %v1379 = vrot.slane %v1354, %v1378
        %v1482 = vunpack.c.l.b16 %v1258
        %v1483 = vunpack.c.h.b16 %v1258
        %v1484 = vunpack.c.l.b16 %v1259
        %v1485 = vunpack.c.h.b16 %v1259
        %v1486 = vunpack.c.l.b16 %v1260
        %v1487 = vunpack.c.h.b16 %v1260
        %v1488 = vunpack.c.l.b16 %v1261
        %v1489 = vunpack.c.h.b16 %v1261
        %v1490 = vunpack.c.l.b16 %v1262
        %v1491 = vunpack.c.h.b16 %v1262
        %v1492 = vunpack.c.l.b16 %v1263
        %v1493 = vunpack.c.h.b16 %v1263
        %v1494 = vunpack.c.l.b16 %v1264
        %v1495 = vunpack.c.h.b16 %v1264
        %v1496 = vunpack.c.l.b16 %v1265
        %v1497 = vunpack.c.h.b16 %v1265
        %v1498 = vunpack.c.l.b16 %v1266
        %v1499 = vunpack.c.h.b16 %v1266
        %v1500 = vunpack.c.l.b16 %v1267
        %v1501 = vunpack.c.h.b16 %v1267
        %v1502 = vunpack.c.l.b16 %v1268
        %v1503 = vunpack.c.h.b16 %v1268
        %v1504 = vunpack.c.l.b16 %v1269
        %v1505 = vunpack.c.h.b16 %v1269
        %v1506 = vunpack.c.l.b16 %v1270
        %v1507 = vunpack.c.h.b16 %v1270
        %v1508 = vunpack.c.l.b16 %v1271
        %v1509 = vunpack.c.h.b16 %v1271
        %v1510 = vunpack.c.l.b16 %v1272
        %v1511 = vunpack.c.h.b16 %v1272
        %v1512 = vunpack.c.l.b16 %v1273
        %v1513 = vunpack.c.h.b16 %v1273
        %v1514 = vunpack.c.l.b16 %v1274
        %v1515 = vunpack.c.h.b16 %v1274
        %v1516 = vunpack.c.l.b16 %v1275
        %v1517 = vunpack.c.h.b16 %v1275
        %v1518 = vunpack.c.l.b16 %v1276
        %v1519 = vunpack.c.h.b16 %v1276
        %v1520 = vunpack.c.l.b16 %v1277
        %v1521 = vunpack.c.h.b16 %v1277
        %v1522 = vunpack.c.l.b16 %v1278
        %v1523 = vunpack.c.h.b16 %v1278
        %v1524 = vunpack.c.l.b16 %v1279
        %v1525 = vunpack.c.h.b16 %v1279
        %v1526 = vunpack.c.l.b16 %v1280
        %v1527 = vunpack.c.h.b16 %v1280
        %v1528 = vunpack.c.l.b16 %v1281
        %v1529 = vunpack.c.h.b16 %v1281
        %v1530 = vunpack.c.l.b16 %v1282
        %v1531 = vunpack.c.h.b16 %v1282
        %v1532 = vunpack.c.l.b16 %v1283
        %v1533 = vunpack.c.h.b16 %v1283
        %v1534 = vunpack.c.l.b16 %v1284
        %v1535 = vunpack.c.h.b16 %v1284
        %v1536 = vunpack.c.l.b16 %v1285
        %v1537 = vunpack.c.h.b16 %v1285
        %v1538 = vunpack.c.l.b16 %v1286
        %v1539 = vunpack.c.h.b16 %v1286
        %v1540 = vunpack.c.l.b16 %v1287
        %v1541 = vunpack.c.h.b16 %v1287
        %v1542 = vunpack.c.l.b16 %v1288
        %v1543 = vunpack.c.h.b16 %v1288
        %v1544 = vunpack.c.l.b16 %v1289
        %v1545 = vunpack.c.h.b16 %v1289
        %v1546 = vunpack.c.l.b16 %v1290
        %v1547 = vunpack.c.h.b16 %v1290
        %v1548 = vunpack.c.l.b16 %v1291
        %v1549 = vunpack.c.h.b16 %v1291
        %v1550 = vunpack.c.l.b16 %v1292
        %v1551 = vunpack.c.h.b16 %v1292
        %v1552 = vunpack.c.l.b16 %v1293
        %v1553 = vunpack.c.h.b16 %v1293
        %v1554 = vunpack.c.l.b16 %v1294
        %v1555 = vunpack.c.h.b16 %v1294
        %v1556 = vunpack.c.l.b16 %v1295
        %v1557 = vunpack.c.h.b16 %v1295
        %v1558 = vunpack.c.l.b16 %v1296
        %v1559 = vunpack.c.h.b16 %v1296
        %v1560 = vunpack.c.l.b16 %v1297
        %v1561 = vunpack.c.h.b16 %v1297
        %v1562 = vunpack.c.l.b16 %v1298
        %v1563 = vunpack.c.h.b16 %v1298
        %v1564 = vunpack.c.l.b16 %v1299
        %v1565 = vunpack.c.h.b16 %v1299
        %v1566 = vunpack.c.l.b16 %v1300
        %v1567 = vunpack.c.h.b16 %v1300
        %v1568 = vunpack.c.l.b16 %v1301
        %v1569 = vunpack.c.h.b16 %v1301
        %v1570 = vunpack.c.l.b16 %v1302
        %v1571 = vunpack.c.h.b16 %v1302
        %v1572 = vunpack.c.l.b16 %v1303
        %v1573 = vunpack.c.h.b16 %v1303
        %v1574 = vunpack.c.l.b16 %v1304
        %v1575 = vunpack.c.h.b16 %v1304
        %v1576 = vunpack.c.l.b16 %v1305
        %v1577 = vunpack.c.h.b16 %v1305
        %v1578 = vunpack.c.l.b16 %v1306
        %v1579 = vunpack.c.h.b16 %v1306
        %v1580 = vunpack.c.l.b16 %v1307
        %v1581 = vunpack.c.h.b16 %v1307
        %v1582 = vunpack.c.l.b16 %v1308
        %v1583 = vunpack.c.h.b16 %v1308
        %v1584 = vunpack.c.l.b16 %v1309
        %v1585 = vunpack.c.h.b16 %v1309
        %v1586 = vunpack.c.l.b16 %v1310
        %v1587 = vunpack.c.h.b16 %v1310
        %v1588 = vunpack.c.l.b16 %v1311
        %v1589 = vunpack.c.h.b16 %v1311
        %v1590 = vunpack.c.l.b16 %v1312
        %v1591 = vunpack.c.h.b16 %v1312
        %v1592 = vunpack.c.l.b16 %v1313
        %v1593 = vunpack.c.h.b16 %v1313
        %v1594 = vunpack.c.l.b16 %v1314
        %v1595 = vunpack.c.h.b16 %v1314
        %v1596 = vunpack.c.l.b16 %v1315
        %v1597 = vunpack.c.h.b16 %v1315
        %v1598 = vunpack.c.l.b16 %v1316
        %v1599 = vunpack.c.h.b16 %v1316
        %v1600 = vunpack.c.l.b16 %v1317
        %v1601 = vunpack.c.h.b16 %v1317
        %v1602 = vunpack.c.l.b16 %v1318
        %v1603 = vunpack.c.h.b16 %v1318
        %v1604 = vunpack.c.l.b16 %v1319
        %v1605 = vunpack.c.h.b16 %v1319
        %v1606 = vunpack.c.l.b16 %v1320
        %v1607 = vunpack.c.h.b16 %v1320
        %v1608 = vunpack.c.l.b16 %v1321
        %v1609 = vunpack.c.h.b16 %v1321
        %v1610 = vunpack.c.l.b16 %v1322
        %v1611 = vunpack.c.h.b16 %v1322
        %v1612 = vunpack.c.l.b16 %v1323
        %v1613 = vunpack.c.h.b16 %v1323
        %v1614 = vunpack.c.l.b16 %v1324
        %v1615 = vunpack.c.h.b16 %v1324
        %v1616 = vunpack.c.l.b16 %v1325
        %v1617 = vunpack.c.h.b16 %v1325
        %v1618 = vunpack.c.l.b16 %v1326
        %v1619 = vunpack.c.h.b16 %v1326
        %v1620 = vunpack.c.l.b16 %v1327
        %v1621 = vunpack.c.h.b16 %v1327
        %v1622 = vunpack.c.l.b16 %v1328
        %v1623 = vunpack.c.h.b16 %v1328
        %v1624 = vunpack.c.l.b16 %v1329
        %v1625 = vunpack.c.h.b16 %v1329
        %v1626 = vunpack.c.l.b16 %v1330
        %v1627 = vunpack.c.h.b16 %v1330
        %v1628 = vunpack.c.l.b16 %v1331
        %v1629 = vunpack.c.h.b16 %v1331
        %v1630 = vunpack.c.l.b16 %v1332
        %v1631 = vunpack.c.h.b16 %v1332
        %v1632 = vunpack.c.l.b16 %v1333
        %v1633 = vunpack.c.h.b16 %v1333
        %v1634 = vunpack.c.l.b16 %v1334
        %v1635 = vunpack.c.h.b16 %v1334
        %v1636 = vunpack.c.l.b16 %v1335
        %v1637 = vunpack.c.h.b16 %v1335
        %v1638 = vunpack.c.l.b16 %v1336
        %v1639 = vunpack.c.h.b16 %v1336
        %v1640 = vunpack.c.l.b16 %v1337
        %v1641 = vunpack.c.h.b16 %v1337
        %v1642 = vunpack.c.l.b16 %v1338
        %v1643 = vunpack.c.h.b16 %v1338
        %v1644 = vunpack.c.l.b16 %v1339
        %v1645 = vunpack.c.h.b16 %v1339
        %v1646 = vunpack.c.l.b16 %v1340
        %v1647 = vunpack.c.h.b16 %v1340
        %v1648 = vunpack.c.l.b16 %v1341
        %v1649 = vunpack.c.h.b16 %v1341
        %v1650 = vunpack.c.l.b16 %v1342
        %v1651 = vunpack.c.h.b16 %v1342
        %v1652 = vunpack.c.l.b16 %v1343
        %v1653 = vunpack.c.h.b16 %v1343
        %v1654 = vunpack.c.l.b16 %v1344
        %v1655 = vunpack.c.h.b16 %v1344
        %v1656 = vunpack.c.l.b16 %v1345
        %v1657 = vunpack.c.h.b16 %v1345
        %v1658 = vunpack.c.l.b16 %v1346
        %v1659 = vunpack.c.h.b16 %v1346
        %v1660 = vunpack.c.l.b16 %v1347
        %v1661 = vunpack.c.h.b16 %v1347
        %v1662 = vunpack.c.l.b16 %v1348
        %v1663 = vunpack.c.h.b16 %v1348
        %v1664 = vunpack.c.l.b16 %v1349
        %v1665 = vunpack.c.h.b16 %v1349
        %v1666 = vunpack.c.l.b16 %v1350
        %v1667 = vunpack.c.h.b16 %v1350
        %v1668 = vunpack.c.l.b16 %v1351
        %v1669 = vunpack.c.h.b16 %v1351
        %v1670 = vunpack.c.l.b16 %v1352
        %v1671 = vunpack.c.h.b16 %v1352
        %v1672 = vunpack.c.l.b16 %v1353
        %v1673 = vunpack.c.h.b16 %v1353
        %v1674 = vpack.c.b16 %v1488, %v1482
        %v1675 = vpack.c.b16 %v1489, %v1483
        %v1676 = vpack.c.b16 %v1490, %v1484
        %v1677 = vpack.c.b16 %v1491, %v1485
        %v1678 = vpack.c.b16 %v1492, %v1486
        %v1679 = vpack.c.b16 %v1493, %v1487
        %v1680 = vpack.c.b16 %v1500, %v1494
        %v1681 = vpack.c.b16 %v1501, %v1495
        %v1682 = vpack.c.b16 %v1502, %v1496
        %v1683 = vpack.c.b16 %v1503, %v1497
        %v1684 = vpack.c.b16 %v1504, %v1498
        %v1685 = vpack.c.b16 %v1505, %v1499
        %v1686 = vpack.c.b16 %v1512, %v1506
        %v1687 = vpack.c.b16 %v1513, %v1507
        %v1688 = vpack.c.b16 %v1514, %v1508
        %v1689 = vpack.c.b16 %v1515, %v1509
        %v1690 = vpack.c.b16 %v1516, %v1510
        %v1691 = vpack.c.b16 %v1517, %v1511
        %v1692 = vpack.c.b16 %v1524, %v1518
        %v1693 = vpack.c.b16 %v1525, %v1519
        %v1694 = vpack.c.b16 %v1526, %v1520
        %v1695 = vpack.c.b16 %v1527, %v1521
        %v1696 = vpack.c.b16 %v1528, %v1522
        %v1697 = vpack.c.b16 %v1529, %v1523
        %v1698 = vpack.c.b16 %v1536, %v1530
        %v1699 = vpack.c.b16 %v1537, %v1531
        %v1700 = vpack.c.b16 %v1538, %v1532
        %v1701 = vpack.c.b16 %v1539, %v1533
        %v1702 = vpack.c.b16 %v1540, %v1534
        %v1703 = vpack.c.b16 %v1541, %v1535
        %v1704 = vpack.c.b16 %v1548, %v1542
        %v1705 = vpack.c.b16 %v1549, %v1543
        %v1706 = vpack.c.b16 %v1550, %v1544
        %v1707 = vpack.c.b16 %v1551, %v1545
        %v1708 = vpack.c.b16 %v1552, %v1546
        %v1709 = vpack.c.b16 %v1553, %v1547
        %v1710 = vpack.c.b16 %v1560, %v1554
        %v1711 = vpack.c.b16 %v1561, %v1555
        %v1712 = vpack.c.b16 %v1562, %v1556
        %v1713 = vpack.c.b16 %v1563, %v1557
        %v1714 = vpack.c.b16 %v1564, %v1558
        %v1715 = vpack.c.b16 %v1565, %v1559
        %v1716 = vpack.c.b16 %v1572, %v1566
        %v1717 = vpack.c.b16 %v1573, %v1567
        %v1718 = vpack.c.b16 %v1574, %v1568
        %v1719 = vpack.c.b16 %v1575, %v1569
        %v1720 = vpack.c.b16 %v1576, %v1570
        %v1721 = vpack.c.b16 %v1577, %v1571
        %v1722 = vpack.c.b16 %v1584, %v1578
        %v1723 = vpack.c.b16 %v1585, %v1579
        %v1724 = vpack.c.b16 %v1586, %v1580
        %v1725 = vpack.c.b16 %v1587, %v1581
        %v1726 = vpack.c.b16 %v1588, %v1582
        %v1727 = vpack.c.b16 %v1589, %v1583
        %v1728 = vpack.c.b16 %v1596, %v1590
        %v1729 = vpack.c.b16 %v1597, %v1591
        %v1730 = vpack.c.b16 %v1598, %v1592
        %v1731 = vpack.c.b16 %v1599, %v1593
        %v1732 = vpack.c.b16 %v1600, %v1594
        %v1733 = vpack.c.b16 %v1601, %v1595
        %v1734 = vpack.c.b16 %v1608, %v1602
        %v1735 = vpack.c.b16 %v1609, %v1603
        %v1736 = vpack.c.b16 %v1610, %v1604
        %v1737 = vpack.c.b16 %v1611, %v1605
        %v1738 = vpack.c.b16 %v1612, %v1606
        %v1739 = vpack.c.b16 %v1613, %v1607
        %v1740 = vpack.c.b16 %v1620, %v1614
        %v1741 = vpack.c.b16 %v1621, %v1615
        %v1742 = vpack.c.b16 %v1622, %v1616
        %v1743 = vpack.c.b16 %v1623, %v1617
        %v1744 = vpack.c.b16 %v1624, %v1618
        %v1745 = vpack.c.b16 %v1625, %v1619
        %v1746 = vpack.c.b16 %v1632, %v1626
        %v1747 = vpack.c.b16 %v1633, %v1627
        %v1748 = vpack.c.b16 %v1634, %v1628
        %v1749 = vpack.c.b16 %v1635, %v1629
        %v1750 = vpack.c.b16 %v1636, %v1630
        %v1751 = vpack.c.b16 %v1637, %v1631
        %v1752 = vpack.c.b16 %v1644, %v1638
        %v1753 = vpack.c.b16 %v1645, %v1639
        %v1754 = vpack.c.b16 %v1646, %v1640
        %v1755 = vpack.c.b16 %v1647, %v1641
        %v1756 = vpack.c.b16 %v1648, %v1642
        %v1757 = vpack.c.b16 %v1649, %v1643
        %v1758 = vpack.c.b16 %v1656, %v1650
        %v1759 = vpack.c.b16 %v1657, %v1651
        %v1760 = vpack.c.b16 %v1658, %v1652
        %v1761 = vpack.c.b16 %v1659, %v1653
        %v1762 = vpack.c.b16 %v1660, %v1654
        %v1763 = vpack.c.b16 %v1661, %v1655
        %v1764 = vpack.c.b16 %v1668, %v1662
        %v1765 = vpack.c.b16 %v1669, %v1663
        %v1766 = vpack.c.b16 %v1670, %v1664
        %v1767 = vpack.c.b16 %v1671, %v1665
        %v1768 = vpack.c.b16 %v1672, %v1666
        %v1769 = vpack.c.b16 %v1673, %v1667
        %1866 = vmatprep.subr.bf16.mxu0 %v1675
        %1867 = vmatpush1.bf16.msra.mxu0 %v1674
        %1868 = vmatprep.subr.bf16.mxu0 %v1681
        %1869 = vmatpush1.bf16.msra.mxu0 %v1680
        %1870 = vmatprep.subr.bf16.mxu0 %v1687
        %1871 = vmatpush1.bf16.msra.mxu0 %v1686
        %1872 = vmatprep.subr.bf16.mxu0 %v1693
        %1873 = vmatpush1.bf16.msra.mxu0 %v1692
        %1874 = vmatprep.subr.bf16.mxu0 %v1699
        %1875 = vmatpush1.bf16.msra.mxu0 %v1698
        %1876 = vmatprep.subr.bf16.mxu0 %v1705
        %1877 = vmatpush1.bf16.msra.mxu0 %v1704
        %1878 = vmatprep.subr.bf16.mxu0 %v1711
        %1879 = vmatpush1.bf16.msra.mxu0 %v1710
        %1880 = vmatprep.subr.bf16.mxu0 %v1717
        %1881 = vmatpush1.bf16.msra.mxu0 %v1716
        %1882 = vmatprep.subr.bf16.mxu0 %v1723
        %1883 = vmatpush1.bf16.msra.mxu0 %v1722
        %1884 = vmatprep.subr.bf16.mxu0 %v1729
        %1885 = vmatpush1.bf16.msra.mxu0 %v1728
        %1886 = vmatprep.subr.bf16.mxu0 %v1735
        %1887 = vmatpush1.bf16.msra.mxu0 %v1734
        %1888 = vmatprep.subr.bf16.mxu0 %v1741
        %1889 = vmatpush1.bf16.msra.mxu0 %v1740
        %1890 = vmatprep.subr.bf16.mxu0 %v1747
        %1891 = vmatpush1.bf16.msra.mxu0 %v1746
        %1892 = vmatprep.subr.bf16.mxu0 %v1753
        %1893 = vmatpush1.bf16.msra.mxu0 %v1752
        %1894 = vmatprep.subr.bf16.mxu0 %v1759
        %1895 = vmatpush1.bf16.msra.mxu0 %v1758
        %1896 = vmatprep.subr.bf16.mxu0 %v1765
        %1897 = vmatpush1.bf16.msra.mxu0 %v1764
        %1898 = vmatprep.mubr.bf16.mxu0 %v1257
        %1899 = vmatmul.mubr.bf16.gmra.mrb[0].mxu0 %v1256
        %v1900 = vpop.f32.mrb[0].mxu0
        %v1901 = vadd.f32 %v1359, %v1900
        %v1902 = vpop.f32.mrb[0].mxu0
        %v1903 = vadd.f32 %v1363, %v1902
        %v1904 = vpop.f32.mrb[0].mxu0
        %v1905 = vadd.f32 %v1359, %v1904
        %v1906 = vpop.f32.mrb[0].mxu0
        %v1907 = vadd.f32 %v1363, %v1906
        %1908 = vdwg.mxu0
        %1909 = vmatprep.subr.bf16.mxu0 %v1677
        %1910 = vmatpush1.bf16.msra.mxu0 %v1676
        %1911 = vmatprep.subr.bf16.mxu0 %v1683
        %1912 = vmatpush1.bf16.msra.mxu0 %v1682
        %1913 = vmatprep.subr.bf16.mxu0 %v1689
        %1914 = vmatpush1.bf16.msra.mxu0 %v1688
        %1915 = vmatprep.subr.bf16.mxu0 %v1695
        %1916 = vmatpush1.bf16.msra.mxu0 %v1694
        %1917 = vmatprep.subr.bf16.mxu0 %v1701
        %1918 = vmatpush1.bf16.msra.mxu0 %v1700
        %1919 = vmatprep.subr.bf16.mxu0 %v1707
        %1920 = vmatpush1.bf16.msra.mxu0 %v1706
        %1921 = vmatprep.subr.bf16.mxu0 %v1713
        %1922 = vmatpush1.bf16.msra.mxu0 %v1712
        %1923 = vmatprep.subr.bf16.mxu0 %v1719
        %1924 = vmatpush1.bf16.msra.mxu0 %v1718
        %1925 = vmatprep.subr.bf16.mxu0 %v1725
        %1926 = vmatpush1.bf16.msra.mxu0 %v1724
        %1927 = vmatprep.subr.bf16.mxu0 %v1731
        %1928 = vmatpush1.bf16.msra.mxu0 %v1730
        %1929 = vmatprep.subr.bf16.mxu0 %v1737
        %1930 = vmatpush1.bf16.msra.mxu0 %v1736
        %1931 = vmatprep.subr.bf16.mxu0 %v1743
        %1932 = vmatpush1.bf16.msra.mxu0 %v1742
        %1933 = vmatprep.subr.bf16.mxu0 %v1749
        %1934 = vmatpush1.bf16.msra.mxu0 %v1748
        %1935 = vmatprep.subr.bf16.mxu0 %v1755
        %1936 = vmatpush1.bf16.msra.mxu0 %v1754
        %1937 = vmatprep.subr.bf16.mxu0 %v1761
        %1938 = vmatpush1.bf16.msra.mxu0 %v1760
        %1939 = vmatprep.subr.bf16.mxu0 %v1767
        %1940 = vmatpush1.bf16.msra.mxu0 %v1766
        %1941 = vmatprep.mubr.bf16.mxu0 %v1257
        %1942 = vmatmul.mubr.bf16.gmra.mrb[0].mxu0 %v1256
        %v1943 = vpop.f32.mrb[0].mxu0
        %v1944 = vadd.f32 %v1367, %v1943
        %v1945 = vpop.f32.mrb[0].mxu0
        %v1946 = vadd.f32 %v1371, %v1945
        %v1947 = vpop.f32.mrb[0].mxu0
        %v1948 = vadd.f32 %v1367, %v1947
        %v1949 = vpop.f32.mrb[0].mxu0
        %v1950 = vadd.f32 %v1371, %v1949
        %1951 = vdwg.mxu0
        %1952 = vmatprep.subr.bf16.mxu0 %v1679
        %1953 = vmatpush1.bf16.msra.mxu0 %v1678
        %1954 = vmatprep.subr.bf16.mxu0 %v1685
        %1955 = vmatpush1.bf16.msra.mxu0 %v1684
        %1956 = vmatprep.subr.bf16.mxu0 %v1691
        %1957 = vmatpush1.bf16.msra.mxu0 %v1690
        %1958 = vmatprep.subr.bf16.mxu0 %v1697
        %1959 = vmatpush1.bf16.msra.mxu0 %v1696
        %1960 = vmatprep.subr.bf16.mxu0 %v1703
        %1961 = vmatpush1.bf16.msra.mxu0 %v1702
        %1962 = vmatprep.subr.bf16.mxu0 %v1709
        %1963 = vmatpush1.bf16.msra.mxu0 %v1708
        %1964 = vmatprep.subr.bf16.mxu0 %v1715
        %1965 = vmatpush1.bf16.msra.mxu0 %v1714
        %1966 = vmatprep.subr.bf16.mxu0 %v1721
        %1967 = vmatpush1.bf16.msra.mxu0 %v1720
        %1968 = vmatprep.subr.bf16.mxu0 %v1727
        %1969 = vmatpush1.bf16.msra.mxu0 %v1726
        %1970 = vmatprep.subr.bf16.mxu0 %v1733
        %1971 = vmatpush1.bf16.msra.mxu0 %v1732
        %1972 = vmatprep.subr.bf16.mxu0 %v1739
        %1973 = vmatpush1.bf16.msra.mxu0 %v1738
        %1974 = vmatprep.subr.bf16.mxu0 %v1745
        %1975 = vmatpush1.bf16.msra.mxu0 %v1744
        %1976 = vmatprep.subr.bf16.mxu0 %v1751
        %1977 = vmatpush1.bf16.msra.mxu0 %v1750
        %1978 = vmatprep.subr.bf16.mxu0 %v1757
        %1979 = vmatpush1.bf16.msra.mxu0 %v1756
        %1980 = vmatprep.subr.bf16.mxu0 %v1763
        %1981 = vmatpush1.bf16.msra.mxu0 %v1762
        %1982 = vmatprep.subr.bf16.mxu0 %v1769
        %1983 = vmatpush1.bf16.msra.mxu0 %v1768
        %1984 = vmatprep.mubr.bf16.mxu0 %v1257
        %1985 = vmatmul.mubr.bf16.gmra.mrb[0].mxu0 %v1256
        %v1986 = vpop.f32.mrb[0].mxu0
        %v1987 = vadd.f32 %v1375, %v1986
        %v1988 = vpop.f32.mrb[0].mxu0
        %v1989 = vadd.f32 %v1379, %v1988
        %v1990 = vpop.f32.mrb[0].mxu0
        %v1991 = vadd.f32 %v1375, %v1990
        %v1992 = vpop.f32.mrb[0].mxu0
        %v1993 = vadd.f32 %v1379, %v1992
        %1994 = vdwg.mxu0
        %v1995 = vlaneseq
        %v1996 = vand.u32 %v1995, 127
        %vm1997 = vcmp.lt.s32.totalorder %v1996, 5
        %v1998 = vmul.f32 %v1901, 0.125
        %v1999 = vmul.f32 %v1903, 0.125
        %v2000 = vpack.c.bf16 %v1998, %v1998
        %v2001 = vpack.c.bf16 %v1944, %v1944
        %v2002 = vpack.c.bf16 %v1987, %v1987
        %vm2003 = vcmask 523264
        %v2005 = vsel %vm2003, %v2000, 0
        %v2008 = vsel %vm2003, %v2001, 0
        %2010 = vmatprep.subr.bf16.mxu0 0
        %2011 = vmatpush1.bf16.xpose.msra.mxu0 %v2008
        %2012 = vmatprep.subr.bf16.mxu0 0
        %2013 = vmatpush1.bf16.xpose.msra.mxu0 0
        %2014 = vmatprep.subr.bf16.mxu0 0
        %2015 = vmatpush1.bf16.xpose.msra.mxu0 0
        %2016 = vmatprep.subr.bf16.mxu0 0
        %2017 = vmatpush1.bf16.xpose.msra.mxu0 0
        %2018 = vmatprep.subr.bf16.mxu0 0
        %2019 = vmatpush1.bf16.xpose.msra.mxu0 0
        %2020 = vmatprep.subr.bf16.mxu0 0
        %2021 = vmatpush1.bf16.xpose.msra.mxu0 0
        %2022 = vmatprep.subr.bf16.mxu0 0
        %2023 = vmatpush1.bf16.xpose.msra.mxu0 0
        %2024 = vmatprep.subr.bf16.mxu0 0
        %2025 = vmatpush1.bf16.xpose.msra.mxu0 0
        %2026 = vmatprep.subr.bf16.mxu0 0
        %2027 = vmatpush1.bf16.xpose.msra.mxu0 0
        %2028 = vmatprep.subr.bf16.mxu0 0
        %2029 = vmatpush1.bf16.xpose.msra.mxu0 0
        %2030 = vmatprep.subr.bf16.mxu0 0
        %2031 = vmatpush1.bf16.xpose.msra.mxu0 0
        %2032 = vmatprep.subr.bf16.mxu0 0
        %2033 = vmatpush1.bf16.xpose.msra.mxu0 0
        %2034 = vmatprep.subr.bf16.mxu0 0
        %2035 = vmatpush1.bf16.xpose.msra.mxu0 0
        %2036 = vmatprep.subr.bf16.mxu0 0
        %2037 = vmatpush1.bf16.xpose.msra.mxu0 0
        %2038 = vmatprep.subr.bf16.mxu0 0
        %2039 = vmatpush1.bf16.xpose.msra.mxu0 0
        %2040 = vmatprep.subr.bf16.mxu0 0
        %2041 = vmatpush1.bf16.xpose.msra.mxu0 0
        %2042 = vmatprep.mubr.bf16.mxu0 0
        %2043 = vmatmul.mubr.bf16.gmra.mrb[0].mxu0 %v2005
        %v2044 = vpop.f32.mrb[0].mxu0
        %v2045 = vadd.f32 0.0, %v2044
        %v2046 = vpop.f32.mrb[0].mxu0
        %v2047 = vpop.f32.mrb[0].mxu0
        %v2048 = vpop.f32.mrb[0].mxu0
        %2049 = vdwg.mxu0
        %v2050 = vsel %vm1997, %v2045, -1e+30
        %vm2051 = vcmask 64512
        %v2052 = vsel %vm2051, %v2050, -inf
        %2053 = vmax.xlane.f32.xlu0 %v2052
        %v2054 = vpop.xlane.xlu0 %2053
        %v2055 = vsub.f32 %v2050, %v2054
        %v2056 = vmul.f32 %v2055, 1.442695
        %v2057 = vpow.pop %v2056
        %v2058 = vsel %vm2051, %v2057, 0.0
        %2059 = vadd.xlane.f32.xlu0 %v2058
        %v2060 = vpop.xlane.xlu0 %2059
        %v2061 = vrcp.pop %v2060
        %v2062 = vmul.f32 %v2057, %v2061
        %v2063 = vpack.c.bf16 %v2062, %v2062
        %v2065 = vsel %vm2051, %v2063, 0
        %vm2067 = vcmask 1043456
        %v2069 = vsel %vm2067, %v2002, 0
        %2071 = vmatprep.subr.bf16.mxu0 0
        %2072 = vmatpush1.bf16.msra.mxu0 %v2069
        %2073 = vmatprep.subr.bf16.mxu0 0
        %2074 = vmatpush1.bf16.msra.mxu0 0
        %2075 = vmatprep.subr.bf16.mxu0 0
        %2076 = vmatpush1.bf16.msra.mxu0 0
        %2077 = vmatprep.subr.bf16.mxu0 0
        %2078 = vmatpush1.bf16.msra.mxu0 0
        %2079 = vmatprep.subr.bf16.mxu0 0
        %2080 = vmatpush1.bf16.msra.mxu0 0
        %2081 = vmatprep.subr.bf16.mxu0 0
        %2082 = vmatpush1.bf16.msra.mxu0 0
        %2083 = vmatprep.subr.bf16.mxu0 0
        %2084 = vmatpush1.bf16.msra.mxu0 0
        %2085 = vmatprep.subr.bf16.mxu0 0
        %2086 = vmatpush1.bf16.msra.mxu0 0
        %2087 = vmatprep.subr.bf16.mxu0 0
        %2088 = vmatpush1.bf16.msra.mxu0 0
        %2089 = vmatprep.subr.bf16.mxu0 0
        %2090 = vmatpush1.bf16.msra.mxu0 0
        %2091 = vmatprep.subr.bf16.mxu0 0
        %2092 = vmatpush1.bf16.msra.mxu0 0
        %2093 = vmatprep.subr.bf16.mxu0 0
        %2094 = vmatpush1.bf16.msra.mxu0 0
        %2095 = vmatprep.subr.bf16.mxu0 0
        %2096 = vmatpush1.bf16.msra.mxu0 0
        %2097 = vmatprep.subr.bf16.mxu0 0
        %2098 = vmatpush1.bf16.msra.mxu0 0
        %2099 = vmatprep.subr.bf16.mxu0 0
        %2100 = vmatpush1.bf16.msra.mxu0 0
        %2101 = vmatprep.subr.bf16.mxu0 0
        %2102 = vmatpush1.bf16.msra.mxu0 0
        %2103 = vmatprep.mubr.bf16.mxu0 0
        %2104 = vmatmul.mubr.bf16.gmra.mrb[0].mxu0 %v2065
        %v2105 = vpop.f32.mrb[0].mxu0
        %v2106 = vadd.f32 0.0, %v2105
        %v2107 = vpop.f32.mrb[0].mxu0
        %v2108 = vpop.f32.mrb[0].mxu0
        %v2109 = vpop.f32.mrb[0].mxu0
        %2110 = vdwg.mxu0
        %2112 = vrot.lane.b32.xlu0 %v2000, 64
        %v2113 = vpop.permute.xlu0 %2112
        %2115 = vrot.lane.b32.xlu0 %v2001, 64
        %v2116 = vpop.permute.xlu0 %2115
        %v2118 = vsel %vm2003, %v2113, 0
        %v2121 = vsel %vm2003, %v2116, 0
        %2123 = vmatprep.subr.bf16.mxu0 0
        %2124 = vmatpush1.bf16.xpose.msra.mxu0 %v2121
        %2125 = vmatprep.subr.bf16.mxu0 0
        %2126 = vmatpush1.bf16.xpose.msra.mxu0 0
        %2127 = vmatprep.subr.bf16.mxu0 0
        %2128 = vmatpush1.bf16.xpose.msra.mxu0 0
        %2129 = vmatprep.subr.bf16.mxu0 0
        %2130 = vmatpush1.bf16.xpose.msra.mxu0 0
        %2131 = vmatprep.subr.bf16.mxu0 0
        %2132 = vmatpush1.bf16.xpose.msra.mxu0 0
        %2133 = vmatprep.subr.bf16.mxu0 0
        %2134 = vmatpush1.bf16.xpose.msra.mxu0 0
        %2135 = vmatprep.subr.bf16.mxu0 0
        %2136 = vmatpush1.bf16.xpose.msra.mxu0 0
        %2137 = vmatprep.subr.bf16.mxu0 0
        %2138 = vmatpush1.bf16.xpose.msra.mxu0 0
        %2139 = vmatprep.subr.bf16.mxu0 0
        %2140 = vmatpush1.bf16.xpose.msra.mxu0 0
        %2141 = vmatprep.subr.bf16.mxu0 0
        %2142 = vmatpush1.bf16.xpose.msra.mxu0 0
        %2143 = vmatprep.subr.bf16.mxu0 0
        %2144 = vmatpush1.bf16.xpose.msra.mxu0 0
        %2145 = vmatprep.subr.bf16.mxu0 0
        %2146 = vmatpush1.bf16.xpose.msra.mxu0 0
        %2147 = vmatprep.subr.bf16.mxu0 0
        %2148 = vmatpush1.bf16.xpose.msra.mxu0 0
        %2149 = vmatprep.subr.bf16.mxu0 0
        %2150 = vmatpush1.bf16.xpose.msra.mxu0 0
        %2151 = vmatprep.subr.bf16.mxu0 0
        %2152 = vmatpush1.bf16.xpose.msra.mxu0 0
        %2153 = vmatprep.subr.bf16.mxu0 0
        %2154 = vmatpush1.bf16.xpose.msra.mxu0 0
        %2155 = vmatprep.mubr.bf16.mxu0 0
        %2156 = vmatmul.mubr.bf16.gmra.mrb[0].mxu0 %v2118
        %v2157 = vpop.f32.mrb[0].mxu0
        %v2158 = vadd.f32 0.0, %v2157
        %v2159 = vpop.f32.mrb[0].mxu0
        %v2160 = vpop.f32.mrb[0].mxu0
        %v2161 = vpop.f32.mrb[0].mxu0
        %2162 = vdwg.mxu0
        %v2163 = vsel %vm1997, %v2158, -1e+30
        %v2164 = vsel %vm2051, %v2163, -inf
        %2165 = vmax.xlane.f32.xlu0 %v2164
        %v2166 = vpop.xlane.xlu0 %2165
        %v2167 = vsub.f32 %v2163, %v2166
        %v2168 = vmul.f32 %v2167, 1.442695
        %v2169 = vpow.pop %v2168
        %v2170 = vsel %vm2051, %v2169, 0.0
        %2171 = vadd.xlane.f32.xlu0 %v2170
        %v2172 = vpop.xlane.xlu0 %2171
        %v2173 = vrcp.pop %v2172
        %v2174 = vmul.f32 %v2169, %v2173
        %v2175 = vpack.c.bf16 %v2174, %v2174
        %2177 = vrot.lane.b32.xlu0 %v2002, 64
        %v2178 = vpop.permute.xlu0 %2177
        %v2180 = vsel %vm2051, %v2175, 0
        %v2183 = vsel %vm2067, %v2178, 0
        %2185 = vmatprep.subr.bf16.mxu0 0
        %2186 = vmatpush1.bf16.msra.mxu0 %v2183
        %2187 = vmatprep.subr.bf16.mxu0 0
        %2188 = vmatpush1.bf16.msra.mxu0 0
        %2189 = vmatprep.subr.bf16.mxu0 0
        %2190 = vmatpush1.bf16.msra.mxu0 0
        %2191 = vmatprep.subr.bf16.mxu0 0
        %2192 = vmatpush1.bf16.msra.mxu0 0
        %2193 = vmatprep.subr.bf16.mxu0 0
        %2194 = vmatpush1.bf16.msra.mxu0 0
        %2195 = vmatprep.subr.bf16.mxu0 0
        %2196 = vmatpush1.bf16.msra.mxu0 0
        %2197 = vmatprep.subr.bf16.mxu0 0
        %2198 = vmatpush1.bf16.msra.mxu0 0
        %2199 = vmatprep.subr.bf16.mxu0 0
        %2200 = vmatpush1.bf16.msra.mxu0 0
        %2201 = vmatprep.subr.bf16.mxu0 0
        %2202 = vmatpush1.bf16.msra.mxu0 0
        %2203 = vmatprep.subr.bf16.mxu0 0
        %2204 = vmatpush1.bf16.msra.mxu0 0
        %2205 = vmatprep.subr.bf16.mxu0 0
        %2206 = vmatpush1.bf16.msra.mxu0 0
        %2207 = vmatprep.subr.bf16.mxu0 0
        %2208 = vmatpush1.bf16.msra.mxu0 0
        %2209 = vmatprep.subr.bf16.mxu0 0
        %2210 = vmatpush1.bf16.msra.mxu0 0
        %2211 = vmatprep.subr.bf16.mxu0 0
        %2212 = vmatpush1.bf16.msra.mxu0 0
        %2213 = vmatprep.subr.bf16.mxu0 0
        %2214 = vmatpush1.bf16.msra.mxu0 0
        %2215 = vmatprep.subr.bf16.mxu0 0
        %2216 = vmatpush1.bf16.msra.mxu0 0
        %2217 = vmatprep.mubr.bf16.mxu0 0
        %2218 = vmatmul.mubr.bf16.gmra.mrb[0].mxu0 %v2180
        %v2219 = vpop.f32.mrb[0].mxu0
        %v2220 = vadd.f32 0.0, %v2219
        %v2221 = vpop.f32.mrb[0].mxu0
        %v2222 = vpop.f32.mrb[0].mxu0
        %v2223 = vpop.f32.mrb[0].mxu0
        %2224 = vdwg.mxu0
        %v2225 = vpack.c.bf16 %v1999, %v1999
        %v2226 = vpack.c.bf16 %v1946, %v1946
        %v2227 = vpack.c.bf16 %v1989, %v1989
        %v2229 = vsel %vm2003, %v2225, 0
        %v2232 = vsel %vm2003, %v2226, 0
        %2234 = vmatprep.subr.bf16.mxu0 0
        %2235 = vmatpush1.bf16.xpose.msra.mxu0 %v2232
        %2236 = vmatprep.subr.bf16.mxu0 0
        %2237 = vmatpush1.bf16.xpose.msra.mxu0 0
        %2238 = vmatprep.subr.bf16.mxu0 0
        %2239 = vmatpush1.bf16.xpose.msra.mxu0 0
        %2240 = vmatprep.subr.bf16.mxu0 0
        %2241 = vmatpush1.bf16.xpose.msra.mxu0 0
        %2242 = vmatprep.subr.bf16.mxu0 0
        %2243 = vmatpush1.bf16.xpose.msra.mxu0 0
        %2244 = vmatprep.subr.bf16.mxu0 0
        %2245 = vmatpush1.bf16.xpose.msra.mxu0 0
        %2246 = vmatprep.subr.bf16.mxu0 0
        %2247 = vmatpush1.bf16.xpose.msra.mxu0 0
        %2248 = vmatprep.subr.bf16.mxu0 0
        %2249 = vmatpush1.bf16.xpose.msra.mxu0 0
        %2250 = vmatprep.subr.bf16.mxu0 0
        %2251 = vmatpush1.bf16.xpose.msra.mxu0 0
        %2252 = vmatprep.subr.bf16.mxu0 0
        %2253 = vmatpush1.bf16.xpose.msra.mxu0 0
        %2254 = vmatprep.subr.bf16.mxu0 0
        %2255 = vmatpush1.bf16.xpose.msra.mxu0 0
        %2256 = vmatprep.subr.bf16.mxu0 0
        %2257 = vmatpush1.bf16.xpose.msra.mxu0 0
        %2258 = vmatprep.subr.bf16.mxu0 0
        %2259 = vmatpush1.bf16.xpose.msra.mxu0 0
        %2260 = vmatprep.subr.bf16.mxu0 0
        %2261 = vmatpush1.bf16.xpose.msra.mxu0 0
        %2262 = vmatprep.subr.bf16.mxu0 0
        %2263 = vmatpush1.bf16.xpose.msra.mxu0 0
        %2264 = vmatprep.subr.bf16.mxu0 0
        %2265 = vmatpush1.bf16.xpose.msra.mxu0 0
        %2266 = vmatprep.mubr.bf16.mxu0 0
        %2267 = vmatmul.mubr.bf16.gmra.mrb[0].mxu0 %v2229
        %v2268 = vpop.f32.mrb[0].mxu0
        %v2269 = vadd.f32 0.0, %v2268
        %v2270 = vpop.f32.mrb[0].mxu0
        %v2271 = vpop.f32.mrb[0].mxu0
        %v2272 = vpop.f32.mrb[0].mxu0
        %2273 = vdwg.mxu0
        %v2274 = vsel %vm1997, %v2269, -1e+30
        %v2275 = vsel %vm2051, %v2274, -inf
        %2276 = vmax.xlane.f32.xlu0 %v2275
        %v2277 = vpop.xlane.xlu0 %2276
        %v2278 = vsub.f32 %v2274, %v2277
        %v2279 = vmul.f32 %v2278, 1.442695
        %v2280 = vpow.pop %v2279
        %v2281 = vsel %vm2051, %v2280, 0.0
        %2282 = vadd.xlane.f32.xlu0 %v2281
        %v2283 = vpop.xlane.xlu0 %2282
        %v2284 = vrcp.pop %v2283
        %v2285 = vmul.f32 %v2280, %v2284
        %v2286 = vpack.c.bf16 %v2285, %v2285
        %v2288 = vsel %vm2051, %v2286, 0
        %v2291 = vsel %vm2067, %v2227, 0
        %2293 = vmatprep.subr.bf16.mxu0 0
        %2294 = vmatpush1.bf16.msra.mxu0 %v2291
        %2295 = vmatprep.subr.bf16.mxu0 0
        %2296 = vmatpush1.bf16.msra.mxu0 0
        %2297 = vmatprep.subr.bf16.mxu0 0
        %2298 = vmatpush1.bf16.msra.mxu0 0
        %2299 = vmatprep.subr.bf16.mxu0 0
        %2300 = vmatpush1.bf16.msra.mxu0 0
        %2301 = vmatprep.subr.bf16.mxu0 0
        %2302 = vmatpush1.bf16.msra.mxu0 0
        %2303 = vmatprep.subr.bf16.mxu0 0
        %2304 = vmatpush1.bf16.msra.mxu0 0
        %2305 = vmatprep.subr.bf16.mxu0 0
        %2306 = vmatpush1.bf16.msra.mxu0 0
        %2307 = vmatprep.subr.bf16.mxu0 0
        %2308 = vmatpush1.bf16.msra.mxu0 0
        %2309 = vmatprep.subr.bf16.mxu0 0
        %2310 = vmatpush1.bf16.msra.mxu0 0
        %2311 = vmatprep.subr.bf16.mxu0 0
        %2312 = vmatpush1.bf16.msra.mxu0 0
        %2313 = vmatprep.subr.bf16.mxu0 0
        %2314 = vmatpush1.bf16.msra.mxu0 0
        %2315 = vmatprep.subr.bf16.mxu0 0
        %2316 = vmatpush1.bf16.msra.mxu0 0
        %2317 = vmatprep.subr.bf16.mxu0 0
        %2318 = vmatpush1.bf16.msra.mxu0 0
        %2319 = vmatprep.subr.bf16.mxu0 0
        %2320 = vmatpush1.bf16.msra.mxu0 0
        %2321 = vmatprep.subr.bf16.mxu0 0
        %2322 = vmatpush1.bf16.msra.mxu0 0
        %2323 = vmatprep.subr.bf16.mxu0 0
        %2324 = vmatpush1.bf16.msra.mxu0 0
        %2325 = vmatprep.mubr.bf16.mxu0 0
        %2326 = vmatmul.mubr.bf16.gmra.mrb[0].mxu0 %v2288
        %v2327 = vpop.f32.mrb[0].mxu0
        %v2328 = vadd.f32 0.0, %v2327
        %v2329 = vpop.f32.mrb[0].mxu0
        %v2330 = vpop.f32.mrb[0].mxu0
        %v2331 = vpop.f32.mrb[0].mxu0
        %2332 = vdwg.mxu0
        %2334 = vrot.lane.b32.xlu0 %v2225, 64
        %v2335 = vpop.permute.xlu0 %2334
        %2337 = vrot.lane.b32.xlu0 %v2226, 64
        %v2338 = vpop.permute.xlu0 %2337
        %v2340 = vsel %vm2003, %v2335, 0
        %v2343 = vsel %vm2003, %v2338, 0
        %2345 = vmatprep.subr.bf16.mxu0 0
        %2346 = vmatpush1.bf16.xpose.msra.mxu0 %v2343
        %2347 = vmatprep.subr.bf16.mxu0 0
        %2348 = vmatpush1.bf16.xpose.msra.mxu0 0
        %2349 = vmatprep.subr.bf16.mxu0 0
        %2350 = vmatpush1.bf16.xpose.msra.mxu0 0
        %2351 = vmatprep.subr.bf16.mxu0 0
        %2352 = vmatpush1.bf16.xpose.msra.mxu0 0
        %2353 = vmatprep.subr.bf16.mxu0 0
        %2354 = vmatpush1.bf16.xpose.msra.mxu0 0
        %2355 = vmatprep.subr.bf16.mxu0 0
        %2356 = vmatpush1.bf16.xpose.msra.mxu0 0
        %2357 = vmatprep.subr.bf16.mxu0 0
        %2358 = vmatpush1.bf16.xpose.msra.mxu0 0
        %2359 = vmatprep.subr.bf16.mxu0 0
        %2360 = vmatpush1.bf16.xpose.msra.mxu0 0
        %2361 = vmatprep.subr.bf16.mxu0 0
        %2362 = vmatpush1.bf16.xpose.msra.mxu0 0
        %2363 = vmatprep.subr.bf16.mxu0 0
        %2364 = vmatpush1.bf16.xpose.msra.mxu0 0
        %2365 = vmatprep.subr.bf16.mxu0 0
        %2366 = vmatpush1.bf16.xpose.msra.mxu0 0
        %2367 = vmatprep.subr.bf16.mxu0 0
        %2368 = vmatpush1.bf16.xpose.msra.mxu0 0
        %2369 = vmatprep.subr.bf16.mxu0 0
        %2370 = vmatpush1.bf16.xpose.msra.mxu0 0
        %2371 = vmatprep.subr.bf16.mxu0 0
        %2372 = vmatpush1.bf16.xpose.msra.mxu0 0
        %2373 = vmatprep.subr.bf16.mxu0 0
        %2374 = vmatpush1.bf16.xpose.msra.mxu0 0
        %2375 = vmatprep.subr.bf16.mxu0 0
        %2376 = vmatpush1.bf16.xpose.msra.mxu0 0
        %2377 = vmatprep.mubr.bf16.mxu0 0
        %2378 = vmatmul.mubr.bf16.gmra.mrb[0].mxu0 %v2340
        %v2379 = vpop.f32.mrb[0].mxu0
        %v2380 = vadd.f32 0.0, %v2379
        %v2381 = vpop.f32.mrb[0].mxu0
        %v2382 = vpop.f32.mrb[0].mxu0
        %v2383 = vpop.f32.mrb[0].mxu0
        %2384 = vdwg.mxu0
        %v2385 = vsel %vm1997, %v2380, -1e+30
        %v2386 = vsel %vm2051, %v2385, -inf
        %2387 = vmax.xlane.f32.xlu0 %v2386
        %v2388 = vpop.xlane.xlu0 %2387
        %v2389 = vsub.f32 %v2385, %v2388
        %v2390 = vmul.f32 %v2389, 1.442695
        %v2391 = vpow.pop %v2390
        %v2392 = vsel %vm2051, %v2391, 0.0
        %2393 = vadd.xlane.f32.xlu0 %v2392
        %v2394 = vpop.xlane.xlu0 %2393
        %v2395 = vrcp.pop %v2394
        %v2396 = vmul.f32 %v2391, %v2395
        %v2397 = vpack.c.bf16 %v2396, %v2396
        %2399 = vrot.lane.b32.xlu0 %v2227, 64
        %v2400 = vpop.permute.xlu0 %2399
        %v2402 = vsel %vm2051, %v2397, 0
        %v2405 = vsel %vm2067, %v2400, 0
        %2407 = vmatprep.subr.bf16.mxu0 0
        %2408 = vmatpush1.bf16.msra.mxu0 %v2405
        %2409 = vmatprep.subr.bf16.mxu0 0
        %2410 = vmatpush1.bf16.msra.mxu0 0
        %2411 = vmatprep.subr.bf16.mxu0 0
        %2412 = vmatpush1.bf16.msra.mxu0 0
        %2413 = vmatprep.subr.bf16.mxu0 0
        %2414 = vmatpush1.bf16.msra.mxu0 0
        %2415 = vmatprep.subr.bf16.mxu0 0
        %2416 = vmatpush1.bf16.msra.mxu0 0
        %2417 = vmatprep.subr.bf16.mxu0 0
        %2418 = vmatpush1.bf16.msra.mxu0 0
        %2419 = vmatprep.subr.bf16.mxu0 0
        %2420 = vmatpush1.bf16.msra.mxu0 0
        %2421 = vmatprep.subr.bf16.mxu0 0
        %2422 = vmatpush1.bf16.msra.mxu0 0
        %2423 = vmatprep.subr.bf16.mxu0 0
        %2424 = vmatpush1.bf16.msra.mxu0 0
        %2425 = vmatprep.subr.bf16.mxu0 0
        %2426 = vmatpush1.bf16.msra.mxu0 0
        %2427 = vmatprep.subr.bf16.mxu0 0
        %2428 = vmatpush1.bf16.msra.mxu0 0
        %2429 = vmatprep.subr.bf16.mxu0 0
        %2430 = vmatpush1.bf16.msra.mxu0 0
        %2431 = vmatprep.subr.bf16.mxu0 0
        %2432 = vmatpush1.bf16.msra.mxu0 0
        %2433 = vmatprep.subr.bf16.mxu0 0
        %2434 = vmatpush1.bf16.msra.mxu0 0
        %2435 = vmatprep.subr.bf16.mxu0 0
        %2436 = vmatpush1.bf16.msra.mxu0 0
        %2437 = vmatprep.subr.bf16.mxu0 0
        %2438 = vmatpush1.bf16.msra.mxu0 0
        %2439 = vmatprep.mubr.bf16.mxu0 0
        %2440 = vmatmul.mubr.bf16.gmra.mrb[0].mxu0 %v2402
        %v2441 = vpop.f32.mrb[0].mxu0
        %v2442 = vadd.f32 0.0, %v2441
        %v2443 = vpop.f32.mrb[0].mxu0
        %v2444 = vpop.f32.mrb[0].mxu0
        %v2445 = vpop.f32.mrb[0].mxu0
        %2446 = vdwg.mxu0
        %2448 = vrot.lane.b32.xlu0 %v2220, 64
        %v2449 = vpop.permute.xlu0 %2448
        %2452 = vrot.lane.b32.xlu0 %v2442, 64
        %v2453 = vpop.permute.xlu0 %2452
        %v2455 = vsel %vm2003, %v2106, %v2449
        %v2456 = vsel %vm2003, %v2328, %v2453
        %v2457 = vmul.f32 %v1905, 0.125
        %v2458 = vmul.f32 %v1907, 0.125
        %v2459 = vpack.c.bf16 %v2457, %v2457
        %v2460 = vpack.c.bf16 %v1948, %v1948
        %v2461 = vpack.c.bf16 %v1991, %v1991
        %v2463 = vsel %vm2003, %v2459, 0
        %v2466 = vsel %vm2003, %v2460, 0
        %2468 = vmatprep.subr.bf16.mxu0 0
        %2469 = vmatpush1.bf16.xpose.msra.mxu0 %v2466
        %2470 = vmatprep.subr.bf16.mxu0 0
        %2471 = vmatpush1.bf16.xpose.msra.mxu0 0
        %2472 = vmatprep.subr.bf16.mxu0 0
        %2473 = vmatpush1.bf16.xpose.msra.mxu0 0
        %2474 = vmatprep.subr.bf16.mxu0 0
        %2475 = vmatpush1.bf16.xpose.msra.mxu0 0
        %2476 = vmatprep.subr.bf16.mxu0 0
        %2477 = vmatpush1.bf16.xpose.msra.mxu0 0
        %2478 = vmatprep.subr.bf16.mxu0 0
        %2479 = vmatpush1.bf16.xpose.msra.mxu0 0
        %2480 = vmatprep.subr.bf16.mxu0 0
        %2481 = vmatpush1.bf16.xpose.msra.mxu0 0
        %2482 = vmatprep.subr.bf16.mxu0 0
        %2483 = vmatpush1.bf16.xpose.msra.mxu0 0
        %2484 = vmatprep.subr.bf16.mxu0 0
        %2485 = vmatpush1.bf16.xpose.msra.mxu0 0
        %2486 = vmatprep.subr.bf16.mxu0 0
        %2487 = vmatpush1.bf16.xpose.msra.mxu0 0
        %2488 = vmatprep.subr.bf16.mxu0 0
        %2489 = vmatpush1.bf16.xpose.msra.mxu0 0
        %2490 = vmatprep.subr.bf16.mxu0 0
        %2491 = vmatpush1.bf16.xpose.msra.mxu0 0
        %2492 = vmatprep.subr.bf16.mxu0 0
        %2493 = vmatpush1.bf16.xpose.msra.mxu0 0
        %2494 = vmatprep.subr.bf16.mxu0 0
        %2495 = vmatpush1.bf16.xpose.msra.mxu0 0
        %2496 = vmatprep.subr.bf16.mxu0 0
        %2497 = vmatpush1.bf16.xpose.msra.mxu0 0
        %2498 = vmatprep.subr.bf16.mxu0 0
        %2499 = vmatpush1.bf16.xpose.msra.mxu0 0
        %2500 = vmatprep.mubr.bf16.mxu0 0
        %2501 = vmatmul.mubr.bf16.gmra.mrb[0].mxu0 %v2463
        %v2502 = vpop.f32.mrb[0].mxu0
        %v2503 = vadd.f32 0.0, %v2502
        %v2504 = vpop.f32.mrb[0].mxu0
        %v2505 = vpop.f32.mrb[0].mxu0
        %v2506 = vpop.f32.mrb[0].mxu0
        %2507 = vdwg.mxu0
        %v2508 = vsel %vm1997, %v2503, -1e+30
        %v2509 = vsel %vm2051, %v2508, -inf
        %2510 = vmax.xlane.f32.xlu0 %v2509
        %v2511 = vpop.xlane.xlu0 %2510
        %v2512 = vsub.f32 %v2508, %v2511
        %v2513 = vmul.f32 %v2512, 1.442695
        %v2514 = vpow.pop %v2513
        %v2515 = vsel %vm2051, %v2514, 0.0
        %2516 = vadd.xlane.f32.xlu0 %v2515
        %v2517 = vpop.xlane.xlu0 %2516
        %v2518 = vrcp.pop %v2517
        %v2519 = vmul.f32 %v2514, %v2518
        %v2520 = vpack.c.bf16 %v2519, %v2519
        %v2522 = vsel %vm2051, %v2520, 0
        %v2525 = vsel %vm2067, %v2461, 0
        %2527 = vmatprep.subr.bf16.mxu0 0
        %2528 = vmatpush1.bf16.msra.mxu0 %v2525
        %2529 = vmatprep.subr.bf16.mxu0 0
        %2530 = vmatpush1.bf16.msra.mxu0 0
        %2531 = vmatprep.subr.bf16.mxu0 0
        %2532 = vmatpush1.bf16.msra.mxu0 0
        %2533 = vmatprep.subr.bf16.mxu0 0
        %2534 = vmatpush1.bf16.msra.mxu0 0
        %2535 = vmatprep.subr.bf16.mxu0 0
        %2536 = vmatpush1.bf16.msra.mxu0 0
        %2537 = vmatprep.subr.bf16.mxu0 0
        %2538 = vmatpush1.bf16.msra.mxu0 0
        %2539 = vmatprep.subr.bf16.mxu0 0
        %2540 = vmatpush1.bf16.msra.mxu0 0
        %2541 = vmatprep.subr.bf16.mxu0 0
        %2542 = vmatpush1.bf16.msra.mxu0 0
        %2543 = vmatprep.subr.bf16.mxu0 0
        %2544 = vmatpush1.bf16.msra.mxu0 0
        %2545 = vmatprep.subr.bf16.mxu0 0
        %2546 = vmatpush1.bf16.msra.mxu0 0
        %2547 = vmatprep.subr.bf16.mxu0 0
        %2548 = vmatpush1.bf16.msra.mxu0 0
        %2549 = vmatprep.subr.bf16.mxu0 0
        %2550 = vmatpush1.bf16.msra.mxu0 0
        %2551 = vmatprep.subr.bf16.mxu0 0
        %2552 = vmatpush1.bf16.msra.mxu0 0
        %2553 = vmatprep.subr.bf16.mxu0 0
        %2554 = vmatpush1.bf16.msra.mxu0 0
        %2555 = vmatprep.subr.bf16.mxu0 0
        %2556 = vmatpush1.bf16.msra.mxu0 0
        %2557 = vmatprep.subr.bf16.mxu0 0
        %2558 = vmatpush1.bf16.msra.mxu0 0
        %2559 = vmatprep.mubr.bf16.mxu0 0
        %2560 = vmatmul.mubr.bf16.gmra.mrb[0].mxu0 %v2522
        %v2561 = vpop.f32.mrb[0].mxu0
        %v2562 = vadd.f32 0.0, %v2561
        %v2563 = vpop.f32.mrb[0].mxu0
        %v2564 = vpop.f32.mrb[0].mxu0
        %v2565 = vpop.f32.mrb[0].mxu0
        %2566 = vdwg.mxu0
        %2568 = vrot.lane.b32.xlu0 %v2459, 64
        %v2569 = vpop.permute.xlu0 %2568
        %2571 = vrot.lane.b32.xlu0 %v2460, 64
        %v2572 = vpop.permute.xlu0 %2571
        %v2574 = vsel %vm2003, %v2569, 0
        %v2577 = vsel %vm2003, %v2572, 0
        %2579 = vmatprep.subr.bf16.mxu0 0
        %2580 = vmatpush1.bf16.xpose.msra.mxu0 %v2577
        %2581 = vmatprep.subr.bf16.mxu0 0
        %2582 = vmatpush1.bf16.xpose.msra.mxu0 0
        %2583 = vmatprep.subr.bf16.mxu0 0
        %2584 = vmatpush1.bf16.xpose.msra.mxu0 0
        %2585 = vmatprep.subr.bf16.mxu0 0
        %2586 = vmatpush1.bf16.xpose.msra.mxu0 0
        %2587 = vmatprep.subr.bf16.mxu0 0
        %2588 = vmatpush1.bf16.xpose.msra.mxu0 0
        %2589 = vmatprep.subr.bf16.mxu0 0
        %2590 = vmatpush1.bf16.xpose.msra.mxu0 0
        %2591 = vmatprep.subr.bf16.mxu0 0
        %2592 = vmatpush1.bf16.xpose.msra.mxu0 0
        %2593 = vmatprep.subr.bf16.mxu0 0
        %2594 = vmatpush1.bf16.xpose.msra.mxu0 0
        %2595 = vmatprep.subr.bf16.mxu0 0
        %2596 = vmatpush1.bf16.xpose.msra.mxu0 0
        %2597 = vmatprep.subr.bf16.mxu0 0
        %2598 = vmatpush1.bf16.xpose.msra.mxu0 0
        %2599 = vmatprep.subr.bf16.mxu0 0
        %2600 = vmatpush1.bf16.xpose.msra.mxu0 0
        %2601 = vmatprep.subr.bf16.mxu0 0
        %2602 = vmatpush1.bf16.xpose.msra.mxu0 0
        %2603 = vmatprep.subr.bf16.mxu0 0
        %2604 = vmatpush1.bf16.xpose.msra.mxu0 0
        %2605 = vmatprep.subr.bf16.mxu0 0
        %2606 = vmatpush1.bf16.xpose.msra.mxu0 0
        %2607 = vmatprep.subr.bf16.mxu0 0
        %2608 = vmatpush1.bf16.xpose.msra.mxu0 0
        %2609 = vmatprep.subr.bf16.mxu0 0
        %2610 = vmatpush1.bf16.xpose.msra.mxu0 0
        %2611 = vmatprep.mubr.bf16.mxu0 0
        %2612 = vmatmul.mubr.bf16.gmra.mrb[0].mxu0 %v2574
        %v2613 = vpop.f32.mrb[0].mxu0
        %v2614 = vadd.f32 0.0, %v2613
        %v2615 = vpop.f32.mrb[0].mxu0
        %v2616 = vpop.f32.mrb[0].mxu0
        %v2617 = vpop.f32.mrb[0].mxu0
        %2618 = vdwg.mxu0
        %v2619 = vsel %vm1997, %v2614, -1e+30
        %v2620 = vsel %vm2051, %v2619, -inf
        %2621 = vmax.xlane.f32.xlu0 %v2620
        %v2622 = vpop.xlane.xlu0 %2621
        %v2623 = vsub.f32 %v2619, %v2622
        %v2624 = vmul.f32 %v2623, 1.442695
        %v2625 = vpow.pop %v2624
        %v2626 = vsel %vm2051, %v2625, 0.0
        %2627 = vadd.xlane.f32.xlu0 %v2626
        %v2628 = vpop.xlane.xlu0 %2627
        %v2629 = vrcp.pop %v2628
        %v2630 = vmul.f32 %v2625, %v2629
        %v2631 = vpack.c.bf16 %v2630, %v2630
        %2633 = vrot.lane.b32.xlu0 %v2461, 64
        %v2634 = vpop.permute.xlu0 %2633
        %v2636 = vsel %vm2051, %v2631, 0
        %v2639 = vsel %vm2067, %v2634, 0
        %2641 = vmatprep.subr.bf16.mxu0 0
        %2642 = vmatpush1.bf16.msra.mxu0 %v2639
        %2643 = vmatprep.subr.bf16.mxu0 0
        %2644 = vmatpush1.bf16.msra.mxu0 0
        %2645 = vmatprep.subr.bf16.mxu0 0
        %2646 = vmatpush1.bf16.msra.mxu0 0
        %2647 = vmatprep.subr.bf16.mxu0 0
        %2648 = vmatpush1.bf16.msra.mxu0 0
        %2649 = vmatprep.subr.bf16.mxu0 0
        %2650 = vmatpush1.bf16.msra.mxu0 0
        %2651 = vmatprep.subr.bf16.mxu0 0
        %2652 = vmatpush1.bf16.msra.mxu0 0
        %2653 = vmatprep.subr.bf16.mxu0 0
        %2654 = vmatpush1.bf16.msra.mxu0 0
        %2655 = vmatprep.subr.bf16.mxu0 0
        %2656 = vmatpush1.bf16.msra.mxu0 0
        %2657 = vmatprep.subr.bf16.mxu0 0
        %2658 = vmatpush1.bf16.msra.mxu0 0
        %2659 = vmatprep.subr.bf16.mxu0 0
        %2660 = vmatpush1.bf16.msra.mxu0 0
        %2661 = vmatprep.subr.bf16.mxu0 0
        %2662 = vmatpush1.bf16.msra.mxu0 0
        %2663 = vmatprep.subr.bf16.mxu0 0
        %2664 = vmatpush1.bf16.msra.mxu0 0
        %2665 = vmatprep.subr.bf16.mxu0 0
        %2666 = vmatpush1.bf16.msra.mxu0 0
        %2667 = vmatprep.subr.bf16.mxu0 0
        %2668 = vmatpush1.bf16.msra.mxu0 0
        %2669 = vmatprep.subr.bf16.mxu0 0
        %2670 = vmatpush1.bf16.msra.mxu0 0
        %2671 = vmatprep.subr.bf16.mxu0 0
        %2672 = vmatpush1.bf16.msra.mxu0 0
        %2673 = vmatprep.mubr.bf16.mxu0 0
        %2674 = vmatmul.mubr.bf16.gmra.mrb[0].mxu0 %v2636
        %v2675 = vpop.f32.mrb[0].mxu0
        %v2676 = vadd.f32 0.0, %v2675
        %v2677 = vpop.f32.mrb[0].mxu0
        %v2678 = vpop.f32.mrb[0].mxu0
        %v2679 = vpop.f32.mrb[0].mxu0
        %2680 = vdwg.mxu0
        %v2681 = vpack.c.bf16 %v2458, %v2458
        %v2682 = vpack.c.bf16 %v1950, %v1950
        %v2683 = vpack.c.bf16 %v1993, %v1993
        %v2685 = vsel %vm2003, %v2681, 0
        %v2688 = vsel %vm2003, %v2682, 0
        %2690 = vmatprep.subr.bf16.mxu0 0
        %2691 = vmatpush1.bf16.xpose.msra.mxu0 %v2688
        %2692 = vmatprep.subr.bf16.mxu0 0
        %2693 = vmatpush1.bf16.xpose.msra.mxu0 0
        %2694 = vmatprep.subr.bf16.mxu0 0
        %2695 = vmatpush1.bf16.xpose.msra.mxu0 0
        %2696 = vmatprep.subr.bf16.mxu0 0
        %2697 = vmatpush1.bf16.xpose.msra.mxu0 0
        %2698 = vmatprep.subr.bf16.mxu0 0
        %2699 = vmatpush1.bf16.xpose.msra.mxu0 0
        %2700 = vmatprep.subr.bf16.mxu0 0
        %2701 = vmatpush1.bf16.xpose.msra.mxu0 0
        %2702 = vmatprep.subr.bf16.mxu0 0
        %2703 = vmatpush1.bf16.xpose.msra.mxu0 0
        %2704 = vmatprep.subr.bf16.mxu0 0
        %2705 = vmatpush1.bf16.xpose.msra.mxu0 0
        %2706 = vmatprep.subr.bf16.mxu0 0
        %2707 = vmatpush1.bf16.xpose.msra.mxu0 0
        %2708 = vmatprep.subr.bf16.mxu0 0
        %2709 = vmatpush1.bf16.xpose.msra.mxu0 0
        %2710 = vmatprep.subr.bf16.mxu0 0
        %2711 = vmatpush1.bf16.xpose.msra.mxu0 0
        %2712 = vmatprep.subr.bf16.mxu0 0
        %2713 = vmatpush1.bf16.xpose.msra.mxu0 0
        %2714 = vmatprep.subr.bf16.mxu0 0
        %2715 = vmatpush1.bf16.xpose.msra.mxu0 0
        %2716 = vmatprep.subr.bf16.mxu0 0
        %2717 = vmatpush1.bf16.xpose.msra.mxu0 0
        %2718 = vmatprep.subr.bf16.mxu0 0
        %2719 = vmatpush1.bf16.xpose.msra.mxu0 0
        %2720 = vmatprep.subr.bf16.mxu0 0
        %2721 = vmatpush1.bf16.xpose.msra.mxu0 0
        %2722 = vmatprep.mubr.bf16.mxu0 0
        %2723 = vmatmul.mubr.bf16.gmra.mrb[0].mxu0 %v2685
        %v2724 = vpop.f32.mrb[0].mxu0
        %v2725 = vadd.f32 0.0, %v2724
        %v2726 = vpop.f32.mrb[0].mxu0
        %v2727 = vpop.f32.mrb[0].mxu0
        %v2728 = vpop.f32.mrb[0].mxu0
        %2729 = vdwg.mxu0
        %v2730 = vsel %vm1997, %v2725, -1e+30
        %v2731 = vsel %vm2051, %v2730, -inf
        %2732 = vmax.xlane.f32.xlu0 %v2731
        %v2733 = vpop.xlane.xlu0 %2732
        %v2734 = vsub.f32 %v2730, %v2733
        %v2735 = vmul.f32 %v2734, 1.442695
        %v2736 = vpow.pop %v2735
        %v2737 = vsel %vm2051, %v2736, 0.0
        %2738 = vadd.xlane.f32.xlu0 %v2737
        %v2739 = vpop.xlane.xlu0 %2738
        %v2740 = vrcp.pop %v2739
        %v2741 = vmul.f32 %v2736, %v2740
        %v2742 = vpack.c.bf16 %v2741, %v2741
        %v2744 = vsel %vm2051, %v2742, 0
        %v2747 = vsel %vm2067, %v2683, 0
        %2749 = vmatprep.subr.bf16.mxu0 0
        %2750 = vmatpush1.bf16.msra.mxu0 %v2747
        %2751 = vmatprep.subr.bf16.mxu0 0
        %2752 = vmatpush1.bf16.msra.mxu0 0
        %2753 = vmatprep.subr.bf16.mxu0 0
        %2754 = vmatpush1.bf16.msra.mxu0 0
        %2755 = vmatprep.subr.bf16.mxu0 0
        %2756 = vmatpush1.bf16.msra.mxu0 0
        %2757 = vmatprep.subr.bf16.mxu0 0
        %2758 = vmatpush1.bf16.msra.mxu0 0
        %2759 = vmatprep.subr.bf16.mxu0 0
        %2760 = vmatpush1.bf16.msra.mxu0 0
        %2761 = vmatprep.subr.bf16.mxu0 0
        %2762 = vmatpush1.bf16.msra.mxu0 0
        %2763 = vmatprep.subr.bf16.mxu0 0
        %2764 = vmatpush1.bf16.msra.mxu0 0
        %2765 = vmatprep.subr.bf16.mxu0 0
        %2766 = vmatpush1.bf16.msra.mxu0 0
        %2767 = vmatprep.subr.bf16.mxu0 0
        %2768 = vmatpush1.bf16.msra.mxu0 0
        %2769 = vmatprep.subr.bf16.mxu0 0
        %2770 = vmatpush1.bf16.msra.mxu0 0
        %2771 = vmatprep.subr.bf16.mxu0 0
        %2772 = vmatpush1.bf16.msra.mxu0 0
        %2773 = vmatprep.subr.bf16.mxu0 0
        %2774 = vmatpush1.bf16.msra.mxu0 0
        %2775 = vmatprep.subr.bf16.mxu0 0
        %2776 = vmatpush1.bf16.msra.mxu0 0
        %2777 = vmatprep.subr.bf16.mxu0 0
        %2778 = vmatpush1.bf16.msra.mxu0 0
        %2779 = vmatprep.subr.bf16.mxu0 0
        %2780 = vmatpush1.bf16.msra.mxu0 0
        %2781 = vmatprep.mubr.bf16.mxu0 0
        %2782 = vmatmul.mubr.bf16.gmra.mrb[0].mxu0 %v2744
        %v2783 = vpop.f32.mrb[0].mxu0
        %v2784 = vadd.f32 0.0, %v2783
        %v2785 = vpop.f32.mrb[0].mxu0
        %v2786 = vpop.f32.mrb[0].mxu0
        %v2787 = vpop.f32.mrb[0].mxu0
        %2788 = vdwg.mxu0
        %2790 = vrot.lane.b32.xlu0 %v2681, 64
        %v2791 = vpop.permute.xlu0 %2790
        %2793 = vrot.lane.b32.xlu0 %v2682, 64
        %v2794 = vpop.permute.xlu0 %2793
        %v2796 = vsel %vm2003, %v2791, 0
        %v2799 = vsel %vm2003, %v2794, 0
        %2801 = vmatprep.subr.bf16.mxu0 0
        %2802 = vmatpush1.bf16.xpose.msra.mxu0 %v2799
        %2803 = vmatprep.subr.bf16.mxu0 0
        %2804 = vmatpush1.bf16.xpose.msra.mxu0 0
        %2805 = vmatprep.subr.bf16.mxu0 0
        %2806 = vmatpush1.bf16.xpose.msra.mxu0 0
        %2807 = vmatprep.subr.bf16.mxu0 0
        %2808 = vmatpush1.bf16.xpose.msra.mxu0 0
        %2809 = vmatprep.subr.bf16.mxu0 0
        %2810 = vmatpush1.bf16.xpose.msra.mxu0 0
        %2811 = vmatprep.subr.bf16.mxu0 0
        %2812 = vmatpush1.bf16.xpose.msra.mxu0 0
        %2813 = vmatprep.subr.bf16.mxu0 0
        %2814 = vmatpush1.bf16.xpose.msra.mxu0 0
        %2815 = vmatprep.subr.bf16.mxu0 0
        %2816 = vmatpush1.bf16.xpose.msra.mxu0 0
        %2817 = vmatprep.subr.bf16.mxu0 0
        %2818 = vmatpush1.bf16.xpose.msra.mxu0 0
        %2819 = vmatprep.subr.bf16.mxu0 0
        %2820 = vmatpush1.bf16.xpose.msra.mxu0 0
        %2821 = vmatprep.subr.bf16.mxu0 0
        %2822 = vmatpush1.bf16.xpose.msra.mxu0 0
        %2823 = vmatprep.subr.bf16.mxu0 0
        %2824 = vmatpush1.bf16.xpose.msra.mxu0 0
        %2825 = vmatprep.subr.bf16.mxu0 0
        %2826 = vmatpush1.bf16.xpose.msra.mxu0 0
        %2827 = vmatprep.subr.bf16.mxu0 0
        %2828 = vmatpush1.bf16.xpose.msra.mxu0 0
        %2829 = vmatprep.subr.bf16.mxu0 0
        %2830 = vmatpush1.bf16.xpose.msra.mxu0 0
        %2831 = vmatprep.subr.bf16.mxu0 0
        %2832 = vmatpush1.bf16.xpose.msra.mxu0 0
        %2833 = vmatprep.mubr.bf16.mxu0 0
        %2834 = vmatmul.mubr.bf16.gmra.mrb[0].mxu0 %v2796
        %v2835 = vpop.f32.mrb[0].mxu0
        %v2836 = vadd.f32 0.0, %v2835
        %v2837 = vpop.f32.mrb[0].mxu0
        %v2838 = vpop.f32.mrb[0].mxu0
        %v2839 = vpop.f32.mrb[0].mxu0
        %2840 = vdwg.mxu0
        %v2841 = vsel %vm1997, %v2836, -1e+30
        %v2842 = vsel %vm2051, %v2841, -inf
        %2843 = vmax.xlane.f32.xlu0 %v2842
        %v2844 = vpop.xlane.xlu0 %2843
        %v2845 = vsub.f32 %v2841, %v2844
        %v2846 = vmul.f32 %v2845, 1.442695
        %v2847 = vpow.pop %v2846
        %v2848 = vsel %vm2051, %v2847, 0.0
        %2849 = vadd.xlane.f32.xlu0 %v2848
        %v2850 = vpop.xlane.xlu0 %2849
        %v2851 = vrcp.pop %v2850
        %v2852 = vmul.f32 %v2847, %v2851
        %v2853 = vpack.c.bf16 %v2852, %v2852
        %2855 = vrot.lane.b32.xlu0 %v2683, 64
        %v2856 = vpop.permute.xlu0 %2855
        %v2858 = vsel %vm2051, %v2853, 0
        %v2861 = vsel %vm2067, %v2856, 0
        %2863 = vmatprep.subr.bf16.mxu0 0
        %2864 = vmatpush1.bf16.msra.mxu0 %v2861
        %2865 = vmatprep.subr.bf16.mxu0 0
        %2866 = vmatpush1.bf16.msra.mxu0 0
        %2867 = vmatprep.subr.bf16.mxu0 0
        %2868 = vmatpush1.bf16.msra.mxu0 0
        %2869 = vmatprep.subr.bf16.mxu0 0
        %2870 = vmatpush1.bf16.msra.mxu0 0
        %2871 = vmatprep.subr.bf16.mxu0 0
        %2872 = vmatpush1.bf16.msra.mxu0 0
        %2873 = vmatprep.subr.bf16.mxu0 0
        %2874 = vmatpush1.bf16.msra.mxu0 0
        %2875 = vmatprep.subr.bf16.mxu0 0
        %2876 = vmatpush1.bf16.msra.mxu0 0
        %2877 = vmatprep.subr.bf16.mxu0 0
        %2878 = vmatpush1.bf16.msra.mxu0 0
        %2879 = vmatprep.subr.bf16.mxu0 0
        %2880 = vmatpush1.bf16.msra.mxu0 0
        %2881 = vmatprep.subr.bf16.mxu0 0
        %2882 = vmatpush1.bf16.msra.mxu0 0
        %2883 = vmatprep.subr.bf16.mxu0 0
        %2884 = vmatpush1.bf16.msra.mxu0 0
        %2885 = vmatprep.subr.bf16.mxu0 0
        %2886 = vmatpush1.bf16.msra.mxu0 0
        %2887 = vmatprep.subr.bf16.mxu0 0
        %2888 = vmatpush1.bf16.msra.mxu0 0
        %2889 = vmatprep.subr.bf16.mxu0 0
        %2890 = vmatpush1.bf16.msra.mxu0 0
        %2891 = vmatprep.subr.bf16.mxu0 0
        %2892 = vmatpush1.bf16.msra.mxu0 0
        %2893 = vmatprep.subr.bf16.mxu0 0
        %2894 = vmatpush1.bf16.msra.mxu0 0
        %2895 = vmatprep.mubr.bf16.mxu0 0
        %2896 = vmatmul.mubr.bf16.gmra.mrb[0].mxu0 %v2858
        %v2897 = vpop.f32.mrb[0].mxu0
        %v2898 = vadd.f32 0.0, %v2897
        %v2899 = vpop.f32.mrb[0].mxu0
        %v2900 = vpop.f32.mrb[0].mxu0
        %v2901 = vpop.f32.mrb[0].mxu0
        %2902 = vdwg.mxu0
        %2904 = vrot.lane.b32.xlu0 %v2676, 64
        %v2905 = vpop.permute.xlu0 %2904
        %2908 = vrot.lane.b32.xlu0 %v2898, 64
        %v2909 = vpop.permute.xlu0 %2908
        %v2911 = vsel %vm2003, %v2562, %v2905
        %v2912 = vsel %vm2003, %v2784, %v2909
        %v2913 = vpack.c.bf16 %v2911, %v2455
        %v2914 = vpack.c.bf16 %v2912, %v2456
        %v2915 = vld [vmem:[%s760] sm:$0xff]
        %v2916 = vld [vmem:[%s760 + $0x8] sm:$0xff]
        %v2917 = vld [vmem:[%s760 + $0x10] sm:$0xff]
        %v2918 = vld [vmem:[%s760 + $0x18] sm:$0xff]
        %v2919 = vld [vmem:[%s760 + $0x20] sm:$0xff]
        %v2920 = vld [vmem:[%s760 + $0x28] sm:$0xff]
        %v2921 = vld [vmem:[%s760 + $0x30] sm:$0xff]
        %v2922 = vld [vmem:[%s760 + $0x38] sm:$0xff]
        %v2923 = vld [vmem:[%s760 + $0x40] sm:$0xff]
        %v2924 = vld [vmem:[%s760 + $0x48] sm:$0xff]
        %v2925 = vld [vmem:[%s760 + $0x50] sm:$0xff]
        %v2926 = vld [vmem:[%s760 + $0x58] sm:$0xff]
        %v2927 = vld [vmem:[%s760 + $0x60] sm:$0xff]
        %v2928 = vld [vmem:[%s760 + $0x68] sm:$0xff]
        %v2929 = vld [vmem:[%s760 + $0x70] sm:$0xff]
        %v2930 = vld [vmem:[%s760 + $0x78] sm:$0xff]
        %v2931 = vld [vmem:[%s760 + $0x80] sm:$0xff]
        %v2932 = vld [vmem:[%s760 + $0x88] sm:$0xff]
        %v2933 = vld [vmem:[%s760 + $0x90] sm:$0xff]
        %v2934 = vld [vmem:[%s760 + $0x98] sm:$0xff]
        %v2935 = vld [vmem:[%s760 + $0xa0] sm:$0xff]
        %v2936 = vld [vmem:[%s760 + $0xa8] sm:$0xff]
        %v2937 = vld [vmem:[%s760 + $0xb0] sm:$0xff]
        %v2938 = vld [vmem:[%s760 + $0xb8] sm:$0xff]
        %v2939 = vld [vmem:[%s760 + $0xc0] sm:$0xff]
        %v2940 = vld [vmem:[%s760 + $0xc8] sm:$0xff]
        %v2941 = vld [vmem:[%s760 + $0xd0] sm:$0xff]
        %v2942 = vld [vmem:[%s760 + $0xd8] sm:$0xff]
        %v2943 = vld [vmem:[%s760 + $0xe0] sm:$0xff]
        %v2944 = vld [vmem:[%s760 + $0xe8] sm:$0xff]
        %v2945 = vld [vmem:[%s760 + $0xf0] sm:$0xff]
        %v2946 = vld [vmem:[%s760 + $0xf8] sm:$0xff]
        %v2947 = vld [vmem:[%s769] sm:$0x3]
        %v2949 = vlaneseq
        %v2950 = vshrl.u32 %v2949, 7
        %v2951 = vsub.s32 0, %v2950
        %v2952 = vrot.slane %v2947, %v2951
        %v2953 = vlaneseq
        %v2954 = vshrl.u32 %v2953, 7
        %v2955 = vsub.s32 1, %v2954
        %v2956 = vrot.slane %v2947, %v2955
        %v2991 = vunpack.c.l.b16 %v2915
        %v2992 = vunpack.c.h.b16 %v2915
        %v2993 = vunpack.c.l.b16 %v2916
        %v2994 = vunpack.c.h.b16 %v2916
        %v2995 = vunpack.c.l.b16 %v2917
        %v2996 = vunpack.c.h.b16 %v2917
        %v2997 = vunpack.c.l.b16 %v2918
        %v2998 = vunpack.c.h.b16 %v2918
        %v2999 = vunpack.c.l.b16 %v2919
        %v3000 = vunpack.c.h.b16 %v2919
        %v3001 = vunpack.c.l.b16 %v2920
        %v3002 = vunpack.c.h.b16 %v2920
        %v3003 = vunpack.c.l.b16 %v2921
        %v3004 = vunpack.c.h.b16 %v2921
        %v3005 = vunpack.c.l.b16 %v2922
        %v3006 = vunpack.c.h.b16 %v2922
        %v3007 = vunpack.c.l.b16 %v2923
        %v3008 = vunpack.c.h.b16 %v2923
        %v3009 = vunpack.c.l.b16 %v2924
        %v3010 = vunpack.c.h.b16 %v2924
        %v3011 = vunpack.c.l.b16 %v2925
        %v3012 = vunpack.c.h.b16 %v2925
        %v3013 = vunpack.c.l.b16 %v2926
        %v3014 = vunpack.c.h.b16 %v2926
        %v3015 = vunpack.c.l.b16 %v2927
        %v3016 = vunpack.c.h.b16 %v2927
        %v3017 = vunpack.c.l.b16 %v2928
        %v3018 = vunpack.c.h.b16 %v2928
        %v3019 = vunpack.c.l.b16 %v2929
        %v3020 = vunpack.c.h.b16 %v2929
        %v3021 = vunpack.c.l.b16 %v2930
        %v3022 = vunpack.c.h.b16 %v2930
        %v3023 = vunpack.c.l.b16 %v2931
        %v3024 = vunpack.c.h.b16 %v2931
        %v3025 = vunpack.c.l.b16 %v2932
        %v3026 = vunpack.c.h.b16 %v2932
        %v3027 = vunpack.c.l.b16 %v2933
        %v3028 = vunpack.c.h.b16 %v2933
        %v3029 = vunpack.c.l.b16 %v2934
        %v3030 = vunpack.c.h.b16 %v2934
        %v3031 = vunpack.c.l.b16 %v2935
        %v3032 = vunpack.c.h.b16 %v2935
        %v3033 = vunpack.c.l.b16 %v2936
        %v3034 = vunpack.c.h.b16 %v2936
        %v3035 = vunpack.c.l.b16 %v2937
        %v3036 = vunpack.c.h.b16 %v2937
        %v3037 = vunpack.c.l.b16 %v2938
        %v3038 = vunpack.c.h.b16 %v2938
        %v3039 = vunpack.c.l.b16 %v2939
        %v3040 = vunpack.c.h.b16 %v2939
        %v3041 = vunpack.c.l.b16 %v2940
        %v3042 = vunpack.c.h.b16 %v2940
        %v3043 = vunpack.c.l.b16 %v2941
        %v3044 = vunpack.c.h.b16 %v2941
        %v3045 = vunpack.c.l.b16 %v2942
        %v3046 = vunpack.c.h.b16 %v2942
        %v3047 = vunpack.c.l.b16 %v2943
        %v3048 = vunpack.c.h.b16 %v2943
        %v3049 = vunpack.c.l.b16 %v2944
        %v3050 = vunpack.c.h.b16 %v2944
        %v3051 = vunpack.c.l.b16 %v2945
        %v3052 = vunpack.c.h.b16 %v2945
        %v3053 = vunpack.c.l.b16 %v2946
        %v3054 = vunpack.c.h.b16 %v2946
        %v3055 = vpack.c.b16 %v2993, %v2991
        %v3056 = vpack.c.b16 %v2994, %v2992
        %v3057 = vpack.c.b16 %v2997, %v2995
        %v3058 = vpack.c.b16 %v2998, %v2996
        %v3059 = vpack.c.b16 %v3001, %v2999
        %v3060 = vpack.c.b16 %v3002, %v3000
        %v3061 = vpack.c.b16 %v3005, %v3003
        %v3062 = vpack.c.b16 %v3006, %v3004
        %v3063 = vpack.c.b16 %v3009, %v3007
        %v3064 = vpack.c.b16 %v3010, %v3008
        %v3065 = vpack.c.b16 %v3013, %v3011
        %v3066 = vpack.c.b16 %v3014, %v3012
        %v3067 = vpack.c.b16 %v3017, %v3015
        %v3068 = vpack.c.b16 %v3018, %v3016
        %v3069 = vpack.c.b16 %v3021, %v3019
        %v3070 = vpack.c.b16 %v3022, %v3020
        %v3071 = vpack.c.b16 %v3025, %v3023
        %v3072 = vpack.c.b16 %v3026, %v3024
        %v3073 = vpack.c.b16 %v3029, %v3027
        %v3074 = vpack.c.b16 %v3030, %v3028
        %v3075 = vpack.c.b16 %v3033, %v3031
        %v3076 = vpack.c.b16 %v3034, %v3032
        %v3077 = vpack.c.b16 %v3037, %v3035
        %v3078 = vpack.c.b16 %v3038, %v3036
        %v3079 = vpack.c.b16 %v3041, %v3039
        %v3080 = vpack.c.b16 %v3042, %v3040
        %v3081 = vpack.c.b16 %v3045, %v3043
        %v3082 = vpack.c.b16 %v3046, %v3044
        %v3083 = vpack.c.b16 %v3049, %v3047
        %v3084 = vpack.c.b16 %v3050, %v3048
        %v3085 = vpack.c.b16 %v3053, %v3051
        %v3086 = vpack.c.b16 %v3054, %v3052
        %3119 = vmatprep.subr.bf16.mxu0 %v3056
        %3120 = vmatpush1.bf16.msra.mxu0 %v3055
        %3121 = vmatprep.subr.bf16.mxu0 %v3058
        %3122 = vmatpush1.bf16.msra.mxu0 %v3057
        %3123 = vmatprep.subr.bf16.mxu0 %v3060
        %3124 = vmatpush1.bf16.msra.mxu0 %v3059
        %3125 = vmatprep.subr.bf16.mxu0 %v3062
        %3126 = vmatpush1.bf16.msra.mxu0 %v3061
        %3127 = vmatprep.subr.bf16.mxu0 %v3064
        %3128 = vmatpush1.bf16.msra.mxu0 %v3063
        %3129 = vmatprep.subr.bf16.mxu0 %v3066
        %3130 = vmatpush1.bf16.msra.mxu0 %v3065
        %3131 = vmatprep.subr.bf16.mxu0 %v3068
        %3132 = vmatpush1.bf16.msra.mxu0 %v3067
        %3133 = vmatprep.subr.bf16.mxu0 %v3070
        %3134 = vmatpush1.bf16.msra.mxu0 %v3069
        %3135 = vmatprep.subr.bf16.mxu0 %v3072
        %3136 = vmatpush1.bf16.msra.mxu0 %v3071
        %3137 = vmatprep.subr.bf16.mxu0 %v3074
        %3138 = vmatpush1.bf16.msra.mxu0 %v3073
        %3139 = vmatprep.subr.bf16.mxu0 %v3076
        %3140 = vmatpush1.bf16.msra.mxu0 %v3075
        %3141 = vmatprep.subr.bf16.mxu0 %v3078
        %3142 = vmatpush1.bf16.msra.mxu0 %v3077
        %3143 = vmatprep.subr.bf16.mxu0 %v3080
        %3144 = vmatpush1.bf16.msra.mxu0 %v3079
        %3145 = vmatprep.subr.bf16.mxu0 %v3082
        %3146 = vmatpush1.bf16.msra.mxu0 %v3081
        %3147 = vmatprep.subr.bf16.mxu0 %v3084
        %3148 = vmatpush1.bf16.msra.mxu0 %v3083
        %3149 = vmatprep.subr.bf16.mxu0 %v3086
        %3150 = vmatpush1.bf16.msra.mxu0 %v3085
        %3151 = vmatprep.mubr.bf16.mxu0 %v2914
        %3152 = vmatmul.mubr.bf16.gmra.mrb[0].mxu0 %v2913
        %v3153 = vpop.f32.mrb[0].mxu0
        %v3154 = vadd.f32 %v2952, %v3153
        %v3155 = vpop.f32.mrb[0].mxu0
        %v3156 = vadd.f32 %v2956, %v3155
        %v3157 = vpop.f32.mrb[0].mxu0
        %v3158 = vadd.f32 %v2952, %v3157
        %v3159 = vpop.f32.mrb[0].mxu0
        %v3160 = vadd.f32 %v2956, %v3159
        %3161 = vdwg.mxu0
        %v3162 = vadd.f32 %v1173, %v3154
        %v3163 = vadd.f32 %v1174, %v3156
        %v3164 = vadd.f32 %v1175, %v3158
        %v3165 = vadd.f32 %v1176, %v3160
        %v3166 = vld [vmem:[%s778] sm:$0xf]
        %v3167 = vadd.f32 %v3162, %v3163
        %3168 = vadd.xlane.f32.xlu0 %v3167
        %v3169 = vpop.xlane.xlu0 %3168
        %v3170 = vadd.f32 %v3164, %v3165
        %3171 = vadd.xlane.f32.xlu0 %v3170
        %v3172 = vpop.xlane.xlu0 %3171
        %v3173 = vmul.f32 %v3169, %v1184
        %v3174 = vmul.f32 %v3172, %v1184
        %v3175 = vsub.f32 %v3162, %v3173
        %v3176 = vsub.f32 %v3163, %v3173
        %v3177 = vsub.f32 %v3164, %v3174
        %v3178 = vsub.f32 %v3165, %v3174
        %v3179 = vmul.f32 %v3175, %v3175
        %v3180 = vmul.f32 %v3176, %v3176
        %v3181 = vmul.f32 %v3177, %v3177
        %v3182 = vmul.f32 %v3178, %v3178
        %v3183 = vadd.f32 %v3179, %v3180
        %3184 = vadd.xlane.f32.xlu0 %v3183
        %v3185 = vpop.xlane.xlu0 %3184
        %v3186 = vadd.f32 %v3181, %v3182
        %3187 = vadd.xlane.f32.xlu0 %v3186
        %v3188 = vpop.xlane.xlu0 %3187
        %v3189 = vmul.f32 %v3185, %v1184
        %v3190 = vmul.f32 %v3188, %v1184
        %v3191 = vadd.f32 %v3189, 1e-12
        %v3192 = vadd.f32 %v3190, 1e-12
        %v3193 = vrsqrt.pop %v3191
        %v3194 = vrsqrt.pop %v3192
        %v3195 = vmul.f32 %v3175, %v3193
        %v3196 = vmul.f32 %v3176, %v3193
        %v3197 = vmul.f32 %v3177, %v3194
        %v3198 = vmul.f32 %v3178, %v3194
        %v3200 = vlaneseq
        %v3201 = vshrl.u32 %v3200, 7
        %v3202 = vsub.s32 0, %v3201
        %v3203 = vrot.slane %v3166, %v3202
        %v3204 = vlaneseq
        %v3205 = vshrl.u32 %v3204, 7
        %v3206 = vsub.s32 2, %v3205
        %v3207 = vrot.slane %v3166, %v3206
        %v3210 = vlaneseq
        %v3211 = vshrl.u32 %v3210, 7
        %v3212 = vsub.s32 0, %v3211
        %v3213 = vrot.slane %v3203, %v3212
        %v3214 = vlaneseq
        %v3215 = vshrl.u32 %v3214, 7
        %v3216 = vsub.s32 0, %v3215
        %v3217 = vrot.slane %v3207, %v3216
        %v3218 = vmul.f32 %v3195, %v3213
        %v3219 = vmul.f32 %v3196, %v3217
        %v3220 = vmul.f32 %v3197, %v3213
        %v3221 = vmul.f32 %v3198, %v3217
        %v3222 = vlaneseq
        %v3223 = vshrl.u32 %v3222, 7
        %v3224 = vsub.s32 1, %v3223
        %v3225 = vrot.slane %v3166, %v3224
        %v3226 = vlaneseq
        %v3227 = vshrl.u32 %v3226, 7
        %v3228 = vsub.s32 3, %v3227
        %v3229 = vrot.slane %v3166, %v3228
        %v3232 = vlaneseq
        %v3233 = vshrl.u32 %v3232, 7
        %v3234 = vsub.s32 1, %v3233
        %v3235 = vrot.slane %v3225, %v3234
        %v3236 = vlaneseq
        %v3237 = vshrl.u32 %v3236, 7
        %v3238 = vsub.s32 1, %v3237
        %v3239 = vrot.slane %v3229, %v3238
        %v3240 = vadd.f32 %v3218, %v3235
        %v3241 = vadd.f32 %v3219, %v3239
        %v3242 = vadd.f32 %v3220, %v3235
        %v3243 = vadd.f32 %v3221, %v3239
        %v3244 = vpack.c.bf16 %v3242, %v3240
        %v3245 = vpack.c.bf16 %v3243, %v3241
        %v3246 = vld [vmem:[%s787] sm:$0xff]
        %v3247 = vld [vmem:[%s787 + $0x8] sm:$0xff]
        %v3248 = vld [vmem:[%s787 + $0x10] sm:$0xff]
        %v3249 = vld [vmem:[%s787 + $0x18] sm:$0xff]
        %v3250 = vld [vmem:[%s787 + $0x20] sm:$0xff]
        %v3251 = vld [vmem:[%s787 + $0x28] sm:$0xff]
        %v3252 = vld [vmem:[%s787 + $0x30] sm:$0xff]
        %v3253 = vld [vmem:[%s787 + $0x38] sm:$0xff]
        %v3254 = vld [vmem:[%s787 + $0x40] sm:$0xff]
        %v3255 = vld [vmem:[%s787 + $0x48] sm:$0xff]
        %v3256 = vld [vmem:[%s787 + $0x50] sm:$0xff]
        %v3257 = vld [vmem:[%s787 + $0x58] sm:$0xff]
        %v3258 = vld [vmem:[%s787 + $0x60] sm:$0xff]
        %v3259 = vld [vmem:[%s787 + $0x68] sm:$0xff]
        %v3260 = vld [vmem:[%s787 + $0x70] sm:$0xff]
        %v3261 = vld [vmem:[%s787 + $0x78] sm:$0xff]
        %v3262 = vld [vmem:[%s787 + $0x80] sm:$0xff]
        %v3263 = vld [vmem:[%s787 + $0x88] sm:$0xff]
        %v3264 = vld [vmem:[%s787 + $0x90] sm:$0xff]
        %v3265 = vld [vmem:[%s787 + $0x98] sm:$0xff]
        %v3266 = vld [vmem:[%s787 + $0xa0] sm:$0xff]
        %v3267 = vld [vmem:[%s787 + $0xa8] sm:$0xff]
        %v3268 = vld [vmem:[%s787 + $0xb0] sm:$0xff]
        %v3269 = vld [vmem:[%s787 + $0xb8] sm:$0xff]
        %v3270 = vld [vmem:[%s787 + $0xc0] sm:$0xff]
        %v3271 = vld [vmem:[%s787 + $0xc8] sm:$0xff]
        %v3272 = vld [vmem:[%s787 + $0xd0] sm:$0xff]
        %v3273 = vld [vmem:[%s787 + $0xd8] sm:$0xff]
        %v3274 = vld [vmem:[%s787 + $0xe0] sm:$0xff]
        %v3275 = vld [vmem:[%s787 + $0xe8] sm:$0xff]
        %v3276 = vld [vmem:[%s787 + $0xf0] sm:$0xff]
        %v3277 = vld [vmem:[%s787 + $0xf8] sm:$0xff]
        %v3278 = vld [vmem:[%s787 + $0x100] sm:$0xff]
        %v3279 = vld [vmem:[%s787 + $0x108] sm:$0xff]
        %v3280 = vld [vmem:[%s787 + $0x110] sm:$0xff]
        %v3281 = vld [vmem:[%s787 + $0x118] sm:$0xff]
        %v3282 = vld [vmem:[%s787 + $0x120] sm:$0xff]
        %v3283 = vld [vmem:[%s787 + $0x128] sm:$0xff]
        %v3284 = vld [vmem:[%s787 + $0x130] sm:$0xff]
        %v3285 = vld [vmem:[%s787 + $0x138] sm:$0xff]
        %v3286 = vld [vmem:[%s787 + $0x140] sm:$0xff]
        %v3287 = vld [vmem:[%s787 + $0x148] sm:$0xff]
        %v3288 = vld [vmem:[%s787 + $0x150] sm:$0xff]
        %v3289 = vld [vmem:[%s787 + $0x158] sm:$0xff]
        %v3290 = vld [vmem:[%s787 + $0x160] sm:$0xff]
        %v3291 = vld [vmem:[%s787 + $0x168] sm:$0xff]
        %v3292 = vld [vmem:[%s787 + $0x170] sm:$0xff]
        %v3293 = vld [vmem:[%s787 + $0x178] sm:$0xff]
        %v3294 = vld [vmem:[%s787 + $0x180] sm:$0xff]
        %v3295 = vld [vmem:[%s787 + $0x188] sm:$0xff]
        %v3296 = vld [vmem:[%s787 + $0x190] sm:$0xff]
        %v3297 = vld [vmem:[%s787 + $0x198] sm:$0xff]
        %v3298 = vld [vmem:[%s787 + $0x1a0] sm:$0xff]
        %v3299 = vld [vmem:[%s787 + $0x1a8] sm:$0xff]
        %v3300 = vld [vmem:[%s787 + $0x1b0] sm:$0xff]
        %v3301 = vld [vmem:[%s787 + $0x1b8] sm:$0xff]
        %v3302 = vld [vmem:[%s787 + $0x1c0] sm:$0xff]
        %v3303 = vld [vmem:[%s787 + $0x1c8] sm:$0xff]
        %v3304 = vld [vmem:[%s787 + $0x1d0] sm:$0xff]
        %v3305 = vld [vmem:[%s787 + $0x1d8] sm:$0xff]
        %v3306 = vld [vmem:[%s787 + $0x1e0] sm:$0xff]
        %v3307 = vld [vmem:[%s787 + $0x1e8] sm:$0xff]
        %v3308 = vld [vmem:[%s787 + $0x1f0] sm:$0xff]
        %v3309 = vld [vmem:[%s787 + $0x1f8] sm:$0xff]
        %v3310 = vld [vmem:[%s796] sm:$0xf]
        %v3312 = vlaneseq
        %v3313 = vshrl.u32 %v3312, 7
        %v3314 = vsub.s32 0, %v3313
        %v3315 = vrot.slane %v3310, %v3314
        %v3316 = vlaneseq
        %v3317 = vshrl.u32 %v3316, 7
        %v3318 = vsub.s32 1, %v3317
        %v3319 = vrot.slane %v3310, %v3318
        %v3320 = vlaneseq
        %v3321 = vshrl.u32 %v3320, 7
        %v3322 = vsub.s32 2, %v3321
        %v3323 = vrot.slane %v3310, %v3322
        %v3324 = vlaneseq
        %v3325 = vshrl.u32 %v3324, 7
        %v3326 = vsub.s32 3, %v3325
        %v3327 = vrot.slane %v3310, %v3326
        %v3396 = vunpack.c.l.b16 %v3246
        %v3397 = vunpack.c.h.b16 %v3246
        %v3398 = vunpack.c.l.b16 %v3247
        %v3399 = vunpack.c.h.b16 %v3247
        %v3400 = vunpack.c.l.b16 %v3248
        %v3401 = vunpack.c.h.b16 %v3248
        %v3402 = vunpack.c.l.b16 %v3249
        %v3403 = vunpack.c.h.b16 %v3249
        %v3404 = vunpack.c.l.b16 %v3250
        %v3405 = vunpack.c.h.b16 %v3250
        %v3406 = vunpack.c.l.b16 %v3251
        %v3407 = vunpack.c.h.b16 %v3251
        %v3408 = vunpack.c.l.b16 %v3252
        %v3409 = vunpack.c.h.b16 %v3252
        %v3410 = vunpack.c.l.b16 %v3253
        %v3411 = vunpack.c.h.b16 %v3253
        %v3412 = vunpack.c.l.b16 %v3254
        %v3413 = vunpack.c.h.b16 %v3254
        %v3414 = vunpack.c.l.b16 %v3255
        %v3415 = vunpack.c.h.b16 %v3255
        %v3416 = vunpack.c.l.b16 %v3256
        %v3417 = vunpack.c.h.b16 %v3256
        %v3418 = vunpack.c.l.b16 %v3257
        %v3419 = vunpack.c.h.b16 %v3257
        %v3420 = vunpack.c.l.b16 %v3258
        %v3421 = vunpack.c.h.b16 %v3258
        %v3422 = vunpack.c.l.b16 %v3259
        %v3423 = vunpack.c.h.b16 %v3259
        %v3424 = vunpack.c.l.b16 %v3260
        %v3425 = vunpack.c.h.b16 %v3260
        %v3426 = vunpack.c.l.b16 %v3261
        %v3427 = vunpack.c.h.b16 %v3261
        %v3428 = vunpack.c.l.b16 %v3262
        %v3429 = vunpack.c.h.b16 %v3262
        %v3430 = vunpack.c.l.b16 %v3263
        %v3431 = vunpack.c.h.b16 %v3263
        %v3432 = vunpack.c.l.b16 %v3264
        %v3433 = vunpack.c.h.b16 %v3264
        %v3434 = vunpack.c.l.b16 %v3265
        %v3435 = vunpack.c.h.b16 %v3265
        %v3436 = vunpack.c.l.b16 %v3266
        %v3437 = vunpack.c.h.b16 %v3266
        %v3438 = vunpack.c.l.b16 %v3267
        %v3439 = vunpack.c.h.b16 %v3267
        %v3440 = vunpack.c.l.b16 %v3268
        %v3441 = vunpack.c.h.b16 %v3268
        %v3442 = vunpack.c.l.b16 %v3269
        %v3443 = vunpack.c.h.b16 %v3269
        %v3444 = vunpack.c.l.b16 %v3270
        %v3445 = vunpack.c.h.b16 %v3270
        %v3446 = vunpack.c.l.b16 %v3271
        %v3447 = vunpack.c.h.b16 %v3271
        %v3448 = vunpack.c.l.b16 %v3272
        %v3449 = vunpack.c.h.b16 %v3272
        %v3450 = vunpack.c.l.b16 %v3273
        %v3451 = vunpack.c.h.b16 %v3273
        %v3452 = vunpack.c.l.b16 %v3274
        %v3453 = vunpack.c.h.b16 %v3274
        %v3454 = vunpack.c.l.b16 %v3275
        %v3455 = vunpack.c.h.b16 %v3275
        %v3456 = vunpack.c.l.b16 %v3276
        %v3457 = vunpack.c.h.b16 %v3276
        %v3458 = vunpack.c.l.b16 %v3277
        %v3459 = vunpack.c.h.b16 %v3277
        %v3460 = vunpack.c.l.b16 %v3278
        %v3461 = vunpack.c.h.b16 %v3278
        %v3462 = vunpack.c.l.b16 %v3279
        %v3463 = vunpack.c.h.b16 %v3279
        %v3464 = vunpack.c.l.b16 %v3280
        %v3465 = vunpack.c.h.b16 %v3280
        %v3466 = vunpack.c.l.b16 %v3281
        %v3467 = vunpack.c.h.b16 %v3281
        %v3468 = vunpack.c.l.b16 %v3282
        %v3469 = vunpack.c.h.b16 %v3282
        %v3470 = vunpack.c.l.b16 %v3283
        %v3471 = vunpack.c.h.b16 %v3283
        %v3472 = vunpack.c.l.b16 %v3284
        %v3473 = vunpack.c.h.b16 %v3284
        %v3474 = vunpack.c.l.b16 %v3285
        %v3475 = vunpack.c.h.b16 %v3285
        %v3476 = vunpack.c.l.b16 %v3286
        %v3477 = vunpack.c.h.b16 %v3286
        %v3478 = vunpack.c.l.b16 %v3287
        %v3479 = vunpack.c.h.b16 %v3287
        %v3480 = vunpack.c.l.b16 %v3288
        %v3481 = vunpack.c.h.b16 %v3288
        %v3482 = vunpack.c.l.b16 %v3289
        %v3483 = vunpack.c.h.b16 %v3289
        %v3484 = vunpack.c.l.b16 %v3290
        %v3485 = vunpack.c.h.b16 %v3290
        %v3486 = vunpack.c.l.b16 %v3291
        %v3487 = vunpack.c.h.b16 %v3291
        %v3488 = vunpack.c.l.b16 %v3292
        %v3489 = vunpack.c.h.b16 %v3292
        %v3490 = vunpack.c.l.b16 %v3293
        %v3491 = vunpack.c.h.b16 %v3293
        %v3492 = vunpack.c.l.b16 %v3294
        %v3493 = vunpack.c.h.b16 %v3294
        %v3494 = vunpack.c.l.b16 %v3295
        %v3495 = vunpack.c.h.b16 %v3295
        %v3496 = vunpack.c.l.b16 %v3296
        %v3497 = vunpack.c.h.b16 %v3296
        %v3498 = vunpack.c.l.b16 %v3297
        %v3499 = vunpack.c.h.b16 %v3297
        %v3500 = vunpack.c.l.b16 %v3298
        %v3501 = vunpack.c.h.b16 %v3298
        %v3502 = vunpack.c.l.b16 %v3299
        %v3503 = vunpack.c.h.b16 %v3299
        %v3504 = vunpack.c.l.b16 %v3300
        %v3505 = vunpack.c.h.b16 %v3300
        %v3506 = vunpack.c.l.b16 %v3301
        %v3507 = vunpack.c.h.b16 %v3301
        %v3508 = vunpack.c.l.b16 %v3302
        %v3509 = vunpack.c.h.b16 %v3302
        %v3510 = vunpack.c.l.b16 %v3303
        %v3511 = vunpack.c.h.b16 %v3303
        %v3512 = vunpack.c.l.b16 %v3304
        %v3513 = vunpack.c.h.b16 %v3304
        %v3514 = vunpack.c.l.b16 %v3305
        %v3515 = vunpack.c.h.b16 %v3305
        %v3516 = vunpack.c.l.b16 %v3306
        %v3517 = vunpack.c.h.b16 %v3306
        %v3518 = vunpack.c.l.b16 %v3307
        %v3519 = vunpack.c.h.b16 %v3307
        %v3520 = vunpack.c.l.b16 %v3308
        %v3521 = vunpack.c.h.b16 %v3308
        %v3522 = vunpack.c.l.b16 %v3309
        %v3523 = vunpack.c.h.b16 %v3309
        %v3524 = vpack.c.b16 %v3400, %v3396
        %v3525 = vpack.c.b16 %v3401, %v3397
        %v3526 = vpack.c.b16 %v3402, %v3398
        %v3527 = vpack.c.b16 %v3403, %v3399
        %v3528 = vpack.c.b16 %v3408, %v3404
        %v3529 = vpack.c.b16 %v3409, %v3405
        %v3530 = vpack.c.b16 %v3410, %v3406
        %v3531 = vpack.c.b16 %v3411, %v3407
        %v3532 = vpack.c.b16 %v3416, %v3412
        %v3533 = vpack.c.b16 %v3417, %v3413
        %v3534 = vpack.c.b16 %v3418, %v3414
        %v3535 = vpack.c.b16 %v3419, %v3415
        %v3536 = vpack.c.b16 %v3424, %v3420
        %v3537 = vpack.c.b16 %v3425, %v3421
        %v3538 = vpack.c.b16 %v3426, %v3422
        %v3539 = vpack.c.b16 %v3427, %v3423
        %v3540 = vpack.c.b16 %v3432, %v3428
        %v3541 = vpack.c.b16 %v3433, %v3429
        %v3542 = vpack.c.b16 %v3434, %v3430
        %v3543 = vpack.c.b16 %v3435, %v3431
        %v3544 = vpack.c.b16 %v3440, %v3436
        %v3545 = vpack.c.b16 %v3441, %v3437
        %v3546 = vpack.c.b16 %v3442, %v3438
        %v3547 = vpack.c.b16 %v3443, %v3439
        %v3548 = vpack.c.b16 %v3448, %v3444
        %v3549 = vpack.c.b16 %v3449, %v3445
        %v3550 = vpack.c.b16 %v3450, %v3446
        %v3551 = vpack.c.b16 %v3451, %v3447
        %v3552 = vpack.c.b16 %v3456, %v3452
        %v3553 = vpack.c.b16 %v3457, %v3453
        %v3554 = vpack.c.b16 %v3458, %v3454
        %v3555 = vpack.c.b16 %v3459, %v3455
        %v3556 = vpack.c.b16 %v3464, %v3460
        %v3557 = vpack.c.b16 %v3465, %v3461
        %v3558 = vpack.c.b16 %v3466, %v3462
        %v3559 = vpack.c.b16 %v3467, %v3463
        %v3560 = vpack.c.b16 %v3472, %v3468
        %v3561 = vpack.c.b16 %v3473, %v3469
        %v3562 = vpack.c.b16 %v3474, %v3470
        %v3563 = vpack.c.b16 %v3475, %v3471
        %v3564 = vpack.c.b16 %v3480, %v3476
        %v3565 = vpack.c.b16 %v3481, %v3477
        %v3566 = vpack.c.b16 %v3482, %v3478
        %v3567 = vpack.c.b16 %v3483, %v3479
        %v3568 = vpack.c.b16 %v3488, %v3484
        %v3569 = vpack.c.b16 %v3489, %v3485
        %v3570 = vpack.c.b16 %v3490, %v3486
        %v3571 = vpack.c.b16 %v3491, %v3487
        %v3572 = vpack.c.b16 %v3496, %v3492
        %v3573 = vpack.c.b16 %v3497, %v3493
        %v3574 = vpack.c.b16 %v3498, %v3494
        %v3575 = vpack.c.b16 %v3499, %v3495
        %v3576 = vpack.c.b16 %v3504, %v3500
        %v3577 = vpack.c.b16 %v3505, %v3501
        %v3578 = vpack.c.b16 %v3506, %v3502
        %v3579 = vpack.c.b16 %v3507, %v3503
        %v3580 = vpack.c.b16 %v3512, %v3508
        %v3581 = vpack.c.b16 %v3513, %v3509
        %v3582 = vpack.c.b16 %v3514, %v3510
        %v3583 = vpack.c.b16 %v3515, %v3511
        %v3584 = vpack.c.b16 %v3520, %v3516
        %v3585 = vpack.c.b16 %v3521, %v3517
        %v3586 = vpack.c.b16 %v3522, %v3518
        %v3587 = vpack.c.b16 %v3523, %v3519
        %3652 = vmatprep.subr.bf16.mxu0 %v3525
        %3653 = vmatpush1.bf16.msra.mxu0 %v3524
        %3654 = vmatprep.subr.bf16.mxu0 %v3529
        %3655 = vmatpush1.bf16.msra.mxu0 %v3528
        %3656 = vmatprep.subr.bf16.mxu0 %v3533
        %3657 = vmatpush1.bf16.msra.mxu0 %v3532
        %3658 = vmatprep.subr.bf16.mxu0 %v3537
        %3659 = vmatpush1.bf16.msra.mxu0 %v3536
        %3660 = vmatprep.subr.bf16.mxu0 %v3541
        %3661 = vmatpush1.bf16.msra.mxu0 %v3540
        %3662 = vmatprep.subr.bf16.mxu0 %v3545
        %3663 = vmatpush1.bf16.msra.mxu0 %v3544
        %3664 = vmatprep.subr.bf16.mxu0 %v3549
        %3665 = vmatpush1.bf16.msra.mxu0 %v3548
        %3666 = vmatprep.subr.bf16.mxu0 %v3553
        %3667 = vmatpush1.bf16.msra.mxu0 %v3552
        %3668 = vmatprep.subr.bf16.mxu0 %v3557
        %3669 = vmatpush1.bf16.msra.mxu0 %v3556
        %3670 = vmatprep.subr.bf16.mxu0 %v3561
        %3671 = vmatpush1.bf16.msra.mxu0 %v3560
        %3672 = vmatprep.subr.bf16.mxu0 %v3565
        %3673 = vmatpush1.bf16.msra.mxu0 %v3564
        %3674 = vmatprep.subr.bf16.mxu0 %v3569
        %3675 = vmatpush1.bf16.msra.mxu0 %v3568
        %3676 = vmatprep.subr.bf16.mxu0 %v3573
        %3677 = vmatpush1.bf16.msra.mxu0 %v3572
        %3678 = vmatprep.subr.bf16.mxu0 %v3577
        %3679 = vmatpush1.bf16.msra.mxu0 %v3576
        %3680 = vmatprep.subr.bf16.mxu0 %v3581
        %3681 = vmatpush1.bf16.msra.mxu0 %v3580
        %3682 = vmatprep.subr.bf16.mxu0 %v3585
        %3683 = vmatpush1.bf16.msra.mxu0 %v3584
        %3684 = vmatprep.mubr.bf16.mxu0 %v3245
        %3685 = vmatmul.mubr.bf16.gmra.mrb[0].mxu0 %v3244
        %v3686 = vpop.f32.mrb[0].mxu0
        %v3687 = vadd.f32 %v3315, %v3686
        %v3688 = vpop.f32.mrb[0].mxu0
        %v3689 = vadd.f32 %v3319, %v3688
        %v3690 = vpop.f32.mrb[0].mxu0
        %v3691 = vadd.f32 %v3315, %v3690
        %v3692 = vpop.f32.mrb[0].mxu0
        %v3693 = vadd.f32 %v3319, %v3692
        %3694 = vdwg.mxu0
        %3695 = vmatprep.subr.bf16.mxu0 %v3527
        %3696 = vmatpush1.bf16.msra.mxu0 %v3526
        %3697 = vmatprep.subr.bf16.mxu0 %v3531
        %3698 = vmatpush1.bf16.msra.mxu0 %v3530
        %3699 = vmatprep.subr.bf16.mxu0 %v3535
        %3700 = vmatpush1.bf16.msra.mxu0 %v3534
        %3701 = vmatprep.subr.bf16.mxu0 %v3539
        %3702 = vmatpush1.bf16.msra.mxu0 %v3538
        %3703 = vmatprep.subr.bf16.mxu0 %v3543
        %3704 = vmatpush1.bf16.msra.mxu0 %v3542
        %3705 = vmatprep.subr.bf16.mxu0 %v3547
        %3706 = vmatpush1.bf16.msra.mxu0 %v3546
        %3707 = vmatprep.subr.bf16.mxu0 %v3551
        %3708 = vmatpush1.bf16.msra.mxu0 %v3550
        %3709 = vmatprep.subr.bf16.mxu0 %v3555
        %3710 = vmatpush1.bf16.msra.mxu0 %v3554
        %3711 = vmatprep.subr.bf16.mxu0 %v3559
        %3712 = vmatpush1.bf16.msra.mxu0 %v3558
        %3713 = vmatprep.subr.bf16.mxu0 %v3563
        %3714 = vmatpush1.bf16.msra.mxu0 %v3562
        %3715 = vmatprep.subr.bf16.mxu0 %v3567
        %3716 = vmatpush1.bf16.msra.mxu0 %v3566
        %3717 = vmatprep.subr.bf16.mxu0 %v3571
        %3718 = vmatpush1.bf16.msra.mxu0 %v3570
        %3719 = vmatprep.subr.bf16.mxu0 %v3575
        %3720 = vmatpush1.bf16.msra.mxu0 %v3574
        %3721 = vmatprep.subr.bf16.mxu0 %v3579
        %3722 = vmatpush1.bf16.msra.mxu0 %v3578
        %3723 = vmatprep.subr.bf16.mxu0 %v3583
        %3724 = vmatpush1.bf16.msra.mxu0 %v3582
        %3725 = vmatprep.subr.bf16.mxu0 %v3587
        %3726 = vmatpush1.bf16.msra.mxu0 %v3586
        %3727 = vmatprep.mubr.bf16.mxu0 %v3245
        %3728 = vmatmul.mubr.bf16.gmra.mrb[0].mxu0 %v3244
        %v3729 = vpop.f32.mrb[0].mxu0
        %v3730 = vadd.f32 %v3323, %v3729
        %v3731 = vpop.f32.mrb[0].mxu0
        %v3732 = vadd.f32 %v3327, %v3731
        %v3733 = vpop.f32.mrb[0].mxu0
        %v3734 = vadd.f32 %v3323, %v3733
        %v3735 = vpop.f32.mrb[0].mxu0
        %v3736 = vadd.f32 %v3327, %v3735
        %3737 = vdwg.mxu0
        %v3738 = vmul.f32 %v3687, 0.5
        %v3739 = vmul.f32 %v3689, 0.5
        %v3740 = vmul.f32 %v3730, 0.5
        %v3741 = vmul.f32 %v3732, 0.5
        %v3742 = vmul.f32 %v3691, 0.5
        %v3743 = vmul.f32 %v3693, 0.5
        %v3744 = vmul.f32 %v3734, 0.5
        %v3745 = vmul.f32 %v3736, 0.5
        %v3746 = vmul.f32 %v3687, 0.70710677
        %v3747 = vmul.f32 %v3689, 0.70710677
        %v3748 = vmul.f32 %v3730, 0.70710677
        %v3749 = vmul.f32 %v3732, 0.70710677
        %v3750 = vmul.f32 %v3691, 0.70710677
        %v3751 = vmul.f32 %v3693, 0.70710677
        %v3752 = vmul.f32 %v3734, 0.70710677
        %v3753 = vmul.f32 %v3736, 0.70710677
        %v3754 = verf.f32.pop %v3746
        %v3755 = verf.f32.pop %v3747
        %v3756 = verf.f32.pop %v3748
        %v3757 = verf.f32.pop %v3749
        %v3758 = verf.f32.pop %v3750
        %v3759 = verf.f32.pop %v3751
        %v3760 = verf.f32.pop %v3752
        %v3761 = verf.f32.pop %v3753
        %v3762 = vadd.f32 %v3754, 1.0
        %v3763 = vadd.f32 %v3755, 1.0
        %v3764 = vadd.f32 %v3756, 1.0
        %v3765 = vadd.f32 %v3757, 1.0
        %v3766 = vadd.f32 %v3758, 1.0
        %v3767 = vadd.f32 %v3759, 1.0
        %v3768 = vadd.f32 %v3760, 1.0
        %v3769 = vadd.f32 %v3761, 1.0
        %v3770 = vmul.f32 %v3738, %v3762
        %v3771 = vmul.f32 %v3739, %v3763
        %v3772 = vmul.f32 %v3740, %v3764
        %v3773 = vmul.f32 %v3741, %v3765
        %v3774 = vmul.f32 %v3742, %v3766
        %v3775 = vmul.f32 %v3743, %v3767
        %v3776 = vmul.f32 %v3744, %v3768
        %v3777 = vmul.f32 %v3745, %v3769
        %v3778 = vpack.c.bf16 %v3774, %v3770
        %v3779 = vpack.c.bf16 %v3775, %v3771
        %v3780 = vpack.c.bf16 %v3776, %v3772
        %v3781 = vpack.c.bf16 %v3777, %v3773
        %v3782 = vld [vmem:[%s805] sm:$0xff]
        %v3783 = vld [vmem:[%s805 + $0x8] sm:$0xff]
        %v3784 = vld [vmem:[%s805 + $0x10] sm:$0xff]
        %v3785 = vld [vmem:[%s805 + $0x18] sm:$0xff]
        %v3786 = vld [vmem:[%s805 + $0x20] sm:$0xff]
        %v3787 = vld [vmem:[%s805 + $0x28] sm:$0xff]
        %v3788 = vld [vmem:[%s805 + $0x30] sm:$0xff]
        %v3789 = vld [vmem:[%s805 + $0x38] sm:$0xff]
        %v3790 = vld [vmem:[%s805 + $0x40] sm:$0xff]
        %v3791 = vld [vmem:[%s805 + $0x48] sm:$0xff]
        %v3792 = vld [vmem:[%s805 + $0x50] sm:$0xff]
        %v3793 = vld [vmem:[%s805 + $0x58] sm:$0xff]
        %v3794 = vld [vmem:[%s805 + $0x60] sm:$0xff]
        %v3795 = vld [vmem:[%s805 + $0x68] sm:$0xff]
        %v3796 = vld [vmem:[%s805 + $0x70] sm:$0xff]
        %v3797 = vld [vmem:[%s805 + $0x78] sm:$0xff]
        %v3798 = vld [vmem:[%s805 + $0x80] sm:$0xff]
        %v3799 = vld [vmem:[%s805 + $0x88] sm:$0xff]
        %v3800 = vld [vmem:[%s805 + $0x90] sm:$0xff]
        %v3801 = vld [vmem:[%s805 + $0x98] sm:$0xff]
        %v3802 = vld [vmem:[%s805 + $0xa0] sm:$0xff]
        %v3803 = vld [vmem:[%s805 + $0xa8] sm:$0xff]
        %v3804 = vld [vmem:[%s805 + $0xb0] sm:$0xff]
        %v3805 = vld [vmem:[%s805 + $0xb8] sm:$0xff]
        %v3806 = vld [vmem:[%s805 + $0xc0] sm:$0xff]
        %v3807 = vld [vmem:[%s805 + $0xc8] sm:$0xff]
        %v3808 = vld [vmem:[%s805 + $0xd0] sm:$0xff]
        %v3809 = vld [vmem:[%s805 + $0xd8] sm:$0xff]
        %v3810 = vld [vmem:[%s805 + $0xe0] sm:$0xff]
        %v3811 = vld [vmem:[%s805 + $0xe8] sm:$0xff]
        %v3812 = vld [vmem:[%s805 + $0xf0] sm:$0xff]
        %v3813 = vld [vmem:[%s805 + $0xf8] sm:$0xff]
        %v3814 = vld [vmem:[%s805 + $0x100] sm:$0xff]
        %v3815 = vld [vmem:[%s805 + $0x108] sm:$0xff]
        %v3816 = vld [vmem:[%s805 + $0x110] sm:$0xff]
        %v3817 = vld [vmem:[%s805 + $0x118] sm:$0xff]
        %v3818 = vld [vmem:[%s805 + $0x120] sm:$0xff]
        %v3819 = vld [vmem:[%s805 + $0x128] sm:$0xff]
        %v3820 = vld [vmem:[%s805 + $0x130] sm:$0xff]
        %v3821 = vld [vmem:[%s805 + $0x138] sm:$0xff]
        %v3822 = vld [vmem:[%s805 + $0x140] sm:$0xff]
        %v3823 = vld [vmem:[%s805 + $0x148] sm:$0xff]
        %v3824 = vld [vmem:[%s805 + $0x150] sm:$0xff]
        %v3825 = vld [vmem:[%s805 + $0x158] sm:$0xff]
        %v3826 = vld [vmem:[%s805 + $0x160] sm:$0xff]
        %v3827 = vld [vmem:[%s805 + $0x168] sm:$0xff]
        %v3828 = vld [vmem:[%s805 + $0x170] sm:$0xff]
        %v3829 = vld [vmem:[%s805 + $0x178] sm:$0xff]
        %v3830 = vld [vmem:[%s805 + $0x180] sm:$0xff]
        %v3831 = vld [vmem:[%s805 + $0x188] sm:$0xff]
        %v3832 = vld [vmem:[%s805 + $0x190] sm:$0xff]
        %v3833 = vld [vmem:[%s805 + $0x198] sm:$0xff]
        %v3834 = vld [vmem:[%s805 + $0x1a0] sm:$0xff]
        %v3835 = vld [vmem:[%s805 + $0x1a8] sm:$0xff]
        %v3836 = vld [vmem:[%s805 + $0x1b0] sm:$0xff]
        %v3837 = vld [vmem:[%s805 + $0x1b8] sm:$0xff]
        %v3838 = vld [vmem:[%s805 + $0x1c0] sm:$0xff]
        %v3839 = vld [vmem:[%s805 + $0x1c8] sm:$0xff]
        %v3840 = vld [vmem:[%s805 + $0x1d0] sm:$0xff]
        %v3841 = vld [vmem:[%s805 + $0x1d8] sm:$0xff]
        %v3842 = vld [vmem:[%s805 + $0x1e0] sm:$0xff]
        %v3843 = vld [vmem:[%s805 + $0x1e8] sm:$0xff]
        %v3844 = vld [vmem:[%s805 + $0x1f0] sm:$0xff]
        %v3845 = vld [vmem:[%s805 + $0x1f8] sm:$0xff]
        %v3846 = vld [vmem:[%s814] sm:$0x3]
        %v3848 = vlaneseq
        %v3849 = vshrl.u32 %v3848, 7
        %v3850 = vsub.s32 0, %v3849
        %v3851 = vrot.slane %v3846, %v3850
        %v3852 = vlaneseq
        %v3853 = vshrl.u32 %v3852, 7
        %v3854 = vsub.s32 1, %v3853
        %v3855 = vrot.slane %v3846, %v3854
        %v3922 = vunpack.c.l.b16 %v3782
        %v3923 = vunpack.c.h.b16 %v3782
        %v3924 = vunpack.c.l.b16 %v3783
        %v3925 = vunpack.c.h.b16 %v3783
        %v3926 = vunpack.c.l.b16 %v3784
        %v3927 = vunpack.c.h.b16 %v3784
        %v3928 = vunpack.c.l.b16 %v3785
        %v3929 = vunpack.c.h.b16 %v3785
        %v3930 = vunpack.c.l.b16 %v3786
        %v3931 = vunpack.c.h.b16 %v3786
        %v3932 = vunpack.c.l.b16 %v3787
        %v3933 = vunpack.c.h.b16 %v3787
        %v3934 = vunpack.c.l.b16 %v3788
        %v3935 = vunpack.c.h.b16 %v3788
        %v3936 = vunpack.c.l.b16 %v3789
        %v3937 = vunpack.c.h.b16 %v3789
        %v3938 = vunpack.c.l.b16 %v3790
        %v3939 = vunpack.c.h.b16 %v3790
        %v3940 = vunpack.c.l.b16 %v3791
        %v3941 = vunpack.c.h.b16 %v3791
        %v3942 = vunpack.c.l.b16 %v3792
        %v3943 = vunpack.c.h.b16 %v3792
        %v3944 = vunpack.c.l.b16 %v3793
        %v3945 = vunpack.c.h.b16 %v3793
        %v3946 = vunpack.c.l.b16 %v3794
        %v3947 = vunpack.c.h.b16 %v3794
        %v3948 = vunpack.c.l.b16 %v3795
        %v3949 = vunpack.c.h.b16 %v3795
        %v3950 = vunpack.c.l.b16 %v3796
        %v3951 = vunpack.c.h.b16 %v3796
        %v3952 = vunpack.c.l.b16 %v3797
        %v3953 = vunpack.c.h.b16 %v3797
        %v3954 = vunpack.c.l.b16 %v3798
        %v3955 = vunpack.c.h.b16 %v3798
        %v3956 = vunpack.c.l.b16 %v3799
        %v3957 = vunpack.c.h.b16 %v3799
        %v3958 = vunpack.c.l.b16 %v3800
        %v3959 = vunpack.c.h.b16 %v3800
        %v3960 = vunpack.c.l.b16 %v3801
        %v3961 = vunpack.c.h.b16 %v3801
        %v3962 = vunpack.c.l.b16 %v3802
        %v3963 = vunpack.c.h.b16 %v3802
        %v3964 = vunpack.c.l.b16 %v3803
        %v3965 = vunpack.c.h.b16 %v3803
        %v3966 = vunpack.c.l.b16 %v3804
        %v3967 = vunpack.c.h.b16 %v3804
        %v3968 = vunpack.c.l.b16 %v3805
        %v3969 = vunpack.c.h.b16 %v3805
        %v3970 = vunpack.c.l.b16 %v3806
        %v3971 = vunpack.c.h.b16 %v3806
        %v3972 = vunpack.c.l.b16 %v3807
        %v3973 = vunpack.c.h.b16 %v3807
        %v3974 = vunpack.c.l.b16 %v3808
        %v3975 = vunpack.c.h.b16 %v3808
        %v3976 = vunpack.c.l.b16 %v3809
        %v3977 = vunpack.c.h.b16 %v3809
        %v3978 = vunpack.c.l.b16 %v3810
        %v3979 = vunpack.c.h.b16 %v3810
        %v3980 = vunpack.c.l.b16 %v3811
        %v3981 = vunpack.c.h.b16 %v3811
        %v3982 = vunpack.c.l.b16 %v3812
        %v3983 = vunpack.c.h.b16 %v3812
        %v3984 = vunpack.c.l.b16 %v3813
        %v3985 = vunpack.c.h.b16 %v3813
        %v3986 = vunpack.c.l.b16 %v3814
        %v3987 = vunpack.c.h.b16 %v3814
        %v3988 = vunpack.c.l.b16 %v3815
        %v3989 = vunpack.c.h.b16 %v3815
        %v3990 = vunpack.c.l.b16 %v3816
        %v3991 = vunpack.c.h.b16 %v3816
        %v3992 = vunpack.c.l.b16 %v3817
        %v3993 = vunpack.c.h.b16 %v3817
        %v3994 = vunpack.c.l.b16 %v3818
        %v3995 = vunpack.c.h.b16 %v3818
        %v3996 = vunpack.c.l.b16 %v3819
        %v3997 = vunpack.c.h.b16 %v3819
        %v3998 = vunpack.c.l.b16 %v3820
        %v3999 = vunpack.c.h.b16 %v3820
        %v4000 = vunpack.c.l.b16 %v3821
        %v4001 = vunpack.c.h.b16 %v3821
        %v4002 = vunpack.c.l.b16 %v3822
        %v4003 = vunpack.c.h.b16 %v3822
        %v4004 = vunpack.c.l.b16 %v3823
        %v4005 = vunpack.c.h.b16 %v3823
        %v4006 = vunpack.c.l.b16 %v3824
        %v4007 = vunpack.c.h.b16 %v3824
        %v4008 = vunpack.c.l.b16 %v3825
        %v4009 = vunpack.c.h.b16 %v3825
        %v4010 = vunpack.c.l.b16 %v3826
        %v4011 = vunpack.c.h.b16 %v3826
        %v4012 = vunpack.c.l.b16 %v3827
        %v4013 = vunpack.c.h.b16 %v3827
        %v4014 = vunpack.c.l.b16 %v3828
        %v4015 = vunpack.c.h.b16 %v3828
        %v4016 = vunpack.c.l.b16 %v3829
        %v4017 = vunpack.c.h.b16 %v3829
        %v4018 = vunpack.c.l.b16 %v3830
        %v4019 = vunpack.c.h.b16 %v3830
        %v4020 = vunpack.c.l.b16 %v3831
        %v4021 = vunpack.c.h.b16 %v3831
        %v4022 = vunpack.c.l.b16 %v3832
        %v4023 = vunpack.c.h.b16 %v3832
        %v4024 = vunpack.c.l.b16 %v3833
        %v4025 = vunpack.c.h.b16 %v3833
        %v4026 = vunpack.c.l.b16 %v3834
        %v4027 = vunpack.c.h.b16 %v3834
        %v4028 = vunpack.c.l.b16 %v3835
        %v4029 = vunpack.c.h.b16 %v3835
        %v4030 = vunpack.c.l.b16 %v3836
        %v4031 = vunpack.c.h.b16 %v3836
        %v4032 = vunpack.c.l.b16 %v3837
        %v4033 = vunpack.c.h.b16 %v3837
        %v4034 = vunpack.c.l.b16 %v3838
        %v4035 = vunpack.c.h.b16 %v3838
        %v4036 = vunpack.c.l.b16 %v3839
        %v4037 = vunpack.c.h.b16 %v3839
        %v4038 = vunpack.c.l.b16 %v3840
        %v4039 = vunpack.c.h.b16 %v3840
        %v4040 = vunpack.c.l.b16 %v3841
        %v4041 = vunpack.c.h.b16 %v3841
        %v4042 = vunpack.c.l.b16 %v3842
        %v4043 = vunpack.c.h.b16 %v3842
        %v4044 = vunpack.c.l.b16 %v3843
        %v4045 = vunpack.c.h.b16 %v3843
        %v4046 = vunpack.c.l.b16 %v3844
        %v4047 = vunpack.c.h.b16 %v3844
        %v4048 = vunpack.c.l.b16 %v3845
        %v4049 = vunpack.c.h.b16 %v3845
        %v4050 = vpack.c.b16 %v3924, %v3922
        %v4051 = vpack.c.b16 %v3925, %v3923
        %v4052 = vpack.c.b16 %v3928, %v3926
        %v4053 = vpack.c.b16 %v3929, %v3927
        %v4054 = vpack.c.b16 %v3932, %v3930
        %v4055 = vpack.c.b16 %v3933, %v3931
        %v4056 = vpack.c.b16 %v3936, %v3934
        %v4057 = vpack.c.b16 %v3937, %v3935
        %v4058 = vpack.c.b16 %v3940, %v3938
        %v4059 = vpack.c.b16 %v3941, %v3939
        %v4060 = vpack.c.b16 %v3944, %v3942
        %v4061 = vpack.c.b16 %v3945, %v3943
        %v4062 = vpack.c.b16 %v3948, %v3946
        %v4063 = vpack.c.b16 %v3949, %v3947
        %v4064 = vpack.c.b16 %v3952, %v3950
        %v4065 = vpack.c.b16 %v3953, %v3951
        %v4066 = vpack.c.b16 %v3956, %v3954
        %v4067 = vpack.c.b16 %v3957, %v3955
        %v4068 = vpack.c.b16 %v3960, %v3958
        %v4069 = vpack.c.b16 %v3961, %v3959
        %v4070 = vpack.c.b16 %v3964, %v3962
        %v4071 = vpack.c.b16 %v3965, %v3963
        %v4072 = vpack.c.b16 %v3968, %v3966
        %v4073 = vpack.c.b16 %v3969, %v3967
        %v4074 = vpack.c.b16 %v3972, %v3970
        %v4075 = vpack.c.b16 %v3973, %v3971
        %v4076 = vpack.c.b16 %v3976, %v3974
        %v4077 = vpack.c.b16 %v3977, %v3975
        %v4078 = vpack.c.b16 %v3980, %v3978
        %v4079 = vpack.c.b16 %v3981, %v3979
        %v4080 = vpack.c.b16 %v3984, %v3982
        %v4081 = vpack.c.b16 %v3985, %v3983
        %v4082 = vpack.c.b16 %v3988, %v3986
        %v4083 = vpack.c.b16 %v3989, %v3987
        %v4084 = vpack.c.b16 %v3992, %v3990
        %v4085 = vpack.c.b16 %v3993, %v3991
        %v4086 = vpack.c.b16 %v3996, %v3994
        %v4087 = vpack.c.b16 %v3997, %v3995
        %v4088 = vpack.c.b16 %v4000, %v3998
        %v4089 = vpack.c.b16 %v4001, %v3999
        %v4090 = vpack.c.b16 %v4004, %v4002
        %v4091 = vpack.c.b16 %v4005, %v4003
        %v4092 = vpack.c.b16 %v4008, %v4006
        %v4093 = vpack.c.b16 %v4009, %v4007
        %v4094 = vpack.c.b16 %v4012, %v4010
        %v4095 = vpack.c.b16 %v4013, %v4011
        %v4096 = vpack.c.b16 %v4016, %v4014
        %v4097 = vpack.c.b16 %v4017, %v4015
        %v4098 = vpack.c.b16 %v4020, %v4018
        %v4099 = vpack.c.b16 %v4021, %v4019
        %v4100 = vpack.c.b16 %v4024, %v4022
        %v4101 = vpack.c.b16 %v4025, %v4023
        %v4102 = vpack.c.b16 %v4028, %v4026
        %v4103 = vpack.c.b16 %v4029, %v4027
        %v4104 = vpack.c.b16 %v4032, %v4030
        %v4105 = vpack.c.b16 %v4033, %v4031
        %v4106 = vpack.c.b16 %v4036, %v4034
        %v4107 = vpack.c.b16 %v4037, %v4035
        %v4108 = vpack.c.b16 %v4040, %v4038
        %v4109 = vpack.c.b16 %v4041, %v4039
        %v4110 = vpack.c.b16 %v4044, %v4042
        %v4111 = vpack.c.b16 %v4045, %v4043
        %v4112 = vpack.c.b16 %v4048, %v4046
        %v4113 = vpack.c.b16 %v4049, %v4047
        %4178 = vmatprep.subr.bf16.mxu0 %v4051
        %4179 = vmatpush1.bf16.msra.mxu0 %v4050
        %4180 = vmatprep.subr.bf16.mxu0 %v4053
        %4181 = vmatpush1.bf16.msra.mxu0 %v4052
        %4182 = vmatprep.subr.bf16.mxu0 %v4055
        %4183 = vmatpush1.bf16.msra.mxu0 %v4054
        %4184 = vmatprep.subr.bf16.mxu0 %v4057
        %4185 = vmatpush1.bf16.msra.mxu0 %v4056
        %4186 = vmatprep.subr.bf16.mxu0 %v4059
        %4187 = vmatpush1.bf16.msra.mxu0 %v4058
        %4188 = vmatprep.subr.bf16.mxu0 %v4061
        %4189 = vmatpush1.bf16.msra.mxu0 %v4060
        %4190 = vmatprep.subr.bf16.mxu0 %v4063
        %4191 = vmatpush1.bf16.msra.mxu0 %v4062
        %4192 = vmatprep.subr.bf16.mxu0 %v4065
        %4193 = vmatpush1.bf16.msra.mxu0 %v4064
        %4194 = vmatprep.subr.bf16.mxu0 %v4067
        %4195 = vmatpush1.bf16.msra.mxu0 %v4066
        %4196 = vmatprep.subr.bf16.mxu0 %v4069
        %4197 = vmatpush1.bf16.msra.mxu0 %v4068
        %4198 = vmatprep.subr.bf16.mxu0 %v4071
        %4199 = vmatpush1.bf16.msra.mxu0 %v4070
        %4200 = vmatprep.subr.bf16.mxu0 %v4073
        %4201 = vmatpush1.bf16.msra.mxu0 %v4072
        %4202 = vmatprep.subr.bf16.mxu0 %v4075
        %4203 = vmatpush1.bf16.msra.mxu0 %v4074
        %4204 = vmatprep.subr.bf16.mxu0 %v4077
        %4205 = vmatpush1.bf16.msra.mxu0 %v4076
        %4206 = vmatprep.subr.bf16.mxu0 %v4079
        %4207 = vmatpush1.bf16.msra.mxu0 %v4078
        %4208 = vmatprep.subr.bf16.mxu0 %v4081
        %4209 = vmatpush1.bf16.msra.mxu0 %v4080
        %4210 = vmatprep.mubr.bf16.mxu0 %v3779
        %4211 = vmatmul.mubr.bf16.gmra.mrb[0].mxu0 %v3778
        %v4212 = vpop.f32.mrb[0].mxu0
        %v4213 = vadd.f32 %v3851, %v4212
        %v4214 = vpop.f32.mrb[0].mxu0
        %v4215 = vadd.f32 %v3855, %v4214
        %v4216 = vpop.f32.mrb[0].mxu0
        %v4217 = vadd.f32 %v3851, %v4216
        %v4218 = vpop.f32.mrb[0].mxu0
        %v4219 = vadd.f32 %v3855, %v4218
        %4220 = vdwg.mxu0
        %4221 = vmatprep.subr.bf16.mxu0 %v4083
        %4222 = vmatpush1.bf16.msra.mxu0 %v4082
        %4223 = vmatprep.subr.bf16.mxu0 %v4085
        %4224 = vmatpush1.bf16.msra.mxu0 %v4084
        %4225 = vmatprep.subr.bf16.mxu0 %v4087
        %4226 = vmatpush1.bf16.msra.mxu0 %v4086
        %4227 = vmatprep.subr.bf16.mxu0 %v4089
        %4228 = vmatpush1.bf16.msra.mxu0 %v4088
        %4229 = vmatprep.subr.bf16.mxu0 %v4091
        %4230 = vmatpush1.bf16.msra.mxu0 %v4090
        %4231 = vmatprep.subr.bf16.mxu0 %v4093
        %4232 = vmatpush1.bf16.msra.mxu0 %v4092
        %4233 = vmatprep.subr.bf16.mxu0 %v4095
        %4234 = vmatpush1.bf16.msra.mxu0 %v4094
        %4235 = vmatprep.subr.bf16.mxu0 %v4097
        %4236 = vmatpush1.bf16.msra.mxu0 %v4096
        %4237 = vmatprep.subr.bf16.mxu0 %v4099
        %4238 = vmatpush1.bf16.msra.mxu0 %v4098
        %4239 = vmatprep.subr.bf16.mxu0 %v4101
        %4240 = vmatpush1.bf16.msra.mxu0 %v4100
        %4241 = vmatprep.subr.bf16.mxu0 %v4103
        %4242 = vmatpush1.bf16.msra.mxu0 %v4102
        %4243 = vmatprep.subr.bf16.mxu0 %v4105
        %4244 = vmatpush1.bf16.msra.mxu0 %v4104
        %4245 = vmatprep.subr.bf16.mxu0 %v4107
        %4246 = vmatpush1.bf16.msra.mxu0 %v4106
        %4247 = vmatprep.subr.bf16.mxu0 %v4109
        %4248 = vmatpush1.bf16.msra.mxu0 %v4108
        %4249 = vmatprep.subr.bf16.mxu0 %v4111
        %4250 = vmatpush1.bf16.msra.mxu0 %v4110
        %4251 = vmatprep.subr.bf16.mxu0 %v4113
        %4252 = vmatpush1.bf16.msra.mxu0 %v4112
        %4253 = vmatprep.mubr.bf16.mxu0 %v3781
        %4254 = vmatmul.mubr.bf16.gmra.mrb[0].mxu0 %v3780
        %v4255 = vpop.f32.mrb[0].mxu0
        %v4256 = vadd.f32 %v4213, %v4255
        %v4257 = vpop.f32.mrb[0].mxu0
        %v4258 = vadd.f32 %v4215, %v4257
        %v4259 = vpop.f32.mrb[0].mxu0
        %v4260 = vadd.f32 %v4217, %v4259
        %v4261 = vpop.f32.mrb[0].mxu0
        %v4262 = vadd.f32 %v4219, %v4261
        %4263 = vdwg.mxu0
        %v4264 = vadd.f32 %v3162, %v4256
        %v4265 = vadd.f32 %v3163, %v4258
        %v4266 = vadd.f32 %v3164, %v4260
        %v4267 = vadd.f32 %v3165, %v4262
        %4268 = vst [vmem:[#allocation2] sm:$0xff] %v4264
        %4269 = vst [vmem:[#allocation2 + $0x8] sm:$0xff] %v4265
        %4270 = vst [vmem:[#allocation2 + $0x10] sm:$0xff] %v4266
        %4271 = vst [vmem:[#allocation2 + $0x18] sm:$0xff] %v4267
        %p4272 = scmp.eq.s32.totalorder %s45, 6
        // Predicated region
        $region145: #{encoder_forward.1} parent=83 // pred_check
          %p4273 = pneg %p4272
        $region146: #{encoder_forward.1} parent=83 // pred_check_branch
          %4275 = sbr.rel (%p4273) target = $region148
        $region147: #{encoder_forward.1} parent=83 // pred_region
          %v4276 = vld [vmem:[#allocation20] ss:$2 sm:$0x3]
          %s4277 = scalar_lea.vmem [#allocation20], 1
          %v4278 = vld [vmem:[%s4277] ss:$2 sm:$0x3]
          %v4279 = vadd.f32 %v4264, %v4265
          %4280 = vadd.xlane.f32.xlu0 %v4279
          %v4281 = vpop.xlane.xlu0 %4280
          %v4282 = vadd.f32 %v4266, %v4267
          %4283 = vadd.xlane.f32.xlu0 %v4282
          %v4284 = vpop.xlane.xlu0 %4283
          %v4285 = vmul.f32 %v4281, %v1184
          %v4286 = vmul.f32 %v4284, %v1184
          %v4287 = vsub.f32 %v4264, %v4285
          %v4288 = vsub.f32 %v4265, %v4285
          %v4289 = vsub.f32 %v4266, %v4286
          %v4290 = vsub.f32 %v4267, %v4286
          %v4291 = vmul.f32 %v4287, %v4287
          %v4292 = vmul.f32 %v4288, %v4288
          %v4293 = vmul.f32 %v4289, %v4289
          %v4294 = vmul.f32 %v4290, %v4290
          %v4295 = vadd.f32 %v4291, %v4292
          %4296 = vadd.xlane.f32.xlu0 %v4295
          %v4297 = vpop.xlane.xlu0 %4296
          %v4298 = vadd.f32 %v4293, %v4294
          %4299 = vadd.xlane.f32.xlu0 %v4298
          %v4300 = vpop.xlane.xlu0 %4299
          %v4301 = vmul.f32 %v4297, %v1184
          %v4302 = vmul.f32 %v4300, %v1184
          %v4303 = vadd.f32 %v4301, 1e-12
          %v4304 = vadd.f32 %v4302, 1e-12
          %v4305 = vrsqrt.pop %v4303
          %v4306 = vrsqrt.pop %v4304
          %v4307 = vmul.f32 %v4287, %v4305
          %v4308 = vmul.f32 %v4288, %v4305
          %v4309 = vmul.f32 %v4289, %v4306
          %v4310 = vmul.f32 %v4290, %v4306
          %v4312 = vlaneseq
          %v4313 = vshrl.u32 %v4312, 7
          %v4314 = vsub.s32 0, %v4313
          %v4315 = vrot.slane %v4276, %v4314
          %v4316 = vlaneseq
          %v4317 = vshrl.u32 %v4316, 7
          %v4318 = vsub.s32 1, %v4317
          %v4319 = vrot.slane %v4276, %v4318
          %v4322 = vmul.f32 %v4307, %v4315
          %v4323 = vmul.f32 %v4308, %v4319
          %v4324 = vmul.f32 %v4309, %v4315
          %v4325 = vmul.f32 %v4310, %v4319
          %v4327 = vlaneseq
          %v4328 = vshrl.u32 %v4327, 7
          %v4329 = vsub.s32 0, %v4328
          %v4330 = vrot.slane %v4278, %v4329
          %v4331 = vlaneseq
          %v4332 = vshrl.u32 %v4331, 7
          %v4333 = vsub.s32 1, %v4332
          %v4334 = vrot.slane %v4278, %v4333
          %v4337 = vadd.f32 %v4322, %v4330
          %v4338 = vadd.f32 %v4323, %v4334
          %v4339 = vadd.f32 %v4324, %v4330
          %v4340 = vadd.f32 %v4325, %v4334
          %v4341 = vpack.c.bf16 %v4339, %v4337
          %v4342 = vpack.c.bf16 %v4340, %v4338
          %v4343 = vld [vmem:[#allocation22] sm:$0xff]
          %v4344 = vld [vmem:[#allocation22 + $0x8] sm:$0xff]
          %v4345 = vld [vmem:[#allocation22 + $0x10] sm:$0xff]
          %v4346 = vld [vmem:[#allocation22 + $0x18] sm:$0xff]
          %v4347 = vld [vmem:[#allocation22 + $0x20] sm:$0xff]
          %v4348 = vld [vmem:[#allocation22 + $0x28] sm:$0xff]
          %v4349 = vld [vmem:[#allocation22 + $0x30] sm:$0xff]
          %v4350 = vld [vmem:[#allocation22 + $0x38] sm:$0xff]
          %v4351 = vld [vmem:[#allocation22 + $0x40] sm:$0xff]
          %v4352 = vld [vmem:[#allocation22 + $0x48] sm:$0xff]
          %v4353 = vld [vmem:[#allocation22 + $0x50] sm:$0xff]
          %v4354 = vld [vmem:[#allocation22 + $0x58] sm:$0xff]
          %v4355 = vld [vmem:[#allocation22 + $0x60] sm:$0xff]
          %v4356 = vld [vmem:[#allocation22 + $0x68] sm:$0xff]
          %v4357 = vld [vmem:[#allocation22 + $0x70] sm:$0xff]
          %v4358 = vld [vmem:[#allocation22 + $0x78] sm:$0xff]
          %v4359 = vld [vmem:[#allocation22 + $0x80] sm:$0xff]
          %v4360 = vld [vmem:[#allocation22 + $0x88] sm:$0xff]
          %v4361 = vld [vmem:[#allocation22 + $0x90] sm:$0xff]
          %v4362 = vld [vmem:[#allocation22 + $0x98] sm:$0xff]
          %v4363 = vld [vmem:[#allocation22 + $0xa0] sm:$0xff]
          %v4364 = vld [vmem:[#allocation22 + $0xa8] sm:$0xff]
          %v4365 = vld [vmem:[#allocation22 + $0xb0] sm:$0xff]
          %v4366 = vld [vmem:[#allocation22 + $0xb8] sm:$0xff]
          %v4367 = vld [vmem:[#allocation22 + $0xc0] sm:$0xff]
          %v4368 = vld [vmem:[#allocation22 + $0xc8] sm:$0xff]
          %v4369 = vld [vmem:[#allocation22 + $0xd0] sm:$0xff]
          %v4370 = vld [vmem:[#allocation22 + $0xd8] sm:$0xff]
          %v4371 = vld [vmem:[#allocation22 + $0xe0] sm:$0xff]
          %v4372 = vld [vmem:[#allocation22 + $0xe8] sm:$0xff]
          %v4373 = vld [vmem:[#allocation22 + $0xf0] sm:$0xff]
          %v4374 = vld [vmem:[#allocation22 + $0xf8] sm:$0xff]
          %v4375 = vld [vmem:[#allocation23] sm:$0x3]
          %v4377 = vlaneseq
          %v4378 = vshrl.u32 %v4377, 7
          %v4379 = vsub.s32 0, %v4378
          %v4380 = vrot.slane %v4375, %v4379
          %v4381 = vlaneseq
          %v4382 = vshrl.u32 %v4381, 7
          %v4383 = vsub.s32 1, %v4382
          %v4384 = vrot.slane %v4375, %v4383
          %v4419 = vunpack.c.l.b16 %v4343
          %v4420 = vunpack.c.h.b16 %v4343
          %v4421 = vunpack.c.l.b16 %v4344
          %v4422 = vunpack.c.h.b16 %v4344
          %v4423 = vunpack.c.l.b16 %v4345
          %v4424 = vunpack.c.h.b16 %v4345
          %v4425 = vunpack.c.l.b16 %v4346
          %v4426 = vunpack.c.h.b16 %v4346
          %v4427 = vunpack.c.l.b16 %v4347
          %v4428 = vunpack.c.h.b16 %v4347
          %v4429 = vunpack.c.l.b16 %v4348
          %v4430 = vunpack.c.h.b16 %v4348
          %v4431 = vunpack.c.l.b16 %v4349
          %v4432 = vunpack.c.h.b16 %v4349
          %v4433 = vunpack.c.l.b16 %v4350
          %v4434 = vunpack.c.h.b16 %v4350
          %v4435 = vunpack.c.l.b16 %v4351
          %v4436 = vunpack.c.h.b16 %v4351
          %v4437 = vunpack.c.l.b16 %v4352
          %v4438 = vunpack.c.h.b16 %v4352
          %v4439 = vunpack.c.l.b16 %v4353
          %v4440 = vunpack.c.h.b16 %v4353
          %v4441 = vunpack.c.l.b16 %v4354
          %v4442 = vunpack.c.h.b16 %v4354
          %v4443 = vunpack.c.l.b16 %v4355
          %v4444 = vunpack.c.h.b16 %v4355
          %v4445 = vunpack.c.l.b16 %v4356
          %v4446 = vunpack.c.h.b16 %v4356
          %v4447 = vunpack.c.l.b16 %v4357
          %v4448 = vunpack.c.h.b16 %v4357
          %v4449 = vunpack.c.l.b16 %v4358
          %v4450 = vunpack.c.h.b16 %v4358
          %v4451 = vunpack.c.l.b16 %v4359
          %v4452 = vunpack.c.h.b16 %v4359
          %v4453 = vunpack.c.l.b16 %v4360
          %v4454 = vunpack.c.h.b16 %v4360
          %v4455 = vunpack.c.l.b16 %v4361
          %v4456 = vunpack.c.h.b16 %v4361
          %v4457 = vunpack.c.l.b16 %v4362
          %v4458 = vunpack.c.h.b16 %v4362
          %v4459 = vunpack.c.l.b16 %v4363
          %v4460 = vunpack.c.h.b16 %v4363
          %v4461 = vunpack.c.l.b16 %v4364
          %v4462 = vunpack.c.h.b16 %v4364
          %v4463 = vunpack.c.l.b16 %v4365
          %v4464 = vunpack.c.h.b16 %v4365
          %v4465 = vunpack.c.l.b16 %v4366
          %v4466 = vunpack.c.h.b16 %v4366
          %v4467 = vunpack.c.l.b16 %v4367
          %v4468 = vunpack.c.h.b16 %v4367
          %v4469 = vunpack.c.l.b16 %v4368
          %v4470 = vunpack.c.h.b16 %v4368
          %v4471 = vunpack.c.l.b16 %v4369
          %v4472 = vunpack.c.h.b16 %v4369
          %v4473 = vunpack.c.l.b16 %v4370
          %v4474 = vunpack.c.h.b16 %v4370
          %v4475 = vunpack.c.l.b16 %v4371
          %v4476 = vunpack.c.h.b16 %v4371
          %v4477 = vunpack.c.l.b16 %v4372
          %v4478 = vunpack.c.h.b16 %v4372
          %v4479 = vunpack.c.l.b16 %v4373
          %v4480 = vunpack.c.h.b16 %v4373
          %v4481 = vunpack.c.l.b16 %v4374
          %v4482 = vunpack.c.h.b16 %v4374
          %v4483 = vpack.c.b16 %v4421, %v4419
          %v4484 = vpack.c.b16 %v4422, %v4420
          %v4485 = vpack.c.b16 %v4425, %v4423
          %v4486 = vpack.c.b16 %v4426, %v4424
          %v4487 = vpack.c.b16 %v4429, %v4427
          %v4488 = vpack.c.b16 %v4430, %v4428
          %v4489 = vpack.c.b16 %v4433, %v4431
          %v4490 = vpack.c.b16 %v4434, %v4432
          %v4491 = vpack.c.b16 %v4437, %v4435
          %v4492 = vpack.c.b16 %v4438, %v4436
          %v4493 = vpack.c.b16 %v4441, %v4439
          %v4494 = vpack.c.b16 %v4442, %v4440
          %v4495 = vpack.c.b16 %v4445, %v4443
          %v4496 = vpack.c.b16 %v4446, %v4444
          %v4497 = vpack.c.b16 %v4449, %v4447
          %v4498 = vpack.c.b16 %v4450, %v4448
          %v4499 = vpack.c.b16 %v4453, %v4451
          %v4500 = vpack.c.b16 %v4454, %v4452
          %v4501 = vpack.c.b16 %v4457, %v4455
          %v4502 = vpack.c.b16 %v4458, %v4456
          %v4503 = vpack.c.b16 %v4461, %v4459
          %v4504 = vpack.c.b16 %v4462, %v4460
          %v4505 = vpack.c.b16 %v4465, %v4463
          %v4506 = vpack.c.b16 %v4466, %v4464
          %v4507 = vpack.c.b16 %v4469, %v4467
          %v4508 = vpack.c.b16 %v4470, %v4468
          %v4509 = vpack.c.b16 %v4473, %v4471
          %v4510 = vpack.c.b16 %v4474, %v4472
          %v4511 = vpack.c.b16 %v4477, %v4475
          %v4512 = vpack.c.b16 %v4478, %v4476
          %v4513 = vpack.c.b16 %v4481, %v4479
          %v4514 = vpack.c.b16 %v4482, %v4480
          %4547 = vmatprep.subr.bf16.mxu0 %v4484
          %4548 = vmatpush1.bf16.msra.mxu0 %v4483
          %4549 = vmatprep.subr.bf16.mxu0 %v4486
          %4550 = vmatpush1.bf16.msra.mxu0 %v4485
          %4551 = vmatprep.subr.bf16.mxu0 %v4488
          %4552 = vmatpush1.bf16.msra.mxu0 %v4487
          %4553 = vmatprep.subr.bf16.mxu0 %v4490
          %4554 = vmatpush1.bf16.msra.mxu0 %v4489
          %4555 = vmatprep.subr.bf16.mxu0 %v4492
          %4556 = vmatpush1.bf16.msra.mxu0 %v4491
          %4557 = vmatprep.subr.bf16.mxu0 %v4494
          %4558 = vmatpush1.bf16.msra.mxu0 %v4493
          %4559 = vmatprep.subr.bf16.mxu0 %v4496
          %4560 = vmatpush1.bf16.msra.mxu0 %v4495
          %4561 = vmatprep.subr.bf16.mxu0 %v4498
          %4562 = vmatpush1.bf16.msra.mxu0 %v4497
          %4563 = vmatprep.subr.bf16.mxu0 %v4500
          %4564 = vmatpush1.bf16.msra.mxu0 %v4499
          %4565 = vmatprep.subr.bf16.mxu0 %v4502
          %4566 = vmatpush1.bf16.msra.mxu0 %v4501
          %4567 = vmatprep.subr.bf16.mxu0 %v4504
          %4568 = vmatpush1.bf16.msra.mxu0 %v4503
          %4569 = vmatprep.subr.bf16.mxu0 %v4506
          %4570 = vmatpush1.bf16.msra.mxu0 %v4505
          %4571 = vmatprep.subr.bf16.mxu0 %v4508
          %4572 = vmatpush1.bf16.msra.mxu0 %v4507
          %4573 = vmatprep.subr.bf16.mxu0 %v4510
          %4574 = vmatpush1.bf16.msra.mxu0 %v4509
          %4575 = vmatprep.subr.bf16.mxu0 %v4512
          %4576 = vmatpush1.bf16.msra.mxu0 %v4511
          %4577 = vmatprep.subr.bf16.mxu0 %v4514
          %4578 = vmatpush1.bf16.msra.mxu0 %v4513
          %4579 = vmatprep.mubr.bf16.mxu0 %v4342
          %4580 = vmatmul.mubr.bf16.gmra.mrb[0].mxu0 %v4341
          %v4581 = vpop.f32.mrb[0].mxu0
          %v4582 = vadd.f32 %v4380, %v4581
          %v4583 = vpop.f32.mrb[0].mxu0
          %v4584 = vadd.f32 %v4384, %v4583
          %v4585 = vpop.f32.mrb[0].mxu0
          %v4586 = vadd.f32 %v4380, %v4585
          %v4587 = vpop.f32.mrb[0].mxu0
          %v4588 = vadd.f32 %v4384, %v4587
          %4589 = vdwg.mxu0
          %v4590 = vtanh.pop %v4582
          %v4591 = vtanh.pop %v4584
          %v4592 = vtanh.pop %v4586
          %v4593 = vtanh.pop %v4588
          %4594 = vst [vmem:[%s16] sm:$0xff] %v4590
          %4595 = vst [vmem:[%s16 + $0x8] sm:$0xff] %v4591
          %4596 = vst [vmem:[%s16 + $0x10] sm:$0xff] %v4592
          %4597 = vst [vmem:[%s16 + $0x18] sm:$0xff] %v4593
        $region148: #{encoder_forward.1} parent=83 // pred_fallthru
          _
        // Predicated region
        $region149: #{encoder_forward.1} parent=83 // pred_check
          %p4598 = pneg %p444
        $region150: #{encoder_forward.1} parent=83 // pred_check_branch
          %4600 = sbr.rel (%p4598) target = $region152
        $region151: #{encoder_forward.1} parent=83 // pred_region
          _
        $region152: #{encoder_forward.1} parent=83 // pred_fallthru
          _
        // Predicated region
        $region153: #{encoder_forward.1} parent=83 // pred_check
          %p4601 = pneg %p444
        $region154: #{encoder_forward.1} parent=83 // pred_check_branch
          %4603 = sbr.rel (%p4601) target = $region156
        $region155: #{encoder_forward.1} parent=83 // pred_region
          _
        $region156: #{encoder_forward.1} parent=83 // pred_fallthru
          _
      $region84: #{encoder_forward.1} parent=5 // pred_fallthru
        _
      %p4604 = scmp.le.s32.totalorder 2, %s40
      // Predicated region
      $region157: #{encoder_forward.1} parent=5 // pred_check
        %p4605 = pneg %p4604
      $region158: #{encoder_forward.1} parent=5 // pred_check_branch
        %4607 = sbr.rel (%p4605) target = $region160
      $region159: #{encoder_forward.1} parent=5 // pred_region
        %s4608 = ssub.s32 %s40, 2
      $region160: #{encoder_forward.1} parent=5 // pred_fallthru
        _
    $region6: #{encoder_forward.1} parent=1 // loop_footer
      %s44 = sadd.s32 1, %s40
    $region7: #{encoder_forward.1} parent=1 // loop_footer_branch
      %39 = sbr.rel target = $region3
    $region8: #{encoder_forward.1} parent=1 // loop_exit
      _
    %4609 = vsyncpa [#allocation4], 1
    %s4610 = scalar_lea.sflag [#allocation4], 1
    %4611 = vsyncpa %s4610, 1
    %4612 = vsyncpa [#allocation6], 1
    %s4613 = scalar_lea.sflag [#allocation6], 1
    %4614 = vsyncpa %s4613, 1
    %4615 = vsyncpa [#allocation9], 1
    %s4616 = scalar_lea.sflag [#allocation9], 1
    %4617 = vsyncpa %s4616, 1
    %4618 = vsyncpa [#allocation12], 1
    %s4619 = scalar_lea.sflag [#allocation12], 1
    %4620 = vsyncpa %s4619, 1
    %4621 = vsyncpa [#allocation15], 1
    %s4622 = scalar_lea.sflag [#allocation15], 1
    %4623 = vsyncpa %s4622, 1
    %4624 = vsyncpa [#allocation18], 1
    %s4625 = scalar_lea.sflag [#allocation18], 1
    %4626 = vsyncpa %s4625, 1
    %4627 = vsyncpa [#allocation21], 1
    %4628 = vsyncpa [#allocation24], 1

</llo_original>
